<compile_context>
chip_gen: v5e
topology: v5e:2x2
jax: 0.10.0
libtpu: 0.0.40
codegen_flags: <defaults>
</compile_context>

<pallas_src>
import functools

import jax
import jax.numpy as jnp
from jax import lax
from jax.experimental import pallas as pl
from jax.experimental.pallas import tpu as pltpu

FEATURE_CH = 512  # hard-coded in the PyTorch module
LANE = 128
SUBLANE = 8


def _round_up(x, m):
    return ((x + m - 1) // m) * m


def _choose_hw_tiling(hw, cap=1024):
    """Return (t_hw, hw_pad): sublane-aligned spatial tile and padded HW.

    cap=1024 keeps the per-step f32 intermediate (t_hw x 512 ~ 2 MiB) plus the
    bf16 intermediates well inside scoped VMEM on every generation (incl.
    v7x's smaller VMEM), while amortising per-grid-step overhead."""
    hw_aligned = _round_up(hw, SUBLANE)
    cap = max(SUBLANE, min(cap, hw_aligned))
    cap -= cap % SUBLANE
    for t in range(cap, SUBLANE - 1, -SUBLANE):   # prefer an exact divisor of HW
        if hw % t == 0:
            return t, hw
    return cap, _round_up(hw, cap)                # otherwise pad HW up


# ---------------- fused backbone -> OSBlock -> dual pool -> heads ----------------

def _accumulate_pools(x_ref, w1_ref, w2_ref, sum_sc, max_sc):
    """Backbone + OSBlock 1x1 convs on one spatial tile; accumulate avg/max."""
    @pl.when(pl.program_id(1) == 0)
    def _():
        sum_sc[...] = jnp.zeros_like(sum_sc)
        max_sc[...] = jnp.full_like(max_sc, -jnp.inf)

    x = x_ref[0]                                                   # [t_hw, Cpad] bf16
    h1 = jnp.dot(x, w1_ref[...], preferred_element_type=jnp.float32)
    h1 = jnp.maximum(h1, 0.0).astype(jnp.bfloat16)                 # backbone ReLU
    glo = jnp.dot(h1, w2_ref[...], preferred_element_type=jnp.float32)
    glo = jnp.maximum(glo, 0.0)                                    # OSBlock ReLU (f32)

    # channel_pooling (avg over HW) and global_pooling (max over HW) from the
    # SAME activation (BatchDropTop is identity at inference).  Per-tile we
    # reduce only over the vreg-row axis (vreg+vreg VPU ops); the 8->1
    # cross-sublane reduce happens once in the epilogue.
    g3 = glo.reshape(glo.shape[0] // SUBLANE, SUBLANE, FEATURE_CH)
    sum_sc[...] += jnp.sum(g3, axis=0)
    max_sc[...] = jnp.maximum(max_sc[...], jnp.max(g3, axis=0))


def _pooled_bf16(sum_sc, max_sc, inv_hw):
    avg = jnp.sum(sum_sc[...], axis=0, keepdims=True) * inv_hw     # [1, 512] f32
    mx = jnp.max(max_sc[...], axis=0, keepdims=True)               # [1, 512] f32
    return avg.astype(jnp.bfloat16), mx.astype(jnp.bfloat16)


def _lmbn_eval_kernel(x_ref, w1_ref, w2_ref, wh_ref, bh_ref, out_ref,
                      sum_sc, max_sc, *, inv_hw):
    _accumulate_pools(x_ref, w1_ref, w2_ref, sum_sc, max_sc)

    @pl.when(pl.program_id(1) == pl.num_programs(1) - 1)
    def _():
        avg_b, mx_b = _pooled_bf16(sum_sc, max_sc, inv_hw)
        # BNNeck reduction 1x1 conv with eval-mode BatchNorm folded into (w, b).
        after0 = jnp.dot(avg_b, wh_ref[0],
                         preferred_element_type=jnp.float32) + bh_ref[0]
        after4 = jnp.dot(mx_b, wh_ref[1],
                         preferred_element_type=jnp.float32) + bh_ref[1]
        out_ref[0] = jnp.concatenate([after0, after4], axis=0)     # [2, Fpad]


def _lmbn_train_kernel(x_ref, w1_ref, w2_ref, wred_ref, scale_ref, shift_ref,
                       wcls_ref, before_ref, score_ref, sum_sc, max_sc, *, inv_hw):
    _accumulate_pools(x_ref, w1_ref, w2_ref, sum_sc, max_sc)

    @pl.when(pl.program_id(1) == pl.num_programs(1) - 1)
    def _():
        avg_b, mx_b = _pooled_bf16(sum_sc, max_sc, inv_hw)
        before0 = jnp.dot(avg_b, wred_ref[0], preferred_element_type=jnp.float32)
        before4 = jnp.dot(mx_b, wred_ref[1], preferred_element_type=jnp.float32)
        # BatchNorm1d with running statistics (eval-mode math), kept in f32.
        after0 = before0 * scale_ref[0] + shift_ref[0]
        after4 = before4 * scale_ref[1] + shift_ref[1]
        score0 = jnp.dot(after0.astype(jnp.bfloat16), wcls_ref[0],
                         preferred_element_type=jnp.float32)
        score4 = jnp.dot(after4.astype(jnp.bfloat16), wcls_ref[1],
                         preferred_element_type=jnp.float32)
        before_ref[0] = jnp.concatenate([before0, before4], axis=0)
        score_ref[0] = jnp.concatenate([score0, score4], axis=0)


def fused_eval_forward(x_pad, w1, w2, w_fold, bias, *, t_hw, inv_hw):
    """x_pad [N, HWpad, Cpad] bf16 -> after-neck features [N, 2, Fpad] f32."""
    N, HWp, Cpad = x_pad.shape
    Fpad = w_fold.shape[2]
    kernel = functools.partial(_lmbn_eval_kernel, inv_hw=inv_hw)
    return pl.pallas_call(
        kernel,
        out_shape=jax.ShapeDtypeStruct((N, 2, Fpad), jnp.float32),
        grid=(N, HWp // t_hw),
        in_specs=[
            pl.BlockSpec((1, t_hw, Cpad), lambda n, h: (n, h, 0)),
            pl.BlockSpec((Cpad, FEATURE_CH), lambda n, h: (0, 0)),
            pl.BlockSpec((FEATURE_CH, FEATURE_CH), lambda n, h: (0, 0)),
            pl.BlockSpec((2, FEATURE_CH, Fpad), lambda n, h: (0, 0, 0)),
            pl.BlockSpec((2, 1, Fpad), lambda n, h: (0, 0, 0)),
        ],
        out_specs=pl.BlockSpec((1, 2, Fpad), lambda n, h: (n, 0, 0)),
        scratch_shapes=[pltpu.VMEM((SUBLANE, FEATURE_CH), jnp.float32),
                        pltpu.VMEM((SUBLANE, FEATURE_CH), jnp.float32)],
        compiler_params=pltpu.CompilerParams(
            dimension_semantics=("parallel", "arbitrary")),
    )(x_pad, w1, w2, w_fold, bias)


def fused_train_forward(x_pad, w1, w2, w_red, scale, shift, w_cls, *, t_hw, inv_hw):
    N, HWp, Cpad = x_pad.shape
    Fpad = w_red.shape[2]
    NCpad = w_cls.shape[2]
    kernel = functools.partial(_lmbn_train_kernel, inv_hw=inv_hw)
    return pl.pallas_call(
        kernel,
        out_shape=(jax.ShapeDtypeStruct((N, 2, Fpad), jnp.float32),
                   jax.ShapeDtypeStruct((N, 2, NCpad), jnp.float32)),
        grid=(N, HWp // t_hw),
        in_specs=[
            pl.BlockSpec((1, t_hw, Cpad), lambda n, h: (n, h, 0)),
            pl.BlockSpec((Cpad, FEATURE_CH), lambda n, h: (0, 0)),
            pl.BlockSpec((FEATURE_CH, FEATURE_CH), lambda n, h: (0, 0)),
            pl.BlockSpec((2, FEATURE_CH, Fpad), lambda n, h: (0, 0, 0)),
            pl.BlockSpec((2, 1, Fpad), lambda n, h: (0, 0, 0)),
            pl.BlockSpec((2, 1, Fpad), lambda n, h: (0, 0, 0)),
            pl.BlockSpec((2, Fpad, NCpad), lambda n, h: (0, 0, 0)),
        ],
        out_specs=(pl.BlockSpec((1, 2, Fpad), lambda n, h: (n, 0, 0)),
                   pl.BlockSpec((1, 2, NCpad), lambda n, h: (n, 0, 0))),
        scratch_shapes=[pltpu.VMEM((SUBLANE, FEATURE_CH), jnp.float32),
                        pltpu.VMEM((SUBLANE, FEATURE_CH), jnp.float32)],
        compiler_params=pltpu.CompilerParams(
            dimension_semantics=("parallel", "arbitrary")),
    )(x_pad, w1, w2, w_red, scale, shift, w_cls)


# ---------------------------- parameters & forward ----------------------------

def init_params(key, c_in, feats, num_classes):
    cpad = _round_up(c_in, SUBLANE)
    fpad = _round_up(feats, LANE)
    ncpad = _round_up(num_classes, LANE)
    ks = jax.random.split(key, 6)

    # TODO(synk): stand-in weights for the OSNet backbone (conv1/maxpool/conv2/
    # conv3[0]) + global_branch and the OSBlock of BatchFeatureErase_Top; the
    # full omni-scale blocks are represented by two fused 1x1-conv+ReLU stages.
    w_backbone = jax.random.normal(ks[0], (c_in, FEATURE_CH),
                                   jnp.float32) * (2.0 / c_in) ** 0.5
    w_osblock = jax.random.normal(ks[1], (FEATURE_CH, FEATURE_CH),
                                  jnp.float32) * (2.0 / FEATURE_CH) ** 0.5

    def pad2(a, rows, cols):
        return jnp.pad(a, ((0, rows - a.shape[0]), (0, cols - a.shape[1])))

    w_fold_l, bias_l, w_red_l, scale_l, shift_l, w_cls_l = [], [], [], [], [], []
    for k_red, k_cls in ((ks[2], ks[3]), (ks[4], ks[5])):   # red0 (avg), red4 (max)
        w_red = jax.random.normal(k_red, (FEATURE_CH, feats),
                                  jnp.float32) * (2.0 / FEATURE_CH) ** 0.5
        gamma = jnp.ones((feats,), jnp.float32)
        beta = jnp.zeros((feats,), jnp.float32)
        mean = jnp.zeros((feats,), jnp.float32)
        var = jnp.ones((feats,), jnp.float32)
        w_cls = jax.random.normal(k_cls, (feats, num_classes), jnp.float32) * 1e-3

        # fold eval-mode BN (eps=1e-5, running stats) into the reduction weight
        scale = gamma * lax.rsqrt(var + 1e-5)
        shift = beta - mean * scale
        w_fold_l.append(pad2(w_red * scale[None, :], FEATURE_CH, fpad))
        bias_l.append(jnp.pad(shift, (0, fpad - feats))[None, :])
        w_red_l.append(pad2(w_red, FEATURE_CH, fpad))
        scale_l.append(jnp.pad(scale, (0, fpad - feats))[None, :])
        shift_l.append(jnp.pad(shift, (0, fpad - feats))[None, :])
        w_cls_l.append(pad2(w_cls, fpad, ncpad))

    return {
        "cpad": cpad, "feats": feats, "num_classes": num_classes,
        "w_backbone": jnp.pad(w_backbone,
                              ((0, cpad - c_in), (0, 0))).astype(jnp.bfloat16),
        "w_osblock": w_osblock.astype(jnp.bfloat16),
        "head_w_fold": jnp.stack(w_fold_l).astype(jnp.bfloat16),   # [2,512,Fpad]
        "head_bias": jnp.stack(bias_l),                            # [2,1,Fpad] f32
        "head_w_red": jnp.stack(w_red_l).astype(jnp.bfloat16),
        "head_scale": jnp.stack(scale_l),
        "head_shift": jnp.stack(shift_l),
        "head_w_cls": jnp.stack(w_cls_l).astype(jnp.bfloat16),     # [2,Fpad,NCpad]
    }


def lmbn_n_only_global_forward(params, x, training=False):
    """x: [N, C, H, W] (NCHW, PyTorch convention)."""
    N, C, H, W = x.shape
    HW = H * W
    cpad = params["cpad"]
    feats = params["feats"]

    t_hw, hw_pad = _choose_hw_tiling(HW)

    # NCHW -> [N, HWpad, Cpad]: channels lane-dense, spatial zero-padded to a
    # tile multiple, cast to bf16.  Padding is neutral: zero rows stay 0 after
    # ReLU, avg uses the true 1/HW and max is over >=0 values.
    # (At C=3 this layout copy is negligible; folding it into the kernel only
    #  pays off for wide-channel stems.)
    x_nhwc = jnp.transpose(x, (0, 2, 3, 1)).reshape(N, HW, C)
    x_pad = jnp.pad(x_nhwc,
                    ((0, 0), (0, hw_pad - HW), (0, cpad - C))).astype(jnp.bfloat16)

    if not training:
        after = fused_eval_forward(
            x_pad, params["w_backbone"], params["w_osblock"],
            params["head_w_fold"], params["head_bias"],
            t_hw=t_hw, inv_hw=1.0 / HW)                       # [N, 2, Fpad]
        # torch.stack([f_glo[0], f_glo_drop[0]], dim=2) -> [N, feats, 2]
        return jnp.swapaxes(after[:, :, :feats], 1, 2)

    # TODO(synk): training path keeps eval-mode (running-stat) BatchNorm and
    # identity BatchDropTop; batch-statistic BN / feature erasing not modeled.
    before, score = fused_train_forward(
        x_pad, params["w_backbone"], params["w_osblock"],
        params["head_w_red"], params["head_scale"], params["head_shift"],
        params["head_w_cls"], t_hw=t_hw, inv_hw=1.0 / HW)
    nc = params["num_classes"]
    return ([score[:, 0, :nc], score[:, 1, :nc]],
            [before[:, 0, :feats], before[:, 1, :feats]])


# ----------------------------------- driver ----------------------------------

if __name__ == "__main__":
    key = jax.random.PRNGKey(0)
    k_x, k_p = jax.random.split(key)

    N, C, H, W = 2, 3, 16, 16          # small image-like input (NCHW)
    feats, num_classes = 64, 16

    x = jax.random.normal(k_x, (N, C, H, W), jnp.float32)
    params = init_params(k_p, C, feats, num_classes)

    # eval path (module default when not training)
    out = lmbn_n_only_global_forward(params, x, training=False)
    out = jax.block_until_ready(out)
    assert out.shape == (N, feats, 2), out.shape
    assert bool(jnp.all(jnp.isfinite(out)))

    # training path
    scores, feas = lmbn_n_only_global_forward(params, x, training=True)
    scores = jax.block_until_ready(scores)
    feas = jax.block_until_ready(feas)
    assert scores[0].shape == (N, num_classes) and scores[1].shape == (N, num_classes)
    assert feas[0].shape == (N, feats) and feas[1].shape == (N, feats)
    for a in (*scores, *feas):
        assert bool(jnp.all(jnp.isfinite(a)))

    print("KERNEL_OK")
</pallas_src>

<mosaic_0001>
module attributes {stable_mosaic.version = 11 : i64} {
  func.func @_lmbn_eval_kernel(%arg0: i32, %arg1: i32, %arg2: memref<1x256x8xbf16, #tpu.memory_space<vmem>>, %arg3: memref<8x512xbf16, #tpu.memory_space<vmem>>, %arg4: memref<512x512xbf16, #tpu.memory_space<vmem>>, %arg5: memref<2x512x128xbf16, #tpu.memory_space<vmem>>, %arg6: memref<2x1x128xf32, #tpu.memory_space<vmem>>, %arg7: memref<1x2x128xf32, #tpu.memory_space<vmem>>, %arg8: memref<8x512xf32, #tpu.memory_space<vmem>>, %arg9: memref<8x512xf32, #tpu.memory_space<vmem>>) attributes {dimension_semantics = [#tpu.dimension_semantics<parallel>, #tpu.dimension_semantics<arbitrary>], iteration_bounds = array<i64: 2, 1>, scalar_prefetch = 0 : i64, scratch_operands = 2 : i64, tpu.core_type = #tpu.core_type<tc>, window_params = [{transform_indices = @transform_0, window_bounds = array<i64: 1, 256, 8>}, {pipeline_mode = #tpu.pipeline_mode<synchronous>, transform_indices = @transform_1, window_bounds = array<i64: 8, 512>}, {pipeline_mode = #tpu.pipeline_mode<synchronous>, transform_indices = @transform_2, window_bounds = array<i64: 512, 512>}, {pipeline_mode = #tpu.pipeline_mode<synchronous>, transform_indices = @transform_3, window_bounds = array<i64: 2, 512, 128>}, {pipeline_mode = #tpu.pipeline_mode<synchronous>, transform_indices = @transform_4, window_bounds = array<i64: 2, 1, 128>}, {transform_indices = @transform_5, window_bounds = array<i64: 1, 2, 128>}]} {
    %c0_i32 = arith.constant 0 : i32
    %0 = arith.cmpi eq, %arg1, %c0_i32 : i32
    %1 = arith.extui %0 : i1 to i32
    %c0_i32_0 = arith.constant 0 : i32
    %2 = arith.cmpi ne, %1, %c0_i32_0 : i32
    scf.if %2 {
      %cst_22 = arith.constant 0.000000e+00 : f32
      %26 = vector.broadcast %cst_22 : f32 to vector<8x512xf32>
      %c0_23 = arith.constant 0 : index
      %c0_24 = arith.constant 0 : index
      %27 = vector.load %arg8[%c0_23, %c0_24] : memref<8x512xf32, #tpu.memory_space<vmem>>, vector<8x512xf32>
      tpu.vector_store %arg8[%c0_23, %c0_24], %26 {strides = array<i32>} : memref<8x512xf32, #tpu.memory_space<vmem>>, vector<8x512xf32>,
      %cst_25 = arith.constant 0xFF800000 : f32
      %28 = vector.broadcast %cst_25 : f32 to vector<8x512xf32>
      %c0_26 = arith.constant 0 : index
      %c0_27 = arith.constant 0 : index
      %29 = vector.load %arg9[%c0_26, %c0_27] : memref<8x512xf32, #tpu.memory_space<vmem>>, vector<8x512xf32>
      tpu.vector_store %arg9[%c0_26, %c0_27], %28 {strides = array<i32>} : memref<8x512xf32, #tpu.memory_space<vmem>>, vector<8x512xf32>,
    } else {
    }
    %c0 = arith.constant 0 : index
    %c0_1 = arith.constant 0 : index
    %c0_2 = arith.constant 0 : index
    %3 = vector.load %arg2[%c0, %c0_1, %c0_2] : memref<1x256x8xbf16, #tpu.memory_space<vmem>>, vector<1x256x8xbf16>
    %4 = vector.shape_cast %3 : vector<1x256x8xbf16> to vector<256x8xbf16>
    %c0_3 = arith.constant 0 : index
    %c0_4 = arith.constant 0 : index
    %5 = vector.load %arg3[%c0_3, %c0_4] : memref<8x512xbf16, #tpu.memory_space<vmem>>, vector<8x512xbf16>
    %cst = arith.constant dense<0.000000e+00> : vector<256x512xf32>
    %6 = tpu.matmul %4, %5, %cst {dimension_numbers = #tpu.dot_dimension_numbers<[1], [0], [0], [1], [0, 0, 1, 1], [], []>} : vector<256x8xbf16>, vector<8x512xbf16>, vector<256x512xf32> -> vector<256x512xf32>
    %cst_5 = arith.constant 0.000000e+00 : f32
    %7 = vector.broadcast %cst_5 : f32 to vector<256x512xf32>
    %8 = arith.maximumf %6, %7 : vector<256x512xf32>
    %9 = arith.truncf %8 : vector<256x512xf32> to vector<256x512xbf16>
    %c0_6 = arith.constant 0 : index
    %c0_7 = arith.constant 0 : index
    %10 = vector.load %arg4[%c0_6, %c0_7] : memref<512x512xbf16, #tpu.memory_space<vmem>>, vector<512x512xbf16>
    %cst_8 = arith.constant dense<0.000000e+00> : vector<256x512xf32>
    %11 = tpu.matmul %9, %10, %cst_8 {dimension_numbers = #tpu.dot_dimension_numbers<[1], [0], [0], [1], [0, 0, 1, 1], [], []>} : vector<256x512xbf16>, vector<512x512xbf16>, vector<256x512xf32> -> vector<256x512xf32>
    %cst_9 = arith.constant 0.000000e+00 : f32
    %12 = vector.broadcast %cst_9 : f32 to vector<256x512xf32>
    %13 = arith.maximumf %11, %12 : vector<256x512xf32>
    %14 = vector.shape_cast %13 : vector<256x512xf32> to vector<32x8x512xf32>
    %c0_10 = arith.constant 0 : index
    %c0_11 = arith.constant 0 : index
    %15 = vector.load %arg8[%c0_10, %c0_11] : memref<8x512xf32, #tpu.memory_space<vmem>>, vector<8x512xf32>
    %cst_12 = arith.constant dense<0.000000e+00> : vector<8x512xf32>
    %16 = vector.multi_reduction <add>, %14, %cst_12 [0] : vector<32x8x512xf32> to vector<8x512xf32>
    %17 = arith.addf %15, %16 : vector<8x512xf32>
    %c0_13 = arith.constant 0 : index
    %c0_14 = arith.constant 0 : index
    %18 = vector.load %arg8[%c0_13, %c0_14] : memref<8x512xf32, #tpu.memory_space<vmem>>, vector<8x512xf32>
    tpu.vector_store %arg8[%c0_13, %c0_14], %17 {strides = array<i32>} : memref<8x512xf32, #tpu.memory_space<vmem>>, vector<8x512xf32>,
    %c0_15 = arith.constant 0 : index
    %c0_16 = arith.constant 0 : index
    %19 = vector.load %arg9[%c0_15, %c0_16] : memref<8x512xf32, #tpu.memory_space<vmem>>, vector<8x512xf32>
    %cst_17 = arith.constant dense<0xFF800000> : vector<8x512xf32>
    %20 = vector.multi_reduction <maximumf>, %14, %cst_17 [0] : vector<32x8x512xf32> to vector<8x512xf32>
    %21 = arith.maximumf %19, %20 : vector<8x512xf32>
    %c0_18 = arith.constant 0 : index
    %c0_19 = arith.constant 0 : index
    %22 = vector.load %arg9[%c0_18, %c0_19] : memref<8x512xf32, #tpu.memory_space<vmem>>, vector<8x512xf32>
    tpu.vector_store %arg9[%c0_18, %c0_19], %21 {strides = array<i32>} : memref<8x512xf32, #tpu.memory_space<vmem>>, vector<8x512xf32>,
    %c0_i32_20 = arith.constant 0 : i32
    %23 = arith.cmpi eq, %arg1, %c0_i32_20 : i32
    %24 = arith.extui %23 : i1 to i32
    %c0_i32_21 = arith.constant 0 : i32
    %25 = arith.cmpi ne, %24, %c0_i32_21 : i32
    scf.if %25 {
      %c0_22 = arith.constant 0 : index
      %c0_23 = arith.constant 0 : index
      %26 = vector.load %arg8[%c0_22, %c0_23] : memref<8x512xf32, #tpu.memory_space<vmem>>, vector<8x512xf32>
      %cst_24 = arith.constant dense<0.000000e+00> : vector<512xf32>
      %27 = vector.multi_reduction <add>, %26, %cst_24 [0] : vector<8x512xf32> to vector<512xf32>
      %28 = vector.shape_cast %27 : vector<512xf32> to vector<1x512xf32>
      %cst_25 = arith.constant 3.906250e-03 : f32
      %29 = vector.broadcast %cst_25 : f32 to vector<1x512xf32>
      %30 = arith.mulf %28, %29 : vector<1x512xf32>
      %c0_26 = arith.constant 0 : index
      %c0_27 = arith.constant 0 : index
      %31 = vector.load %arg9[%c0_26, %c0_27] : memref<8x512xf32, #tpu.memory_space<vmem>>, vector<8x512xf32>
      %cst_28 = arith.constant dense<0xFF800000> : vector<512xf32>
      %32 = vector.multi_reduction <maximumf>, %31, %cst_28 [0] : vector<8x512xf32> to vector<512xf32>
      %33 = vector.shape_cast %32 : vector<512xf32> to vector<1x512xf32>
      %34 = arith.truncf %30 : vector<1x512xf32> to vector<1x512xbf16>
      %35 = arith.truncf %33 : vector<1x512xf32> to vector<1x512xbf16>
      %c0_29 = arith.constant 0 : index
      %c0_30 = arith.constant 0 : index
      %c0_31 = arith.constant 0 : index
      %36 = vector.load %arg5[%c0_29, %c0_30, %c0_31] : memref<2x512x128xbf16, #tpu.memory_space<vmem>>, vector<1x512x128xbf16>
      %37 = vector.shape_cast %36 : vector<1x512x128xbf16> to vector<512x128xbf16>
      %cst_32 = arith.constant dense<0.000000e+00> : vector<1x128xf32>
      %38 = tpu.matmul %34, %37, %cst_32 {dimension_numbers = #tpu.dot_dimension_numbers<[1], [0], [0], [1], [0, 0, 1, 1], [], []>} : vector<1x512xbf16>, vector<512x128xbf16>, vector<1x128xf32> -> vector<1x128xf32>
      %c0_33 = arith.constant 0 : index
      %c0_34 = arith.constant 0 : index
      %c0_35 = arith.constant 0 : index
      %39 = vector.load %arg6[%c0_33, %c0_34, %c0_35] : memref<2x1x128xf32, #tpu.memory_space<vmem>>, vector<1x1x128xf32>
      %40 = vector.shape_cast %39 : vector<1x1x128xf32> to vector<1x128xf32>
      %41 = arith.addf %38, %40 : vector<1x128xf32>
      %c1 = arith.constant 1 : index
      %c0_36 = arith.constant 0 : index
      %c0_37 = arith.constant 0 : index
      %42 = vector.load %arg5[%c1, %c0_36, %c0_37] : memref<2x512x128xbf16, #tpu.memory_space<vmem>>, vector<1x512x128xbf16>
      %43 = vector.shape_cast %42 : vector<1x512x128xbf16> to vector<512x128xbf16>
      %cst_38 = arith.constant dense<0.000000e+00> : vector<1x128xf32>
      %44 = tpu.matmul %35, %43, %cst_38 {dimension_numbers = #tpu.dot_dimension_numbers<[1], [0], [0], [1], [0, 0, 1, 1], [], []>} : vector<1x512xbf16>, vector<512x128xbf16>, vector<1x128xf32> -> vector<1x128xf32>
      %c1_39 = arith.constant 1 : index
      %c0_40 = arith.constant 0 : index
      %c0_41 = arith.constant 0 : index
      %45 = vector.load %arg6[%c1_39, %c0_40, %c0_41] : memref<2x1x128xf32, #tpu.memory_space<vmem>>, vector<1x1x128xf32>
      %46 = vector.shape_cast %45 : vector<1x1x128xf32> to vector<1x128xf32>
      %47 = arith.addf %44, %46 : vector<1x128xf32>
      %48 = tpu.concatenate %41, %47 in 0 : vector<1x128xf32>, vector<1x128xf32> -> vector<2x128xf32>
      %c0_42 = arith.constant 0 : index
      %c0_43 = arith.constant 0 : index
      %c0_44 = arith.constant 0 : index
      %49 = vector.load %arg7[%c0_42, %c0_43, %c0_44] : memref<1x2x128xf32, #tpu.memory_space<vmem>>, vector<1x2x128xf32>
      %50 = vector.shape_cast %49 : vector<1x2x128xf32> to vector<2x128xf32>
      %51 = vector.shape_cast %48 : vector<2x128xf32> to vector<1x2x128xf32>
      tpu.vector_store %arg7[%c0_42, %c0_43, %c0_44], %51 {strides = array<i32>} : memref<1x2x128xf32, #tpu.memory_space<vmem>>, vector<1x2x128xf32>,
    } else {
    }
    return
  }
  func.func @transform_0(%arg0: i32, %arg1: i32) -> (i32, i32, i32) {
    %c0_i32 = arith.constant 0 : i32
    %c0_i32_0 = arith.constant 0 : i32
    return %arg0, %arg1, %c0_i32 : i32, i32, i32
  }
  func.func @transform_1(%arg0: i32, %arg1: i32) -> (i32, i32) {
    %c0_i32 = arith.constant 0 : i32
    %c0_i32_0 = arith.constant 0 : i32
    %c0_i32_1 = arith.constant 0 : i32
    return %c0_i32, %c0_i32_0 : i32, i32
  }
  func.func @transform_2(%arg0: i32, %arg1: i32) -> (i32, i32) {
    %c0_i32 = arith.constant 0 : i32
    %c0_i32_0 = arith.constant 0 : i32
    %c0_i32_1 = arith.constant 0 : i32
    return %c0_i32, %c0_i32_0 : i32, i32
  }
  func.func @transform_3(%arg0: i32, %arg1: i32) -> (i32, i32, i32) {
    %c0_i32 = arith.constant 0 : i32
    %c0_i32_0 = arith.constant 0 : i32
    %c0_i32_1 = arith.constant 0 : i32
    %c0_i32_2 = arith.constant 0 : i32
    return %c0_i32, %c0_i32_0, %c0_i32_1 : i32, i32, i32
  }
  func.func @transform_4(%arg0: i32, %arg1: i32) -> (i32, i32, i32) {
    %c0_i32 = arith.constant 0 : i32
    %c0_i32_0 = arith.constant 0 : i32
    %c0_i32_1 = arith.constant 0 : i32
    %c0_i32_2 = arith.constant 0 : i32
    return %c0_i32, %c0_i32_0, %c0_i32_1 : i32, i32, i32
  }
  func.func @transform_5(%arg0: i32, %arg1: i32) -> (i32, i32, i32) {
    %c0_i32 = arith.constant 0 : i32
    %c0_i32_0 = arith.constant 0 : i32
    %c0_i32_1 = arith.constant 0 : i32
    return %arg0, %c0_i32, %c0_i32_0 : i32, i32, i32
  }
}

</mosaic_0001>

<llo_original>
// kernel: tpu_custom_call.1
$region0: #{tpu_custom_call.1}
  #allocation0 [shape = 'u32[]', space=smem, size = 0x4, offset = 0x4, fixed_abs, tag = 'smem constant byte address 0x4 - core index']
  #allocation1 [shape = 'u32[72,128]{1,0:T(1,128)}', space=vmem, size = 0x9000, scoped, tag = 'internal scratch']
  #allocation2 [shape = 'f32[8,512]{1,0:T(8,128)}', space=vmem, size = 0x4000, scoped, tag = 'scratch operand']
  #allocation3 [shape = 'f32[8,512]{1,0:T(8,128)}', space=vmem, size = 0x4000, scoped, tag = 'scratch operand']
  %s0 = inlined_call_operand.vmem [shape: bf16[2,256,8], index: 0, kind: input, shape index: {}]
  %s1 = inlined_call_operand.vmem [shape: bf16[8,512], index: 1, kind: input, shape index: {}]
  %s2 = inlined_call_operand.hbm [shape: bf16[512,512], index: 2, kind: input, shape index: {}]
  %s3 = inlined_call_operand.hbm [shape: bf16[2,512,128], index: 3, kind: input, shape index: {}]
  %s4 = inlined_call_operand.vmem [shape: f32[2,1,128], index: 4, kind: input, shape index: {}]
  %s5 = inlined_call_operand.hbm [shape: f32[2,2,128], index: 5, kind: output, shape index: {}]
  %s6 = sld [smem:[#allocation0]]
  $region69: #{tpu_custom_call.1} parent=0
    _
  %s8 = ssub.s32 1, %s6
  %s9 = scalar_select 0, %s8, %s6
  $region1: #{tpu_custom_call.1} parent=0
    #allocation4 [shape = 'u8[524288]{0}', space=vmem, size = 0x80000, scoped, tag = 'input window, operand 2, single buffered']
    #allocation5 [shape = 's32[2]{0}', space=sflag, size = 0x8, scoped, tag = 'scoped memory for tpu_custom_call.1']
    #allocation6 [shape = 's32[2]{0}', space=sflag, size = 0x8, scoped, tag = 'scoped memory for tpu_custom_call.1']
    #allocation7 [shape = 'u8[262144]{0}', space=vmem, size = 0x40000, scoped, tag = 'input window, operand 3, single buffered']
    #allocation8 [shape = 's32[1]{0}', space=sflag, size = 0x4, scoped, tag = 'scoped memory for tpu_custom_call.1']
    #allocation9 [shape = 'u8[2048]{0}', space=vmem, size = 0x800, scoped, tag = 'output window, operand 0']
    %10 = vsyncpa [#allocation5], 0
    %11 = vsyncpa [#allocation8], 0
    %12 = vsyncpa [#allocation6], 0
    %s13 = scalar_lea.sflag [#allocation6], 1
    %14 = vsyncpa %s13, 0
    loop: start=0, step=1, limit=4
    $region2: #{tpu_custom_call.1} parent=1 // loop_pre_header
      _
    $region3: #{tpu_custom_call.1} parent=1 // loop_header
      %s16 = sphi 0, %s20
      %p17 = scmp.ge.s32.totalorder %s16, 4
      %s23 = sphi 0, %s35
      %s24 = sphi 0, %s31
      %s25 = sphi 0, %s23
      %s26 = sphi 0, %s24
      %s27 = sphi 0, %s25
      %s28 = sphi 0, %s26
      %s40 = sphi 0, %s42
      %s43 = sphi 0, %s40
      %s44 = sphi 0, %s43
      %s60 = sphi 0, %s44
      %s64 = sphi 0, %s64
      %s66 = sphi 0, %s64
      %s67 = sphi 0, %s66
      %s81 = sphi 0, %s67
      %s85 = sphi 0, %s85
      %s87 = sphi 0, %s85
      %s88 = sphi 0, %s87
      %s102 = sphi 0, %s88
      %s106 = sphi 0, %s106
      %s108 = sphi 0, %s106
      %s109 = sphi 0, %s108
      %s123 = sphi 0, %s109
      %s127 = sphi 0, %s127
      %s129 = sphi 0, %s127
      %s130 = sphi 0, %s129
      %s144 = sphi 0, %s130
      %s150 = sphi 0, %s152
      %s153 = sphi 0, %s150
      %s154 = sphi 0, %s153
      %s170 = sphi 0, %s154
    $region4: #{tpu_custom_call.1} parent=1 // loop_header_branch
      %19 = sbr.rel (%p17) target = $region8
    $region5: #{tpu_custom_call.1} parent=1 // loop_body
      %s21 = ssub.s32 %s16, 1
      %s22 = ssub.s32 %s16, 2
      %s29 = sadd.s32 1, %s24
      %p30 = scmp.ge.s32.totalorder %s29, 1
      %s31 = scalar_select %p30, 0, %s29
      %s32 = sadd.s32 1, %s23
      %s33 = scalar_select %p30, %s32, %s23
      %p34 = scmp.ge.s32.totalorder %s33, 2
      %s35 = scalar_select %p34, 0, %s33
      %s36 = ssub.s32 %s23, %s35
      %s37 = ssub.s32 %s24, %s31
      %s38 = sor.u32 %s36, %s37
      %p39 = scmp.eq.s32.totalorder %s38, 0
      %s41 = sadd.s32 %s40, 1
      %s42 = scalar_select %p39, %s40, %s41
      %p45 = pneg %p39
      %p46 = scmp.eq.s32.totalorder %s16, 1
      %p47 = por %p45, %p46
      %p48 = scmp.ne.s32.totalorder %s40, %s43
      %p49 = scmp.eq.s32.totalorder %s16, 0
      %p50 = por %p48, %p49
      %p51 = scmp.ne.s32.totalorder %s40, %s43
      %p52 = scmp.eq.s32.totalorder %s21, 1
      %p53 = por %p51, %p52
      %p54 = scmp.ne.s32.totalorder %s43, %s44
      %p55 = scmp.eq.s32.totalorder %s21, 0
      %p56 = por %p54, %p55
      %p57 = scmp.ne.s32.totalorder %s43, %s44
      %p58 = scmp.eq.s32.totalorder %s22, 1
      %p59 = por %p57, %p58
      %p61 = scmp.ne.s32.totalorder %s44, %s60
      %p62 = scmp.eq.s32.totalorder %s22, 0
      %p63 = por %p61, %p62
      %s65 = sadd.s32 %s64, 1
      %p68 = scmp.eq.s32.totalorder %s16, 1
      %p69 = scmp.ne.s32.totalorder %s64, %s66
      %p70 = scmp.eq.s32.totalorder %s16, 0
      %p71 = por %p69, %p70
      %p72 = scmp.ne.s32.totalorder %s64, %s66
      %p73 = scmp.eq.s32.totalorder %s21, 1
      %p74 = por %p72, %p73
      %p75 = scmp.ne.s32.totalorder %s66, %s67
      %p76 = scmp.eq.s32.totalorder %s21, 0
      %p77 = por %p75, %p76
      %p78 = scmp.ne.s32.totalorder %s66, %s67
      %p79 = scmp.eq.s32.totalorder %s22, 1
      %p80 = por %p78, %p79
      %p82 = scmp.ne.s32.totalorder %s67, %s81
      %p83 = scmp.eq.s32.totalorder %s22, 0
      %p84 = por %p82, %p83
      %s86 = sadd.s32 %s85, 1
      %p89 = scmp.eq.s32.totalorder %s16, 1
      %p90 = scmp.ne.s32.totalorder %s85, %s87
      %p91 = scmp.eq.s32.totalorder %s16, 0
      %p92 = por %p90, %p91
      %p93 = scmp.ne.s32.totalorder %s85, %s87
      %p94 = scmp.eq.s32.totalorder %s21, 1
      %p95 = por %p93, %p94
      %p96 = scmp.ne.s32.totalorder %s87, %s88
      %p97 = scmp.eq.s32.totalorder %s21, 0
      %p98 = por %p96, %p97
      %p99 = scmp.ne.s32.totalorder %s87, %s88
      %p100 = scmp.eq.s32.totalorder %s22, 1
      %p101 = por %p99, %p100
      %p103 = scmp.ne.s32.totalorder %s88, %s102
      %p104 = scmp.eq.s32.totalorder %s22, 0
      %p105 = por %p103, %p104
      %s107 = sadd.s32 %s106, 1
      %p110 = scmp.eq.s32.totalorder %s16, 1
      %p111 = scmp.ne.s32.totalorder %s106, %s108
      %p112 = scmp.eq.s32.totalorder %s16, 0
      %p113 = por %p111, %p112
      %p114 = scmp.ne.s32.totalorder %s106, %s108
      %p115 = scmp.eq.s32.totalorder %s21, 1
      %p116 = por %p114, %p115
      %p117 = scmp.ne.s32.totalorder %s108, %s109
      %p118 = scmp.eq.s32.totalorder %s21, 0
      %p119 = por %p117, %p118
      %p120 = scmp.ne.s32.totalorder %s108, %s109
      %p121 = scmp.eq.s32.totalorder %s22, 1
      %p122 = por %p120, %p121
      %p124 = scmp.ne.s32.totalorder %s109, %s123
      %p125 = scmp.eq.s32.totalorder %s22, 0
      %p126 = por %p124, %p125
      %s128 = sadd.s32 %s127, 1
      %p131 = scmp.eq.s32.totalorder %s16, 1
      %p132 = scmp.ne.s32.totalorder %s127, %s129
      %p133 = scmp.eq.s32.totalorder %s16, 0
      %p134 = por %p132, %p133
      %p135 = scmp.ne.s32.totalorder %s127, %s129
      %p136 = scmp.eq.s32.totalorder %s21, 1
      %p137 = por %p135, %p136
      %p138 = scmp.ne.s32.totalorder %s129, %s130
      %p139 = scmp.eq.s32.totalorder %s21, 0
      %p140 = por %p138, %p139
      %p141 = scmp.ne.s32.totalorder %s129, %s130
      %p142 = scmp.eq.s32.totalorder %s22, 1
      %p143 = por %p141, %p142
      %p145 = scmp.ne.s32.totalorder %s130, %s144
      %p146 = scmp.eq.s32.totalorder %s22, 0
      %p147 = por %p145, %p146
      %s148 = ssub.s32 %s23, %s35
      %p149 = scmp.eq.s32.totalorder %s148, 0
      %s151 = sadd.s32 %s150, 1
      %s152 = scalar_select %p149, %s150, %s151
      %p155 = pneg %p149
      %p156 = scmp.eq.s32.totalorder %s16, 1
      %p157 = por %p155, %p156
      %p158 = scmp.ne.s32.totalorder %s150, %s153
      %p159 = scmp.eq.s32.totalorder %s16, 0
      %p160 = por %p158, %p159
      %p161 = scmp.ne.s32.totalorder %s150, %s153
      %p162 = scmp.eq.s32.totalorder %s21, 1
      %p163 = por %p161, %p162
      %p164 = scmp.ne.s32.totalorder %s153, %s154
      %p165 = scmp.eq.s32.totalorder %s21, 0
      %p166 = por %p164, %p165
      %p167 = scmp.ne.s32.totalorder %s153, %s154
      %p168 = scmp.eq.s32.totalorder %s22, 1
      %p169 = por %p167, %p168
      %p171 = scmp.ne.s32.totalorder %s154, %s170
      %p172 = scmp.eq.s32.totalorder %s22, 0
      %p173 = por %p171, %p172
      %p174 = scmp.le.s32.totalorder 1, %s16
      %p175 = scmp.lt.s32.totalorder %s16, 3
      %p176 = pnand %p174, %p175
      %p177 = pneg %p176
      // Predicated region
      $region9: #{tpu_custom_call.1} parent=5 // pred_check
        _
      $region10: #{tpu_custom_call.1} parent=5 // pred_check_branch
        %179 = sbr.rel (%p176) target = $region12
      $region11: #{tpu_custom_call.1} parent=5 // pred_region
        %s180 = ssub.s32 %s16, 1
        // Predicated region
        $region13: #{tpu_custom_call.1} parent=11 // pred_check
          %p181 = pneg %p77
        $region14: #{tpu_custom_call.1} parent=11 // pred_check_branch
          %183 = sbr.rel (%p181) target = $region16
        $region15: #{tpu_custom_call.1} parent=11 // pred_region
          _
        $region16: #{tpu_custom_call.1} parent=11 // pred_fallthru
          _
        // Predicated region
        $region17: #{tpu_custom_call.1} parent=11 // pred_check
          %p184 = pneg %p98
        $region18: #{tpu_custom_call.1} parent=11 // pred_check_branch
          %186 = sbr.rel (%p184) target = $region20
        $region19: #{tpu_custom_call.1} parent=11 // pred_region
          %188 = vsyncadd [#allocation5], 0
          %s189 = sshll.u32 %s2, 4
          %s190 = int_to_ptr.hbm [resolvable:$true] %s189
          %s191 = sshll.u32 [#allocation4], 4
          %s192 = int_to_ptr.vmem [resolvable:$true] %s191
          %197 = dma.hbm_to_vmem [thread:$0]  %s190, 16384, %s192, [#allocation5], 256, 256, 16
        $region20: #{tpu_custom_call.1} parent=11 // pred_fallthru
          _
        // Predicated region
        $region21: #{tpu_custom_call.1} parent=11 // pred_check
          %p198 = pneg %p119
        $region22: #{tpu_custom_call.1} parent=11 // pred_check_branch
          %200 = sbr.rel (%p198) target = $region24
        $region23: #{tpu_custom_call.1} parent=11 // pred_region
          %202 = vsyncadd [#allocation8], 0
          %s203 = sshll.u32 %s3, 4
          %s204 = int_to_ptr.hbm [resolvable:$true] %s203
          %s205 = sshll.u32 [#allocation7], 4
          %s206 = int_to_ptr.vmem [resolvable:$true] %s205
          %211 = dma.hbm_to_vmem [thread:$0]  %s204, 8192, %s206, [#allocation8], 64, 64, 4
        $region24: #{tpu_custom_call.1} parent=11 // pred_fallthru
          _
        // Predicated region
        $region25: #{tpu_custom_call.1} parent=11 // pred_check
          %p212 = pneg %p140
        $region26: #{tpu_custom_call.1} parent=11 // pred_check_branch
          %214 = sbr.rel (%p212) target = $region28
        $region27: #{tpu_custom_call.1} parent=11 // pred_region
          _
        $region28: #{tpu_custom_call.1} parent=11 // pred_fallthru
          _
      $region12: #{tpu_custom_call.1} parent=5 // pred_fallthru
        _
      %p215 = scmp.lt.s32.totalorder %s16, 2
      // Predicated region
      $region29: #{tpu_custom_call.1} parent=5 // pred_check
        %p216 = pneg %p215
      $region30: #{tpu_custom_call.1} parent=5 // pred_check_branch
        %218 = sbr.rel (%p216) target = $region32
      $region31: #{tpu_custom_call.1} parent=5 // pred_region
        // Predicated region
        $region33: #{tpu_custom_call.1} parent=31 // pred_check
          %p219 = pneg %p50
        $region34: #{tpu_custom_call.1} parent=31 // pred_check_branch
          %221 = sbr.rel (%p219) target = $region36
        $region35: #{tpu_custom_call.1} parent=31 // pred_region
          %s222 = smul.u32 32, %s24
          %p223 = scmp.lt.s32.totalorder %s23, 1
          %s224 = scalar_select %p223, %s23, 1
          %p225 = scmp.lt.s32.totalorder %s222, 31
          %s226 = scalar_select %p225, %s222, 31
          %s227 = smul.addr %s224, 32
          %s228 = sadd.s32 %s226, %s227
          %s229 = smul.addr %s228, 4
          %s230 = scalar_lea.vmem %s0, %s229
          %s231 = smul.u32 32, %s24
        $region36: #{tpu_custom_call.1} parent=31 // pred_fallthru
          _
      $region32: #{tpu_custom_call.1} parent=5 // pred_fallthru
        _
      %p232 = scmp.le.s32.totalorder 1, %s16
      %p233 = scmp.lt.s32.totalorder %s16, 3
      %p234 = pnand %p232, %p233
      %p235 = pneg %p234
      // Predicated region
      $region37: #{tpu_custom_call.1} parent=5 // pred_check
        _
      $region38: #{tpu_custom_call.1} parent=5 // pred_check_branch
        %237 = sbr.rel (%p234) target = $region40
      $region39: #{tpu_custom_call.1} parent=5 // pred_region
        %s238 = ssub.s32 %s16, 1
        // Predicated region
        $region41: #{tpu_custom_call.1} parent=39 // pred_check
          %p239 = pneg %p98
        $region42: #{tpu_custom_call.1} parent=39 // pred_check_branch
          %241 = sbr.rel (%p239) target = $region44
        $region43: #{tpu_custom_call.1} parent=39 // pred_region
          %243 = dma.done [#allocation5], 16384
        $region44: #{tpu_custom_call.1} parent=39 // pred_fallthru
          _
        // Predicated region
        $region45: #{tpu_custom_call.1} parent=39 // pred_check
          %p244 = pneg %p119
        $region46: #{tpu_custom_call.1} parent=39 // pred_check_branch
          %246 = sbr.rel (%p244) target = $region48
        $region47: #{tpu_custom_call.1} parent=39 // pred_region
          %248 = dma.done [#allocation8], 8192
        $region48: #{tpu_custom_call.1} parent=39 // pred_fallthru
          _
        %s249 = smul.u32 32, %s26
        %p250 = scmp.lt.s32.totalorder %s25, 1
        %s251 = scalar_select %p250, %s25, 1
        %p252 = scmp.lt.s32.totalorder %s249, 31
        %s253 = scalar_select %p252, %s249, 31
        %s254 = smul.addr %s251, 32
        %s255 = sadd.s32 %s253, %s254
        %s256 = smul.addr %s255, 4
        %s257 = scalar_lea.vmem %s0, %s256
        %p258 = pneg %p56
        %p259 = pneg %p53
        %p260 = pneg %p77
        %p261 = pneg %p74
        %p262 = pneg %p98
        %p263 = pneg %p95
        %p264 = pneg %p119
        %p265 = pneg %p116
        %p266 = pneg %p140
        %p267 = pneg %p137
        %p268 = pneg %p166
        %p269 = pneg %p163
        %s270 = sand.u32 %s153, 1
        %s271 = scalar_lea.sflag [#allocation6], %s270
        %s272 = sand.u32 %s153, 1
        %s273 = smul.addr %s272, 2
        %s274 = scalar_lea.vmem [#allocation9], %s273
        %s275 = smul.u32 32, %s26
        %p276 = scmp.lt.s32.totalorder %s25, 1
        %s277 = scalar_select %p276, %s25, 1
        %p278 = scmp.lt.s32.totalorder %s275, 31
        %s279 = scalar_select %p278, %s275, 31
        %s280 = smul.addr %s277, 32
        %s281 = sadd.s32 %s279, %s280
        %s282 = smul.addr %s281, 4
        %s283 = scalar_lea.vmem %s0, %s282
        %s284 = smul.u32 32, %s26
        %p286 = scmp.eq.s32.totalorder %s26, 0
        // Predicated region
        $region49: #{tpu_custom_call.1} parent=39 // pred_check
          %p287 = pneg %p286
        $region50: #{tpu_custom_call.1} parent=39 // pred_check_branch
          %289 = sbr.rel (%p287) target = $region52
        $region51: #{tpu_custom_call.1} parent=39 // pred_region
          %290 = vst [vmem:[#allocation2] sm:$0xff] 0.0
          %291 = vst [vmem:[#allocation2 + $0x8] sm:$0xff] 0.0
          %292 = vst [vmem:[#allocation2 + $0x10] sm:$0xff] 0.0
          %293 = vst [vmem:[#allocation2 + $0x18] sm:$0xff] 0.0
          %294 = vst [vmem:[#allocation3] sm:$0xff] -inf
          %295 = vst [vmem:[#allocation3 + $0x8] sm:$0xff] -inf
          %296 = vst [vmem:[#allocation3 + $0x10] sm:$0xff] -inf
          %297 = vst [vmem:[#allocation3 + $0x18] sm:$0xff] -inf
        $region52: #{tpu_custom_call.1} parent=39 // pred_fallthru
          _
        %v298 = vld [vmem:[%s283] sm:$0xf]
        %v299 = vld [vmem:[%s283 + $0x4] sm:$0xf]
        %v300 = vld [vmem:[%s283 + $0x8] sm:$0xf]
        %v301 = vld [vmem:[%s283 + $0xc] sm:$0xf]
        %v302 = vld [vmem:[%s283 + $0x10] sm:$0xf]
        %v303 = vld [vmem:[%s283 + $0x14] sm:$0xf]
        %v304 = vld [vmem:[%s283 + $0x18] sm:$0xf]
        %v305 = vld [vmem:[%s283 + $0x1c] sm:$0xf]
        %v306 = vld [vmem:[%s283 + $0x20] sm:$0xf]
        %v307 = vld [vmem:[%s283 + $0x24] sm:$0xf]
        %v308 = vld [vmem:[%s283 + $0x28] sm:$0xf]
        %v309 = vld [vmem:[%s283 + $0x2c] sm:$0xf]
        %v310 = vld [vmem:[%s283 + $0x30] sm:$0xf]
        %v311 = vld [vmem:[%s283 + $0x34] sm:$0xf]
        %v312 = vld [vmem:[%s283 + $0x38] sm:$0xf]
        %v313 = vld [vmem:[%s283 + $0x3c] sm:$0xf]
        %v314 = vld [vmem:[%s283 + $0x40] sm:$0xf]
        %v315 = vld [vmem:[%s283 + $0x44] sm:$0xf]
        %v316 = vld [vmem:[%s283 + $0x48] sm:$0xf]
        %v317 = vld [vmem:[%s283 + $0x4c] sm:$0xf]
        %v318 = vld [vmem:[%s283 + $0x50] sm:$0xf]
        %v319 = vld [vmem:[%s283 + $0x54] sm:$0xf]
        %v320 = vld [vmem:[%s283 + $0x58] sm:$0xf]
        %v321 = vld [vmem:[%s283 + $0x5c] sm:$0xf]
        %v322 = vld [vmem:[%s283 + $0x60] sm:$0xf]
        %v323 = vld [vmem:[%s283 + $0x64] sm:$0xf]
        %v324 = vld [vmem:[%s283 + $0x68] sm:$0xf]
        %v325 = vld [vmem:[%s283 + $0x6c] sm:$0xf]
        %v326 = vld [vmem:[%s283 + $0x70] sm:$0xf]
        %v327 = vld [vmem:[%s283 + $0x74] sm:$0xf]
        %v328 = vld [vmem:[%s283 + $0x78] sm:$0xf]
        %v329 = vld [vmem:[%s283 + $0x7c] sm:$0xf]
        %v330 = vld [vmem:[%s1] sm:$0xff]
        %v331 = vld [vmem:[%s1 + $0x8] sm:$0xff]
        %v364 = vunpack.c.l.b16 %v298
        %v365 = vunpack.c.l.b16 %v299
        %v366 = vunpack.c.l.b16 %v300
        %v367 = vunpack.c.l.b16 %v301
        %v368 = vunpack.c.l.b16 %v302
        %v369 = vunpack.c.l.b16 %v303
        %v370 = vunpack.c.l.b16 %v304
        %v371 = vunpack.c.l.b16 %v305
        %v372 = vunpack.c.l.b16 %v306
        %v373 = vunpack.c.l.b16 %v307
        %v374 = vunpack.c.l.b16 %v308
        %v375 = vunpack.c.l.b16 %v309
        %v376 = vunpack.c.l.b16 %v310
        %v377 = vunpack.c.l.b16 %v311
        %v378 = vunpack.c.l.b16 %v312
        %v379 = vunpack.c.l.b16 %v313
        %v380 = vunpack.c.l.b16 %v314
        %v381 = vunpack.c.l.b16 %v315
        %v382 = vunpack.c.l.b16 %v316
        %v383 = vunpack.c.l.b16 %v317
        %v384 = vunpack.c.l.b16 %v318
        %v385 = vunpack.c.l.b16 %v319
        %v386 = vunpack.c.l.b16 %v320
        %v387 = vunpack.c.l.b16 %v321
        %v388 = vunpack.c.l.b16 %v322
        %v389 = vunpack.c.l.b16 %v323
        %v390 = vunpack.c.l.b16 %v324
        %v391 = vunpack.c.l.b16 %v325
        %v392 = vunpack.c.l.b16 %v326
        %v393 = vunpack.c.l.b16 %v327
        %v394 = vunpack.c.l.b16 %v328
        %v395 = vunpack.c.l.b16 %v329
        %v396 = vpack.c.b16 %v365, %v364
        %v397 = vpack.c.b16 %v367, %v366
        %v398 = vpack.c.b16 %v369, %v368
        %v399 = vpack.c.b16 %v371, %v370
        %v400 = vpack.c.b16 %v373, %v372
        %v401 = vpack.c.b16 %v375, %v374
        %v402 = vpack.c.b16 %v377, %v376
        %v403 = vpack.c.b16 %v379, %v378
        %v404 = vpack.c.b16 %v381, %v380
        %v405 = vpack.c.b16 %v383, %v382
        %v406 = vpack.c.b16 %v385, %v384
        %v407 = vpack.c.b16 %v387, %v386
        %v408 = vpack.c.b16 %v389, %v388
        %v409 = vpack.c.b16 %v391, %v390
        %v410 = vpack.c.b16 %v393, %v392
        %v411 = vpack.c.b16 %v395, %v394
        %v414 = vunpack.c.l.b16 %v330
        %v415 = vunpack.c.h.b16 %v330
        %v416 = vunpack.c.l.b16 %v331
        %v417 = vunpack.c.h.b16 %v331
        %v418 = vpack.c.b16 %v414, %v414
        %v419 = vpack.c.b16 %v415, %v415
        %v420 = vpack.c.b16 %v416, %v416
        %v421 = vpack.c.b16 %v417, %v417
        %vm422 = vcmask 64512
        %v424 = vsel %vm422, %v396, 0
        %v427 = vsel %vm422, %v397, 0
        %v430 = vsel %vm422, %v398, 0
        %v433 = vsel %vm422, %v399, 0
        %v436 = vsel %vm422, %v400, 0
        %v439 = vsel %vm422, %v401, 0
        %v442 = vsel %vm422, %v402, 0
        %v445 = vsel %vm422, %v403, 0
        %v448 = vsel %vm422, %v404, 0
        %v451 = vsel %vm422, %v405, 0
        %v454 = vsel %vm422, %v406, 0
        %v457 = vsel %vm422, %v407, 0
        %v460 = vsel %vm422, %v408, 0
        %v463 = vsel %vm422, %v409, 0
        %v466 = vsel %vm422, %v410, 0
        %v469 = vsel %vm422, %v411, 0
        %vm471 = vcmask 1043456
        %v473 = vsel %vm471, %v418, 0
        %v476 = vsel %vm471, %v419, 0
        %v479 = vsel %vm471, %v420, 0
        %v482 = vsel %vm471, %v421, 0
        %484 = vmatpush.bf16.msra.mxu0 0
        %485 = vmatpush.bf16.msra.mxu0 0
        %486 = vmatpush.bf16.msra.mxu0 0
        %487 = vmatpush.bf16.msra.mxu0 0
        %488 = vmatpush.bf16.msra.mxu0 0
        %489 = vmatpush.bf16.msra.mxu0 0
        %490 = vmatpush.bf16.msra.mxu0 0
        %491 = vmatpush.bf16.msra.mxu0 %v473
        %492 = vmatmul.bf16.gmra.mxu0 %v424
        %v493 = vpop.f32.mrf.mxu0
        %v494 = vadd.f32 0.0, %v493
        %v495 = vpop.f32.mrf.mxu0
        %v496 = vadd.f32 0.0, %v495
        %497 = vmatmul.bf16.gmra.mxu0 %v427
        %v498 = vpop.f32.mrf.mxu0
        %v499 = vadd.f32 0.0, %v498
        %v500 = vpop.f32.mrf.mxu0
        %v501 = vadd.f32 0.0, %v500
        %502 = vmatmul.bf16.gmra.mxu0 %v430
        %v503 = vpop.f32.mrf.mxu0
        %v504 = vadd.f32 0.0, %v503
        %v505 = vpop.f32.mrf.mxu0
        %v506 = vadd.f32 0.0, %v505
        %507 = vmatmul.bf16.gmra.mxu0 %v433
        %v508 = vpop.f32.mrf.mxu0
        %v509 = vadd.f32 0.0, %v508
        %v510 = vpop.f32.mrf.mxu0
        %v511 = vadd.f32 0.0, %v510
        %512 = vmatmul.bf16.gmra.mxu0 %v436
        %v513 = vpop.f32.mrf.mxu0
        %v514 = vadd.f32 0.0, %v513
        %v515 = vpop.f32.mrf.mxu0
        %v516 = vadd.f32 0.0, %v515
        %517 = vmatmul.bf16.gmra.mxu0 %v439
        %v518 = vpop.f32.mrf.mxu0
        %v519 = vadd.f32 0.0, %v518
        %v520 = vpop.f32.mrf.mxu0
        %v521 = vadd.f32 0.0, %v520
        %522 = vmatmul.bf16.gmra.mxu0 %v442
        %v523 = vpop.f32.mrf.mxu0
        %v524 = vadd.f32 0.0, %v523
        %v525 = vpop.f32.mrf.mxu0
        %v526 = vadd.f32 0.0, %v525
        %527 = vmatmul.bf16.gmra.mxu0 %v445
        %v528 = vpop.f32.mrf.mxu0
        %v529 = vadd.f32 0.0, %v528
        %v530 = vpop.f32.mrf.mxu0
        %v531 = vadd.f32 0.0, %v530
        %532 = vmatmul.bf16.gmra.mxu0 %v448
        %v533 = vpop.f32.mrf.mxu0
        %v534 = vadd.f32 0.0, %v533
        %v535 = vpop.f32.mrf.mxu0
        %v536 = vadd.f32 0.0, %v535
        %537 = vmatmul.bf16.gmra.mxu0 %v451
        %v538 = vpop.f32.mrf.mxu0
        %v539 = vadd.f32 0.0, %v538
        %v540 = vpop.f32.mrf.mxu0
        %v541 = vadd.f32 0.0, %v540
        %542 = vmatmul.bf16.gmra.mxu0 %v454
        %v543 = vpop.f32.mrf.mxu0
        %v544 = vadd.f32 0.0, %v543
        %v545 = vpop.f32.mrf.mxu0
        %v546 = vadd.f32 0.0, %v545
        %547 = vmatmul.bf16.gmra.mxu0 %v457
        %v548 = vpop.f32.mrf.mxu0
        %v549 = vadd.f32 0.0, %v548
        %v550 = vpop.f32.mrf.mxu0
        %v551 = vadd.f32 0.0, %v550
        %552 = vmatmul.bf16.gmra.mxu0 %v460
        %v553 = vpop.f32.mrf.mxu0
        %v554 = vadd.f32 0.0, %v553
        %v555 = vpop.f32.mrf.mxu0
        %v556 = vadd.f32 0.0, %v555
        %557 = vmatmul.bf16.gmra.mxu0 %v463
        %v558 = vpop.f32.mrf.mxu0
        %v559 = vadd.f32 0.0, %v558
        %v560 = vpop.f32.mrf.mxu0
        %v561 = vadd.f32 0.0, %v560
        %562 = vmatmul.bf16.gmra.mxu0 %v466
        %v563 = vpop.f32.mrf.mxu0
        %v564 = vadd.f32 0.0, %v563
        %v565 = vpop.f32.mrf.mxu0
        %v566 = vadd.f32 0.0, %v565
        %567 = vmatmul.bf16.gmra.mxu0 %v469
        %v568 = vpop.f32.mrf.mxu0
        %v569 = vadd.f32 0.0, %v568
        %v570 = vpop.f32.mrf.mxu0
        %v571 = vadd.f32 0.0, %v570
        %572 = vdwg.mxu0
        %573 = vmatpush.bf16.msra.mxu0 0
        %574 = vmatpush.bf16.msra.mxu0 0
        %575 = vmatpush.bf16.msra.mxu0 0
        %576 = vmatpush.bf16.msra.mxu0 0
        %577 = vmatpush.bf16.msra.mxu0 0
        %578 = vmatpush.bf16.msra.mxu0 0
        %579 = vmatpush.bf16.msra.mxu0 0
        %580 = vmatpush.bf16.msra.mxu0 %v476
        %581 = vmatmul.bf16.gmra.mxu0 %v424
        %v582 = vpop.f32.mrf.mxu0
        %v583 = vadd.f32 0.0, %v582
        %v584 = vpop.f32.mrf.mxu0
        %v585 = vadd.f32 0.0, %v584
        %586 = vmatmul.bf16.gmra.mxu0 %v427
        %v587 = vpop.f32.mrf.mxu0
        %v588 = vadd.f32 0.0, %v587
        %v589 = vpop.f32.mrf.mxu0
        %v590 = vadd.f32 0.0, %v589
        %591 = vmatmul.bf16.gmra.mxu0 %v430
        %v592 = vpop.f32.mrf.mxu0
        %v593 = vadd.f32 0.0, %v592
        %v594 = vpop.f32.mrf.mxu0
        %v595 = vadd.f32 0.0, %v594
        %596 = vmatmul.bf16.gmra.mxu0 %v433
        %v597 = vpop.f32.mrf.mxu0
        %v598 = vadd.f32 0.0, %v597
        %v599 = vpop.f32.mrf.mxu0
        %v600 = vadd.f32 0.0, %v599
        %601 = vmatmul.bf16.gmra.mxu0 %v436
        %v602 = vpop.f32.mrf.mxu0
        %v603 = vadd.f32 0.0, %v602
        %v604 = vpop.f32.mrf.mxu0
        %v605 = vadd.f32 0.0, %v604
        %606 = vmatmul.bf16.gmra.mxu0 %v439
        %v607 = vpop.f32.mrf.mxu0
        %v608 = vadd.f32 0.0, %v607
        %v609 = vpop.f32.mrf.mxu0
        %v610 = vadd.f32 0.0, %v609
        %611 = vmatmul.bf16.gmra.mxu0 %v442
        %v612 = vpop.f32.mrf.mxu0
        %v613 = vadd.f32 0.0, %v612
        %v614 = vpop.f32.mrf.mxu0
        %v615 = vadd.f32 0.0, %v614
        %616 = vmatmul.bf16.gmra.mxu0 %v445
        %v617 = vpop.f32.mrf.mxu0
        %v618 = vadd.f32 0.0, %v617
        %v619 = vpop.f32.mrf.mxu0
        %v620 = vadd.f32 0.0, %v619
        %621 = vmatmul.bf16.gmra.mxu0 %v448
        %v622 = vpop.f32.mrf.mxu0
        %v623 = vadd.f32 0.0, %v622
        %v624 = vpop.f32.mrf.mxu0
        %v625 = vadd.f32 0.0, %v624
        %626 = vmatmul.bf16.gmra.mxu0 %v451
        %v627 = vpop.f32.mrf.mxu0
        %v628 = vadd.f32 0.0, %v627
        %v629 = vpop.f32.mrf.mxu0
        %v630 = vadd.f32 0.0, %v629
        %631 = vmatmul.bf16.gmra.mxu0 %v454
        %v632 = vpop.f32.mrf.mxu0
        %v633 = vadd.f32 0.0, %v632
        %v634 = vpop.f32.mrf.mxu0
        %v635 = vadd.f32 0.0, %v634
        %636 = vmatmul.bf16.gmra.mxu0 %v457
        %v637 = vpop.f32.mrf.mxu0
        %v638 = vadd.f32 0.0, %v637
        %v639 = vpop.f32.mrf.mxu0
        %v640 = vadd.f32 0.0, %v639
        %641 = vmatmul.bf16.gmra.mxu0 %v460
        %v642 = vpop.f32.mrf.mxu0
        %v643 = vadd.f32 0.0, %v642
        %v644 = vpop.f32.mrf.mxu0
        %v645 = vadd.f32 0.0, %v644
        %646 = vmatmul.bf16.gmra.mxu0 %v463
        %v647 = vpop.f32.mrf.mxu0
        %v648 = vadd.f32 0.0, %v647
        %v649 = vpop.f32.mrf.mxu0
        %v650 = vadd.f32 0.0, %v649
        %651 = vmatmul.bf16.gmra.mxu0 %v466
        %v652 = vpop.f32.mrf.mxu0
        %v653 = vadd.f32 0.0, %v652
        %v654 = vpop.f32.mrf.mxu0
        %v655 = vadd.f32 0.0, %v654
        %656 = vmatmul.bf16.gmra.mxu0 %v469
        %v657 = vpop.f32.mrf.mxu0
        %v658 = vadd.f32 0.0, %v657
        %v659 = vpop.f32.mrf.mxu0
        %v660 = vadd.f32 0.0, %v659
        %661 = vdwg.mxu0
        %662 = vmatpush.bf16.msra.mxu0 0
        %663 = vmatpush.bf16.msra.mxu0 0
        %664 = vmatpush.bf16.msra.mxu0 0
        %665 = vmatpush.bf16.msra.mxu0 0
        %666 = vmatpush.bf16.msra.mxu0 0
        %667 = vmatpush.bf16.msra.mxu0 0
        %668 = vmatpush.bf16.msra.mxu0 0
        %669 = vmatpush.bf16.msra.mxu0 %v479
        %670 = vmatmul.bf16.gmra.mxu0 %v424
        %v671 = vpop.f32.mrf.mxu0
        %v672 = vadd.f32 0.0, %v671
        %v673 = vpop.f32.mrf.mxu0
        %v674 = vadd.f32 0.0, %v673
        %675 = vmatmul.bf16.gmra.mxu0 %v427
        %v676 = vpop.f32.mrf.mxu0
        %v677 = vadd.f32 0.0, %v676
        %v678 = vpop.f32.mrf.mxu0
        %v679 = vadd.f32 0.0, %v678
        %680 = vmatmul.bf16.gmra.mxu0 %v430
        %v681 = vpop.f32.mrf.mxu0
        %v682 = vadd.f32 0.0, %v681
        %v683 = vpop.f32.mrf.mxu0
        %v684 = vadd.f32 0.0, %v683
        %685 = vmatmul.bf16.gmra.mxu0 %v433
        %v686 = vpop.f32.mrf.mxu0
        %v687 = vadd.f32 0.0, %v686
        %v688 = vpop.f32.mrf.mxu0
        %v689 = vadd.f32 0.0, %v688
        %690 = vmatmul.bf16.gmra.mxu0 %v436
        %v691 = vpop.f32.mrf.mxu0
        %v692 = vadd.f32 0.0, %v691
        %v693 = vpop.f32.mrf.mxu0
        %v694 = vadd.f32 0.0, %v693
        %695 = vmatmul.bf16.gmra.mxu0 %v439
        %v696 = vpop.f32.mrf.mxu0
        %v697 = vadd.f32 0.0, %v696
        %v698 = vpop.f32.mrf.mxu0
        %v699 = vadd.f32 0.0, %v698
        %700 = vmatmul.bf16.gmra.mxu0 %v442
        %v701 = vpop.f32.mrf.mxu0
        %v702 = vadd.f32 0.0, %v701
        %v703 = vpop.f32.mrf.mxu0
        %v704 = vadd.f32 0.0, %v703
        %705 = vmatmul.bf16.gmra.mxu0 %v445
        %v706 = vpop.f32.mrf.mxu0
        %v707 = vadd.f32 0.0, %v706
        %v708 = vpop.f32.mrf.mxu0
        %v709 = vadd.f32 0.0, %v708
        %710 = vmatmul.bf16.gmra.mxu0 %v448
        %v711 = vpop.f32.mrf.mxu0
        %v712 = vadd.f32 0.0, %v711
        %v713 = vpop.f32.mrf.mxu0
        %v714 = vadd.f32 0.0, %v713
        %715 = vmatmul.bf16.gmra.mxu0 %v451
        %v716 = vpop.f32.mrf.mxu0
        %v717 = vadd.f32 0.0, %v716
        %v718 = vpop.f32.mrf.mxu0
        %v719 = vadd.f32 0.0, %v718
        %720 = vmatmul.bf16.gmra.mxu0 %v454
        %v721 = vpop.f32.mrf.mxu0
        %v722 = vadd.f32 0.0, %v721
        %v723 = vpop.f32.mrf.mxu0
        %v724 = vadd.f32 0.0, %v723
        %725 = vmatmul.bf16.gmra.mxu0 %v457
        %v726 = vpop.f32.mrf.mxu0
        %v727 = vadd.f32 0.0, %v726
        %v728 = vpop.f32.mrf.mxu0
        %v729 = vadd.f32 0.0, %v728
        %730 = vmatmul.bf16.gmra.mxu0 %v460
        %v731 = vpop.f32.mrf.mxu0
        %v732 = vadd.f32 0.0, %v731
        %v733 = vpop.f32.mrf.mxu0
        %v734 = vadd.f32 0.0, %v733
        %735 = vmatmul.bf16.gmra.mxu0 %v463
        %v736 = vpop.f32.mrf.mxu0
        %v737 = vadd.f32 0.0, %v736
        %v738 = vpop.f32.mrf.mxu0
        %v739 = vadd.f32 0.0, %v738
        %740 = vmatmul.bf16.gmra.mxu0 %v466
        %v741 = vpop.f32.mrf.mxu0
        %v742 = vadd.f32 0.0, %v741
        %v743 = vpop.f32.mrf.mxu0
        %v744 = vadd.f32 0.0, %v743
        %745 = vmatmul.bf16.gmra.mxu0 %v469
        %v746 = vpop.f32.mrf.mxu0
        %v747 = vadd.f32 0.0, %v746
        %v748 = vpop.f32.mrf.mxu0
        %v749 = vadd.f32 0.0, %v748
        %750 = vdwg.mxu0
        %751 = vmatpush.bf16.msra.mxu0 0
        %752 = vmatpush.bf16.msra.mxu0 0
        %753 = vmatpush.bf16.msra.mxu0 0
        %754 = vmatpush.bf16.msra.mxu0 0
        %755 = vmatpush.bf16.msra.mxu0 0
        %756 = vmatpush.bf16.msra.mxu0 0
        %757 = vmatpush.bf16.msra.mxu0 0
        %758 = vmatpush.bf16.msra.mxu0 %v482
        %759 = vmatmul.bf16.gmra.mxu0 %v424
        %v760 = vpop.f32.mrf.mxu0
        %v761 = vadd.f32 0.0, %v760
        %v762 = vpop.f32.mrf.mxu0
        %v763 = vadd.f32 0.0, %v762
        %764 = vmatmul.bf16.gmra.mxu0 %v427
        %v765 = vpop.f32.mrf.mxu0
        %v766 = vadd.f32 0.0, %v765
        %v767 = vpop.f32.mrf.mxu0
        %v768 = vadd.f32 0.0, %v767
        %769 = vmatmul.bf16.gmra.mxu0 %v430
        %v770 = vpop.f32.mrf.mxu0
        %v771 = vadd.f32 0.0, %v770
        %v772 = vpop.f32.mrf.mxu0
        %v773 = vadd.f32 0.0, %v772
        %774 = vmatmul.bf16.gmra.mxu0 %v433
        %v775 = vpop.f32.mrf.mxu0
        %v776 = vadd.f32 0.0, %v775
        %v777 = vpop.f32.mrf.mxu0
        %v778 = vadd.f32 0.0, %v777
        %779 = vmatmul.bf16.gmra.mxu0 %v436
        %v780 = vpop.f32.mrf.mxu0
        %v781 = vadd.f32 0.0, %v780
        %v782 = vpop.f32.mrf.mxu0
        %v783 = vadd.f32 0.0, %v782
        %784 = vmatmul.bf16.gmra.mxu0 %v439
        %v785 = vpop.f32.mrf.mxu0
        %v786 = vadd.f32 0.0, %v785
        %v787 = vpop.f32.mrf.mxu0
        %v788 = vadd.f32 0.0, %v787
        %789 = vmatmul.bf16.gmra.mxu0 %v442
        %v790 = vpop.f32.mrf.mxu0
        %v791 = vadd.f32 0.0, %v790
        %v792 = vpop.f32.mrf.mxu0
        %v793 = vadd.f32 0.0, %v792
        %794 = vmatmul.bf16.gmra.mxu0 %v445
        %v795 = vpop.f32.mrf.mxu0
        %v796 = vadd.f32 0.0, %v795
        %v797 = vpop.f32.mrf.mxu0
        %v798 = vadd.f32 0.0, %v797
        %799 = vmatmul.bf16.gmra.mxu0 %v448
        %v800 = vpop.f32.mrf.mxu0
        %v801 = vadd.f32 0.0, %v800
        %v802 = vpop.f32.mrf.mxu0
        %v803 = vadd.f32 0.0, %v802
        %804 = vmatmul.bf16.gmra.mxu0 %v451
        %v805 = vpop.f32.mrf.mxu0
        %v806 = vadd.f32 0.0, %v805
        %v807 = vpop.f32.mrf.mxu0
        %v808 = vadd.f32 0.0, %v807
        %809 = vmatmul.bf16.gmra.mxu0 %v454
        %v810 = vpop.f32.mrf.mxu0
        %v811 = vadd.f32 0.0, %v810
        %v812 = vpop.f32.mrf.mxu0
        %v813 = vadd.f32 0.0, %v812
        %814 = vmatmul.bf16.gmra.mxu0 %v457
        %v815 = vpop.f32.mrf.mxu0
        %v816 = vadd.f32 0.0, %v815
        %v817 = vpop.f32.mrf.mxu0
        %v818 = vadd.f32 0.0, %v817
        %819 = vmatmul.bf16.gmra.mxu0 %v460
        %v820 = vpop.f32.mrf.mxu0
        %v821 = vadd.f32 0.0, %v820
        %v822 = vpop.f32.mrf.mxu0
        %v823 = vadd.f32 0.0, %v822
        %824 = vmatmul.bf16.gmra.mxu0 %v463
        %v825 = vpop.f32.mrf.mxu0
        %v826 = vadd.f32 0.0, %v825
        %v827 = vpop.f32.mrf.mxu0
        %v828 = vadd.f32 0.0, %v827
        %829 = vmatmul.bf16.gmra.mxu0 %v466
        %v830 = vpop.f32.mrf.mxu0
        %v831 = vadd.f32 0.0, %v830
        %v832 = vpop.f32.mrf.mxu0
        %v833 = vadd.f32 0.0, %v832
        %834 = vmatmul.bf16.gmra.mxu0 %v469
        %v835 = vpop.f32.mrf.mxu0
        %v836 = vadd.f32 0.0, %v835
        %v837 = vpop.f32.mrf.mxu0
        %v838 = vadd.f32 0.0, %v837
        %839 = vdwg.mxu0
        %v840 = vmax.f32 %v494, 0.0
        %v841 = vmax.f32 %v583, 0.0
        %v842 = vmax.f32 %v672, 0.0
        %v843 = vmax.f32 %v761, 0.0
        %v844 = vmax.f32 %v496, 0.0
        %v845 = vmax.f32 %v585, 0.0
        %v846 = vmax.f32 %v674, 0.0
        %v847 = vmax.f32 %v763, 0.0
        %v848 = vmax.f32 %v499, 0.0
        %v849 = vmax.f32 %v588, 0.0
        %v850 = vmax.f32 %v677, 0.0
        %v851 = vmax.f32 %v766, 0.0
        %v852 = vmax.f32 %v501, 0.0
        %v853 = vmax.f32 %v590, 0.0
        %v854 = vmax.f32 %v679, 0.0
        %v855 = vmax.f32 %v768, 0.0
        %v856 = vmax.f32 %v504, 0.0
        %v857 = vmax.f32 %v593, 0.0
        %v858 = vmax.f32 %v682, 0.0
        %v859 = vmax.f32 %v771, 0.0
        %v860 = vmax.f32 %v506, 0.0
        %v861 = vmax.f32 %v595, 0.0
        %v862 = vmax.f32 %v684, 0.0
        %v863 = vmax.f32 %v773, 0.0
        %v864 = vmax.f32 %v509, 0.0
        %v865 = vmax.f32 %v598, 0.0
        %v866 = vmax.f32 %v687, 0.0
        %v867 = vmax.f32 %v776, 0.0
        %v868 = vmax.f32 %v511, 0.0
        %v869 = vmax.f32 %v600, 0.0
        %v870 = vmax.f32 %v689, 0.0
        %v871 = vmax.f32 %v778, 0.0
        %v872 = vmax.f32 %v514, 0.0
        %v873 = vmax.f32 %v603, 0.0
        %v874 = vmax.f32 %v692, 0.0
        %v875 = vmax.f32 %v781, 0.0
        %v876 = vmax.f32 %v516, 0.0
        %v877 = vmax.f32 %v605, 0.0
        %v878 = vmax.f32 %v694, 0.0
        %v879 = vmax.f32 %v783, 0.0
        %v880 = vmax.f32 %v519, 0.0
        %v881 = vmax.f32 %v608, 0.0
        %v882 = vmax.f32 %v697, 0.0
        %v883 = vmax.f32 %v786, 0.0
        %v884 = vmax.f32 %v521, 0.0
        %v885 = vmax.f32 %v610, 0.0
        %v886 = vmax.f32 %v699, 0.0
        %v887 = vmax.f32 %v788, 0.0
        %v888 = vmax.f32 %v524, 0.0
        %v889 = vmax.f32 %v613, 0.0
        %v890 = vmax.f32 %v702, 0.0
        %v891 = vmax.f32 %v791, 0.0
        %v892 = vmax.f32 %v526, 0.0
        %v893 = vmax.f32 %v615, 0.0
        %v894 = vmax.f32 %v704, 0.0
        %v895 = vmax.f32 %v793, 0.0
        %v896 = vmax.f32 %v529, 0.0
        %v897 = vmax.f32 %v618, 0.0
        %v898 = vmax.f32 %v707, 0.0
        %v899 = vmax.f32 %v796, 0.0
        %v900 = vmax.f32 %v531, 0.0
        %v901 = vmax.f32 %v620, 0.0
        %v902 = vmax.f32 %v709, 0.0
        %v903 = vmax.f32 %v798, 0.0
        %v904 = vmax.f32 %v534, 0.0
        %v905 = vmax.f32 %v623, 0.0
        %v906 = vmax.f32 %v712, 0.0
        %v907 = vmax.f32 %v801, 0.0
        %v908 = vmax.f32 %v536, 0.0
        %v909 = vmax.f32 %v625, 0.0
        %v910 = vmax.f32 %v714, 0.0
        %v911 = vmax.f32 %v803, 0.0
        %v912 = vmax.f32 %v539, 0.0
        %v913 = vmax.f32 %v628, 0.0
        %v914 = vmax.f32 %v717, 0.0
        %v915 = vmax.f32 %v806, 0.0
        %v916 = vmax.f32 %v541, 0.0
        %v917 = vmax.f32 %v630, 0.0
        %v918 = vmax.f32 %v719, 0.0
        %v919 = vmax.f32 %v808, 0.0
        %v920 = vmax.f32 %v544, 0.0
        %v921 = vmax.f32 %v633, 0.0
        %v922 = vmax.f32 %v722, 0.0
        %v923 = vmax.f32 %v811, 0.0
        %v924 = vmax.f32 %v546, 0.0
        %v925 = vmax.f32 %v635, 0.0
        %v926 = vmax.f32 %v724, 0.0
        %v927 = vmax.f32 %v813, 0.0
        %v928 = vmax.f32 %v549, 0.0
        %v929 = vmax.f32 %v638, 0.0
        %v930 = vmax.f32 %v727, 0.0
        %v931 = vmax.f32 %v816, 0.0
        %v932 = vmax.f32 %v551, 0.0
        %v933 = vmax.f32 %v640, 0.0
        %v934 = vmax.f32 %v729, 0.0
        %v935 = vmax.f32 %v818, 0.0
        %v936 = vmax.f32 %v554, 0.0
        %v937 = vmax.f32 %v643, 0.0
        %v938 = vmax.f32 %v732, 0.0
        %v939 = vmax.f32 %v821, 0.0
        %v940 = vmax.f32 %v556, 0.0
        %v941 = vmax.f32 %v645, 0.0
        %v942 = vmax.f32 %v734, 0.0
        %v943 = vmax.f32 %v823, 0.0
        %v944 = vmax.f32 %v559, 0.0
        %v945 = vmax.f32 %v648, 0.0
        %v946 = vmax.f32 %v737, 0.0
        %v947 = vmax.f32 %v826, 0.0
        %v948 = vmax.f32 %v561, 0.0
        %v949 = vmax.f32 %v650, 0.0
        %v950 = vmax.f32 %v739, 0.0
        %v951 = vmax.f32 %v828, 0.0
        %v952 = vmax.f32 %v564, 0.0
        %v953 = vmax.f32 %v653, 0.0
        %v954 = vmax.f32 %v742, 0.0
        %v955 = vmax.f32 %v831, 0.0
        %v956 = vmax.f32 %v566, 0.0
        %v957 = vmax.f32 %v655, 0.0
        %v958 = vmax.f32 %v744, 0.0
        %v959 = vmax.f32 %v833, 0.0
        %v960 = vmax.f32 %v569, 0.0
        %v961 = vmax.f32 %v658, 0.0
        %v962 = vmax.f32 %v747, 0.0
        %v963 = vmax.f32 %v836, 0.0
        %v964 = vmax.f32 %v571, 0.0
        %v965 = vmax.f32 %v660, 0.0
        %v966 = vmax.f32 %v749, 0.0
        %v967 = vmax.f32 %v838, 0.0
        %v968 = vpack.c.bf16 %v844, %v840
        %v969 = vpack.c.bf16 %v845, %v841
        %v970 = vpack.c.bf16 %v846, %v842
        %v971 = vpack.c.bf16 %v847, %v843
        %v972 = vpack.c.bf16 %v852, %v848
        %v973 = vpack.c.bf16 %v853, %v849
        %v974 = vpack.c.bf16 %v854, %v850
        %v975 = vpack.c.bf16 %v855, %v851
        %v976 = vpack.c.bf16 %v860, %v856
        %v977 = vpack.c.bf16 %v861, %v857
        %v978 = vpack.c.bf16 %v862, %v858
        %v979 = vpack.c.bf16 %v863, %v859
        %v980 = vpack.c.bf16 %v868, %v864
        %v981 = vpack.c.bf16 %v869, %v865
        %v982 = vpack.c.bf16 %v870, %v866
        %v983 = vpack.c.bf16 %v871, %v867
        %v984 = vpack.c.bf16 %v876, %v872
        %v985 = vpack.c.bf16 %v877, %v873
        %v986 = vpack.c.bf16 %v878, %v874
        %v987 = vpack.c.bf16 %v879, %v875
        %v988 = vpack.c.bf16 %v884, %v880
        %v989 = vpack.c.bf16 %v885, %v881
        %v990 = vpack.c.bf16 %v886, %v882
        %v991 = vpack.c.bf16 %v887, %v883
        %v992 = vpack.c.bf16 %v892, %v888
        %v993 = vpack.c.bf16 %v893, %v889
        %v994 = vpack.c.bf16 %v894, %v890
        %v995 = vpack.c.bf16 %v895, %v891
        %v996 = vpack.c.bf16 %v900, %v896
        %v997 = vpack.c.bf16 %v901, %v897
        %v998 = vpack.c.bf16 %v902, %v898
        %v999 = vpack.c.bf16 %v903, %v899
        %v1000 = vpack.c.bf16 %v908, %v904
        %v1001 = vpack.c.bf16 %v909, %v905
        %v1002 = vpack.c.bf16 %v910, %v906
        %v1003 = vpack.c.bf16 %v911, %v907
        %v1004 = vpack.c.bf16 %v916, %v912
        %v1005 = vpack.c.bf16 %v917, %v913
        %v1006 = vpack.c.bf16 %v918, %v914
        %v1007 = vpack.c.bf16 %v919, %v915
        %v1008 = vpack.c.bf16 %v924, %v920
        %v1009 = vpack.c.bf16 %v925, %v921
        %v1010 = vpack.c.bf16 %v926, %v922
        %v1011 = vpack.c.bf16 %v927, %v923
        %v1012 = vpack.c.bf16 %v932, %v928
        %v1013 = vpack.c.bf16 %v933, %v929
        %v1014 = vpack.c.bf16 %v934, %v930
        %v1015 = vpack.c.bf16 %v935, %v931
        %v1016 = vpack.c.bf16 %v940, %v936
        %v1017 = vpack.c.bf16 %v941, %v937
        %v1018 = vpack.c.bf16 %v942, %v938
        %v1019 = vpack.c.bf16 %v943, %v939
        %v1020 = vpack.c.bf16 %v948, %v944
        %v1021 = vpack.c.bf16 %v949, %v945
        %v1022 = vpack.c.bf16 %v950, %v946
        %v1023 = vpack.c.bf16 %v951, %v947
        %v1024 = vpack.c.bf16 %v956, %v952
        %v1025 = vpack.c.bf16 %v957, %v953
        %v1026 = vpack.c.bf16 %v958, %v954
        %v1027 = vpack.c.bf16 %v959, %v955
        %v1028 = vpack.c.bf16 %v964, %v960
        %v1029 = vpack.c.bf16 %v965, %v961
        %v1030 = vpack.c.bf16 %v966, %v962
        %v1031 = vpack.c.bf16 %v967, %v963
        %v1032 = vld [vmem:[#allocation4] sm:$0xff]
        %v1033 = vld [vmem:[#allocation4 + $0x8] sm:$0xff]
        %v1034 = vld [vmem:[#allocation4 + $0x10] sm:$0xff]
        %v1035 = vld [vmem:[#allocation4 + $0x18] sm:$0xff]
        %v1036 = vld [vmem:[#allocation4 + $0x20] sm:$0xff]
        %v1037 = vld [vmem:[#allocation4 + $0x28] sm:$0xff]
        %v1038 = vld [vmem:[#allocation4 + $0x30] sm:$0xff]
        %v1039 = vld [vmem:[#allocation4 + $0x38] sm:$0xff]
        %v1040 = vld [vmem:[#allocation4 + $0x40] sm:$0xff]
        %v1041 = vld [vmem:[#allocation4 + $0x48] sm:$0xff]
        %v1042 = vld [vmem:[#allocation4 + $0x50] sm:$0xff]
        %v1043 = vld [vmem:[#allocation4 + $0x58] sm:$0xff]
        %v1044 = vld [vmem:[#allocation4 + $0x60] sm:$0xff]
        %v1045 = vld [vmem:[#allocation4 + $0x68] sm:$0xff]
        %v1046 = vld [vmem:[#allocation4 + $0x70] sm:$0xff]
        %v1047 = vld [vmem:[#allocation4 + $0x78] sm:$0xff]
        %v1048 = vld [vmem:[#allocation4 + $0x80] sm:$0xff]
        %v1049 = vld [vmem:[#allocation4 + $0x88] sm:$0xff]
        %v1050 = vld [vmem:[#allocation4 + $0x90] sm:$0xff]
        %v1051 = vld [vmem:[#allocation4 + $0x98] sm:$0xff]
        %v1052 = vld [vmem:[#allocation4 + $0xa0] sm:$0xff]
        %v1053 = vld [vmem:[#allocation4 + $0xa8] sm:$0xff]
        %v1054 = vld [vmem:[#allocation4 + $0xb0] sm:$0xff]
        %v1055 = vld [vmem:[#allocation4 + $0xb8] sm:$0xff]
        %v1056 = vld [vmem:[#allocation4 + $0xc0] sm:$0xff]
        %v1057 = vld [vmem:[#allocation4 + $0xc8] sm:$0xff]
        %v1058 = vld [vmem:[#allocation4 + $0xd0] sm:$0xff]
        %v1059 = vld [vmem:[#allocation4 + $0xd8] sm:$0xff]
        %v1060 = vld [vmem:[#allocation4 + $0xe0] sm:$0xff]
        %v1061 = vld [vmem:[#allocation4 + $0xe8] sm:$0xff]
        %v1062 = vld [vmem:[#allocation4 + $0xf0] sm:$0xff]
        %v1063 = vld [vmem:[#allocation4 + $0xf8] sm:$0xff]
        %v1064 = vld [vmem:[#allocation4 + $0x100] sm:$0xff]
        %v1065 = vld [vmem:[#allocation4 + $0x108] sm:$0xff]
        %v1066 = vld [vmem:[#allocation4 + $0x110] sm:$0xff]
        %v1067 = vld [vmem:[#allocation4 + $0x118] sm:$0xff]
        %v1068 = vld [vmem:[#allocation4 + $0x120] sm:$0xff]
        %v1069 = vld [vmem:[#allocation4 + $0x128] sm:$0xff]
        %v1070 = vld [vmem:[#allocation4 + $0x130] sm:$0xff]
        %v1071 = vld [vmem:[#allocation4 + $0x138] sm:$0xff]
        %v1072 = vld [vmem:[#allocation4 + $0x140] sm:$0xff]
        %v1073 = vld [vmem:[#allocation4 + $0x148] sm:$0xff]
        %v1074 = vld [vmem:[#allocation4 + $0x150] sm:$0xff]
        %v1075 = vld [vmem:[#allocation4 + $0x158] sm:$0xff]
        %v1076 = vld [vmem:[#allocation4 + $0x160] sm:$0xff]
        %v1077 = vld [vmem:[#allocation4 + $0x168] sm:$0xff]
        %v1078 = vld [vmem:[#allocation4 + $0x170] sm:$0xff]
        %v1079 = vld [vmem:[#allocation4 + $0x178] sm:$0xff]
        %v1080 = vld [vmem:[#allocation4 + $0x180] sm:$0xff]
        %v1081 = vld [vmem:[#allocation4 + $0x188] sm:$0xff]
        %v1082 = vld [vmem:[#allocation4 + $0x190] sm:$0xff]
        %v1083 = vld [vmem:[#allocation4 + $0x198] sm:$0xff]
        %v1084 = vld [vmem:[#allocation4 + $0x1a0] sm:$0xff]
        %v1085 = vld [vmem:[#allocation4 + $0x1a8] sm:$0xff]
        %v1086 = vld [vmem:[#allocation4 + $0x1b0] sm:$0xff]
        %v1087 = vld [vmem:[#allocation4 + $0x1b8] sm:$0xff]
        %v1088 = vld [vmem:[#allocation4 + $0x1c0] sm:$0xff]
        %v1089 = vld [vmem:[#allocation4 + $0x1c8] sm:$0xff]
        %v1090 = vld [vmem:[#allocation4 + $0x1d0] sm:$0xff]
        %v1091 = vld [vmem:[#allocation4 + $0x1d8] sm:$0xff]
        %v1092 = vld [vmem:[#allocation4 + $0x1e0] sm:$0xff]
        %v1093 = vld [vmem:[#allocation4 + $0x1e8] sm:$0xff]
        %v1094 = vld [vmem:[#allocation4 + $0x1f0] sm:$0xff]
        %v1095 = vld [vmem:[#allocation4 + $0x1f8] sm:$0xff]
        %v1096 = vld [vmem:[#allocation4 + $0x200] sm:$0xff]
        %v1097 = vld [vmem:[#allocation4 + $0x208] sm:$0xff]
        %v1098 = vld [vmem:[#allocation4 + $0x210] sm:$0xff]
        %v1099 = vld [vmem:[#allocation4 + $0x218] sm:$0xff]
        %v1100 = vld [vmem:[#allocation4 + $0x220] sm:$0xff]
        %v1101 = vld [vmem:[#allocation4 + $0x228] sm:$0xff]
        %v1102 = vld [vmem:[#allocation4 + $0x230] sm:$0xff]
        %v1103 = vld [vmem:[#allocation4 + $0x238] sm:$0xff]
        %v1104 = vld [vmem:[#allocation4 + $0x240] sm:$0xff]
        %v1105 = vld [vmem:[#allocation4 + $0x248] sm:$0xff]
        %v1106 = vld [vmem:[#allocation4 + $0x250] sm:$0xff]
        %v1107 = vld [vmem:[#allocation4 + $0x258] sm:$0xff]
        %v1108 = vld [vmem:[#allocation4 + $0x260] sm:$0xff]
        %v1109 = vld [vmem:[#allocation4 + $0x268] sm:$0xff]
        %v1110 = vld [vmem:[#allocation4 + $0x270] sm:$0xff]
        %v1111 = vld [vmem:[#allocation4 + $0x278] sm:$0xff]
        %v1112 = vld [vmem:[#allocation4 + $0x280] sm:$0xff]
        %v1113 = vld [vmem:[#allocation4 + $0x288] sm:$0xff]
        %v1114 = vld [vmem:[#allocation4 + $0x290] sm:$0xff]
        %v1115 = vld [vmem:[#allocation4 + $0x298] sm:$0xff]
        %v1116 = vld [vmem:[#allocation4 + $0x2a0] sm:$0xff]
        %v1117 = vld [vmem:[#allocation4 + $0x2a8] sm:$0xff]
        %v1118 = vld [vmem:[#allocation4 + $0x2b0] sm:$0xff]
        %v1119 = vld [vmem:[#allocation4 + $0x2b8] sm:$0xff]
        %v1120 = vld [vmem:[#allocation4 + $0x2c0] sm:$0xff]
        %v1121 = vld [vmem:[#allocation4 + $0x2c8] sm:$0xff]
        %v1122 = vld [vmem:[#allocation4 + $0x2d0] sm:$0xff]
        %v1123 = vld [vmem:[#allocation4 + $0x2d8] sm:$0xff]
        %v1124 = vld [vmem:[#allocation4 + $0x2e0] sm:$0xff]
        %v1125 = vld [vmem:[#allocation4 + $0x2e8] sm:$0xff]
        %v1126 = vld [vmem:[#allocation4 + $0x2f0] sm:$0xff]
        %v1127 = vld [vmem:[#allocation4 + $0x2f8] sm:$0xff]
        %v1128 = vld [vmem:[#allocation4 + $0x300] sm:$0xff]
        %v1129 = vld [vmem:[#allocation4 + $0x308] sm:$0xff]
        %v1130 = vld [vmem:[#allocation4 + $0x310] sm:$0xff]
        %v1131 = vld [vmem:[#allocation4 + $0x318] sm:$0xff]
        %v1132 = vld [vmem:[#allocation4 + $0x320] sm:$0xff]
        %v1133 = vld [vmem:[#allocation4 + $0x328] sm:$0xff]
        %v1134 = vld [vmem:[#allocation4 + $0x330] sm:$0xff]
        %v1135 = vld [vmem:[#allocation4 + $0x338] sm:$0xff]
        %v1136 = vld [vmem:[#allocation4 + $0x340] sm:$0xff]
        %v1137 = vld [vmem:[#allocation4 + $0x348] sm:$0xff]
        %v1138 = vld [vmem:[#allocation4 + $0x350] sm:$0xff]
        %v1139 = vld [vmem:[#allocation4 + $0x358] sm:$0xff]
        %v1140 = vld [vmem:[#allocation4 + $0x360] sm:$0xff]
        %v1141 = vld [vmem:[#allocation4 + $0x368] sm:$0xff]
        %v1142 = vld [vmem:[#allocation4 + $0x370] sm:$0xff]
        %v1143 = vld [vmem:[#allocation4 + $0x378] sm:$0xff]
        %v1144 = vld [vmem:[#allocation4 + $0x380] sm:$0xff]
        %v1145 = vld [vmem:[#allocation4 + $0x388] sm:$0xff]
        %v1146 = vld [vmem:[#allocation4 + $0x390] sm:$0xff]
        %v1147 = vld [vmem:[#allocation4 + $0x398] sm:$0xff]
        %v1148 = vld [vmem:[#allocation4 + $0x3a0] sm:$0xff]
        %v1149 = vld [vmem:[#allocation4 + $0x3a8] sm:$0xff]
        %v1150 = vld [vmem:[#allocation4 + $0x3b0] sm:$0xff]
        %v1151 = vld [vmem:[#allocation4 + $0x3b8] sm:$0xff]
        %v1152 = vld [vmem:[#allocation4 + $0x3c0] sm:$0xff]
        %v1153 = vld [vmem:[#allocation4 + $0x3c8] sm:$0xff]
        %v1154 = vld [vmem:[#allocation4 + $0x3d0] sm:$0xff]
        %v1155 = vld [vmem:[#allocation4 + $0x3d8] sm:$0xff]
        %v1156 = vld [vmem:[#allocation4 + $0x3e0] sm:$0xff]
        %v1157 = vld [vmem:[#allocation4 + $0x3e8] sm:$0xff]
        %v1158 = vld [vmem:[#allocation4 + $0x3f0] sm:$0xff]
        %v1159 = vld [vmem:[#allocation4 + $0x3f8] sm:$0xff]
        %v1288 = vunpack.c.l.b16 %v1032
        %v1289 = vunpack.c.h.b16 %v1032
        %v1290 = vunpack.c.l.b16 %v1033
        %v1291 = vunpack.c.h.b16 %v1033
        %v1292 = vunpack.c.l.b16 %v1034
        %v1293 = vunpack.c.h.b16 %v1034
        %v1294 = vunpack.c.l.b16 %v1035
        %v1295 = vunpack.c.h.b16 %v1035
        %v1296 = vunpack.c.l.b16 %v1036
        %v1297 = vunpack.c.h.b16 %v1036
        %v1298 = vunpack.c.l.b16 %v1037
        %v1299 = vunpack.c.h.b16 %v1037
        %v1300 = vunpack.c.l.b16 %v1038
        %v1301 = vunpack.c.h.b16 %v1038
        %v1302 = vunpack.c.l.b16 %v1039
        %v1303 = vunpack.c.h.b16 %v1039
        %v1304 = vunpack.c.l.b16 %v1040
        %v1305 = vunpack.c.h.b16 %v1040
        %v1306 = vunpack.c.l.b16 %v1041
        %v1307 = vunpack.c.h.b16 %v1041
        %v1308 = vunpack.c.l.b16 %v1042
        %v1309 = vunpack.c.h.b16 %v1042
        %v1310 = vunpack.c.l.b16 %v1043
        %v1311 = vunpack.c.h.b16 %v1043
        %v1312 = vunpack.c.l.b16 %v1044
        %v1313 = vunpack.c.h.b16 %v1044
        %v1314 = vunpack.c.l.b16 %v1045
        %v1315 = vunpack.c.h.b16 %v1045
        %v1316 = vunpack.c.l.b16 %v1046
        %v1317 = vunpack.c.h.b16 %v1046
        %v1318 = vunpack.c.l.b16 %v1047
        %v1319 = vunpack.c.h.b16 %v1047
        %v1320 = vunpack.c.l.b16 %v1048
        %v1321 = vunpack.c.h.b16 %v1048
        %v1322 = vunpack.c.l.b16 %v1049
        %v1323 = vunpack.c.h.b16 %v1049
        %v1324 = vunpack.c.l.b16 %v1050
        %v1325 = vunpack.c.h.b16 %v1050
        %v1326 = vunpack.c.l.b16 %v1051
        %v1327 = vunpack.c.h.b16 %v1051
        %v1328 = vunpack.c.l.b16 %v1052
        %v1329 = vunpack.c.h.b16 %v1052
        %v1330 = vunpack.c.l.b16 %v1053
        %v1331 = vunpack.c.h.b16 %v1053
        %v1332 = vunpack.c.l.b16 %v1054
        %v1333 = vunpack.c.h.b16 %v1054
        %v1334 = vunpack.c.l.b16 %v1055
        %v1335 = vunpack.c.h.b16 %v1055
        %v1336 = vunpack.c.l.b16 %v1056
        %v1337 = vunpack.c.h.b16 %v1056
        %v1338 = vunpack.c.l.b16 %v1057
        %v1339 = vunpack.c.h.b16 %v1057
        %v1340 = vunpack.c.l.b16 %v1058
        %v1341 = vunpack.c.h.b16 %v1058
        %v1342 = vunpack.c.l.b16 %v1059
        %v1343 = vunpack.c.h.b16 %v1059
        %v1344 = vunpack.c.l.b16 %v1060
        %v1345 = vunpack.c.h.b16 %v1060
        %v1346 = vunpack.c.l.b16 %v1061
        %v1347 = vunpack.c.h.b16 %v1061
        %v1348 = vunpack.c.l.b16 %v1062
        %v1349 = vunpack.c.h.b16 %v1062
        %v1350 = vunpack.c.l.b16 %v1063
        %v1351 = vunpack.c.h.b16 %v1063
        %v1352 = vunpack.c.l.b16 %v1064
        %v1353 = vunpack.c.h.b16 %v1064
        %v1354 = vunpack.c.l.b16 %v1065
        %v1355 = vunpack.c.h.b16 %v1065
        %v1356 = vunpack.c.l.b16 %v1066
        %v1357 = vunpack.c.h.b16 %v1066
        %v1358 = vunpack.c.l.b16 %v1067
        %v1359 = vunpack.c.h.b16 %v1067
        %v1360 = vunpack.c.l.b16 %v1068
        %v1361 = vunpack.c.h.b16 %v1068
        %v1362 = vunpack.c.l.b16 %v1069
        %v1363 = vunpack.c.h.b16 %v1069
        %v1364 = vunpack.c.l.b16 %v1070
        %v1365 = vunpack.c.h.b16 %v1070
        %v1366 = vunpack.c.l.b16 %v1071
        %v1367 = vunpack.c.h.b16 %v1071
        %v1368 = vunpack.c.l.b16 %v1072
        %v1369 = vunpack.c.h.b16 %v1072
        %v1370 = vunpack.c.l.b16 %v1073
        %v1371 = vunpack.c.h.b16 %v1073
        %v1372 = vunpack.c.l.b16 %v1074
        %v1373 = vunpack.c.h.b16 %v1074
        %v1374 = vunpack.c.l.b16 %v1075
        %v1375 = vunpack.c.h.b16 %v1075
        %v1376 = vunpack.c.l.b16 %v1076
        %v1377 = vunpack.c.h.b16 %v1076
        %v1378 = vunpack.c.l.b16 %v1077
        %v1379 = vunpack.c.h.b16 %v1077
        %v1380 = vunpack.c.l.b16 %v1078
        %v1381 = vunpack.c.h.b16 %v1078
        %v1382 = vunpack.c.l.b16 %v1079
        %v1383 = vunpack.c.h.b16 %v1079
        %v1384 = vunpack.c.l.b16 %v1080
        %v1385 = vunpack.c.h.b16 %v1080
        %v1386 = vunpack.c.l.b16 %v1081
        %v1387 = vunpack.c.h.b16 %v1081
        %v1388 = vunpack.c.l.b16 %v1082
        %v1389 = vunpack.c.h.b16 %v1082
        %v1390 = vunpack.c.l.b16 %v1083
        %v1391 = vunpack.c.h.b16 %v1083
        %v1392 = vunpack.c.l.b16 %v1084
        %v1393 = vunpack.c.h.b16 %v1084
        %v1394 = vunpack.c.l.b16 %v1085
        %v1395 = vunpack.c.h.b16 %v1085
        %v1396 = vunpack.c.l.b16 %v1086
        %v1397 = vunpack.c.h.b16 %v1086
        %v1398 = vunpack.c.l.b16 %v1087
        %v1399 = vunpack.c.h.b16 %v1087
        %v1400 = vunpack.c.l.b16 %v1088
        %v1401 = vunpack.c.h.b16 %v1088
        %v1402 = vunpack.c.l.b16 %v1089
        %v1403 = vunpack.c.h.b16 %v1089
        %v1404 = vunpack.c.l.b16 %v1090
        %v1405 = vunpack.c.h.b16 %v1090
        %v1406 = vunpack.c.l.b16 %v1091
        %v1407 = vunpack.c.h.b16 %v1091
        %v1408 = vunpack.c.l.b16 %v1092
        %v1409 = vunpack.c.h.b16 %v1092
        %v1410 = vunpack.c.l.b16 %v1093
        %v1411 = vunpack.c.h.b16 %v1093
        %v1412 = vunpack.c.l.b16 %v1094
        %v1413 = vunpack.c.h.b16 %v1094
        %v1414 = vunpack.c.l.b16 %v1095
        %v1415 = vunpack.c.h.b16 %v1095
        %v1416 = vunpack.c.l.b16 %v1096
        %v1417 = vunpack.c.h.b16 %v1096
        %v1418 = vunpack.c.l.b16 %v1097
        %v1419 = vunpack.c.h.b16 %v1097
        %v1420 = vunpack.c.l.b16 %v1098
        %v1421 = vunpack.c.h.b16 %v1098
        %v1422 = vunpack.c.l.b16 %v1099
        %v1423 = vunpack.c.h.b16 %v1099
        %v1424 = vunpack.c.l.b16 %v1100
        %v1425 = vunpack.c.h.b16 %v1100
        %v1426 = vunpack.c.l.b16 %v1101
        %v1427 = vunpack.c.h.b16 %v1101
        %v1428 = vunpack.c.l.b16 %v1102
        %v1429 = vunpack.c.h.b16 %v1102
        %v1430 = vunpack.c.l.b16 %v1103
        %v1431 = vunpack.c.h.b16 %v1103
        %v1432 = vunpack.c.l.b16 %v1104
        %v1433 = vunpack.c.h.b16 %v1104
        %v1434 = vunpack.c.l.b16 %v1105
        %v1435 = vunpack.c.h.b16 %v1105
        %v1436 = vunpack.c.l.b16 %v1106
        %v1437 = vunpack.c.h.b16 %v1106
        %v1438 = vunpack.c.l.b16 %v1107
        %v1439 = vunpack.c.h.b16 %v1107
        %v1440 = vunpack.c.l.b16 %v1108
        %v1441 = vunpack.c.h.b16 %v1108
        %v1442 = vunpack.c.l.b16 %v1109
        %v1443 = vunpack.c.h.b16 %v1109
        %v1444 = vunpack.c.l.b16 %v1110
        %v1445 = vunpack.c.h.b16 %v1110
        %v1446 = vunpack.c.l.b16 %v1111
        %v1447 = vunpack.c.h.b16 %v1111
        %v1448 = vunpack.c.l.b16 %v1112
        %v1449 = vunpack.c.h.b16 %v1112
        %v1450 = vunpack.c.l.b16 %v1113
        %v1451 = vunpack.c.h.b16 %v1113
        %v1452 = vunpack.c.l.b16 %v1114
        %v1453 = vunpack.c.h.b16 %v1114
        %v1454 = vunpack.c.l.b16 %v1115
        %v1455 = vunpack.c.h.b16 %v1115
        %v1456 = vunpack.c.l.b16 %v1116
        %v1457 = vunpack.c.h.b16 %v1116
        %v1458 = vunpack.c.l.b16 %v1117
        %v1459 = vunpack.c.h.b16 %v1117
        %v1460 = vunpack.c.l.b16 %v1118
        %v1461 = vunpack.c.h.b16 %v1118
        %v1462 = vunpack.c.l.b16 %v1119
        %v1463 = vunpack.c.h.b16 %v1119
        %v1464 = vunpack.c.l.b16 %v1120
        %v1465 = vunpack.c.h.b16 %v1120
        %v1466 = vunpack.c.l.b16 %v1121
        %v1467 = vunpack.c.h.b16 %v1121
        %v1468 = vunpack.c.l.b16 %v1122
        %v1469 = vunpack.c.h.b16 %v1122
        %v1470 = vunpack.c.l.b16 %v1123
        %v1471 = vunpack.c.h.b16 %v1123
        %v1472 = vunpack.c.l.b16 %v1124
        %v1473 = vunpack.c.h.b16 %v1124
        %v1474 = vunpack.c.l.b16 %v1125
        %v1475 = vunpack.c.h.b16 %v1125
        %v1476 = vunpack.c.l.b16 %v1126
        %v1477 = vunpack.c.h.b16 %v1126
        %v1478 = vunpack.c.l.b16 %v1127
        %v1479 = vunpack.c.h.b16 %v1127
        %v1480 = vunpack.c.l.b16 %v1128
        %v1481 = vunpack.c.h.b16 %v1128
        %v1482 = vunpack.c.l.b16 %v1129
        %v1483 = vunpack.c.h.b16 %v1129
        %v1484 = vunpack.c.l.b16 %v1130
        %v1485 = vunpack.c.h.b16 %v1130
        %v1486 = vunpack.c.l.b16 %v1131
        %v1487 = vunpack.c.h.b16 %v1131
        %v1488 = vunpack.c.l.b16 %v1132
        %v1489 = vunpack.c.h.b16 %v1132
        %v1490 = vunpack.c.l.b16 %v1133
        %v1491 = vunpack.c.h.b16 %v1133
        %v1492 = vunpack.c.l.b16 %v1134
        %v1493 = vunpack.c.h.b16 %v1134
        %v1494 = vunpack.c.l.b16 %v1135
        %v1495 = vunpack.c.h.b16 %v1135
        %v1496 = vunpack.c.l.b16 %v1136
        %v1497 = vunpack.c.h.b16 %v1136
        %v1498 = vunpack.c.l.b16 %v1137
        %v1499 = vunpack.c.h.b16 %v1137
        %v1500 = vunpack.c.l.b16 %v1138
        %v1501 = vunpack.c.h.b16 %v1138
        %v1502 = vunpack.c.l.b16 %v1139
        %v1503 = vunpack.c.h.b16 %v1139
        %v1504 = vunpack.c.l.b16 %v1140
        %v1505 = vunpack.c.h.b16 %v1140
        %v1506 = vunpack.c.l.b16 %v1141
        %v1507 = vunpack.c.h.b16 %v1141
        %v1508 = vunpack.c.l.b16 %v1142
        %v1509 = vunpack.c.h.b16 %v1142
        %v1510 = vunpack.c.l.b16 %v1143
        %v1511 = vunpack.c.h.b16 %v1143
        %v1512 = vunpack.c.l.b16 %v1144
        %v1513 = vunpack.c.h.b16 %v1144
        %v1514 = vunpack.c.l.b16 %v1145
        %v1515 = vunpack.c.h.b16 %v1145
        %v1516 = vunpack.c.l.b16 %v1146
        %v1517 = vunpack.c.h.b16 %v1146
        %v1518 = vunpack.c.l.b16 %v1147
        %v1519 = vunpack.c.h.b16 %v1147
        %v1520 = vunpack.c.l.b16 %v1148
        %v1521 = vunpack.c.h.b16 %v1148
        %v1522 = vunpack.c.l.b16 %v1149
        %v1523 = vunpack.c.h.b16 %v1149
        %v1524 = vunpack.c.l.b16 %v1150
        %v1525 = vunpack.c.h.b16 %v1150
        %v1526 = vunpack.c.l.b16 %v1151
        %v1527 = vunpack.c.h.b16 %v1151
        %v1528 = vunpack.c.l.b16 %v1152
        %v1529 = vunpack.c.h.b16 %v1152
        %v1530 = vunpack.c.l.b16 %v1153
        %v1531 = vunpack.c.h.b16 %v1153
        %v1532 = vunpack.c.l.b16 %v1154
        %v1533 = vunpack.c.h.b16 %v1154
        %v1534 = vunpack.c.l.b16 %v1155
        %v1535 = vunpack.c.h.b16 %v1155
        %v1536 = vunpack.c.l.b16 %v1156
        %v1537 = vunpack.c.h.b16 %v1156
        %v1538 = vunpack.c.l.b16 %v1157
        %v1539 = vunpack.c.h.b16 %v1157
        %v1540 = vunpack.c.l.b16 %v1158
        %v1541 = vunpack.c.h.b16 %v1158
        %v1542 = vunpack.c.l.b16 %v1159
        %v1543 = vunpack.c.h.b16 %v1159
        %v1544 = vpack.c.b16 %v1292, %v1288
        %v1545 = vpack.c.b16 %v1293, %v1289
        %v1546 = vpack.c.b16 %v1294, %v1290
        %v1547 = vpack.c.b16 %v1295, %v1291
        %v1548 = vpack.c.b16 %v1300, %v1296
        %v1549 = vpack.c.b16 %v1301, %v1297
        %v1550 = vpack.c.b16 %v1302, %v1298
        %v1551 = vpack.c.b16 %v1303, %v1299
        %v1552 = vpack.c.b16 %v1308, %v1304
        %v1553 = vpack.c.b16 %v1309, %v1305
        %v1554 = vpack.c.b16 %v1310, %v1306
        %v1555 = vpack.c.b16 %v1311, %v1307
        %v1556 = vpack.c.b16 %v1316, %v1312
        %v1557 = vpack.c.b16 %v1317, %v1313
        %v1558 = vpack.c.b16 %v1318, %v1314
        %v1559 = vpack.c.b16 %v1319, %v1315
        %v1560 = vpack.c.b16 %v1324, %v1320
        %v1561 = vpack.c.b16 %v1325, %v1321
        %v1562 = vpack.c.b16 %v1326, %v1322
        %v1563 = vpack.c.b16 %v1327, %v1323
        %v1564 = vpack.c.b16 %v1332, %v1328
        %v1565 = vpack.c.b16 %v1333, %v1329
        %v1566 = vpack.c.b16 %v1334, %v1330
        %v1567 = vpack.c.b16 %v1335, %v1331
        %v1568 = vpack.c.b16 %v1340, %v1336
        %v1569 = vpack.c.b16 %v1341, %v1337
        %v1570 = vpack.c.b16 %v1342, %v1338
        %v1571 = vpack.c.b16 %v1343, %v1339
        %v1572 = vpack.c.b16 %v1348, %v1344
        %v1573 = vpack.c.b16 %v1349, %v1345
        %v1574 = vpack.c.b16 %v1350, %v1346
        %v1575 = vpack.c.b16 %v1351, %v1347
        %v1576 = vpack.c.b16 %v1356, %v1352
        %v1577 = vpack.c.b16 %v1357, %v1353
        %v1578 = vpack.c.b16 %v1358, %v1354
        %v1579 = vpack.c.b16 %v1359, %v1355
        %v1580 = vpack.c.b16 %v1364, %v1360
        %v1581 = vpack.c.b16 %v1365, %v1361
        %v1582 = vpack.c.b16 %v1366, %v1362
        %v1583 = vpack.c.b16 %v1367, %v1363
        %v1584 = vpack.c.b16 %v1372, %v1368
        %v1585 = vpack.c.b16 %v1373, %v1369
        %v1586 = vpack.c.b16 %v1374, %v1370
        %v1587 = vpack.c.b16 %v1375, %v1371
        %v1588 = vpack.c.b16 %v1380, %v1376
        %v1589 = vpack.c.b16 %v1381, %v1377
        %v1590 = vpack.c.b16 %v1382, %v1378
        %v1591 = vpack.c.b16 %v1383, %v1379
        %v1592 = vpack.c.b16 %v1388, %v1384
        %v1593 = vpack.c.b16 %v1389, %v1385
        %v1594 = vpack.c.b16 %v1390, %v1386
        %v1595 = vpack.c.b16 %v1391, %v1387
        %v1596 = vpack.c.b16 %v1396, %v1392
        %v1597 = vpack.c.b16 %v1397, %v1393
        %v1598 = vpack.c.b16 %v1398, %v1394
        %v1599 = vpack.c.b16 %v1399, %v1395
        %v1600 = vpack.c.b16 %v1404, %v1400
        %v1601 = vpack.c.b16 %v1405, %v1401
        %v1602 = vpack.c.b16 %v1406, %v1402
        %v1603 = vpack.c.b16 %v1407, %v1403
        %v1604 = vpack.c.b16 %v1412, %v1408
        %v1605 = vpack.c.b16 %v1413, %v1409
        %v1606 = vpack.c.b16 %v1414, %v1410
        %v1607 = vpack.c.b16 %v1415, %v1411
        %v1608 = vpack.c.b16 %v1420, %v1416
        %v1609 = vpack.c.b16 %v1421, %v1417
        %v1610 = vpack.c.b16 %v1422, %v1418
        %v1611 = vpack.c.b16 %v1423, %v1419
        %v1612 = vpack.c.b16 %v1428, %v1424
        %v1613 = vpack.c.b16 %v1429, %v1425
        %v1614 = vpack.c.b16 %v1430, %v1426
        %v1615 = vpack.c.b16 %v1431, %v1427
        %v1616 = vpack.c.b16 %v1436, %v1432
        %v1617 = vpack.c.b16 %v1437, %v1433
        %v1618 = vpack.c.b16 %v1438, %v1434
        %v1619 = vpack.c.b16 %v1439, %v1435
        %v1620 = vpack.c.b16 %v1444, %v1440
        %v1621 = vpack.c.b16 %v1445, %v1441
        %v1622 = vpack.c.b16 %v1446, %v1442
        %v1623 = vpack.c.b16 %v1447, %v1443
        %v1624 = vpack.c.b16 %v1452, %v1448
        %v1625 = vpack.c.b16 %v1453, %v1449
        %v1626 = vpack.c.b16 %v1454, %v1450
        %v1627 = vpack.c.b16 %v1455, %v1451
        %v1628 = vpack.c.b16 %v1460, %v1456
        %v1629 = vpack.c.b16 %v1461, %v1457
        %v1630 = vpack.c.b16 %v1462, %v1458
        %v1631 = vpack.c.b16 %v1463, %v1459
        %v1632 = vpack.c.b16 %v1468, %v1464
        %v1633 = vpack.c.b16 %v1469, %v1465
        %v1634 = vpack.c.b16 %v1470, %v1466
        %v1635 = vpack.c.b16 %v1471, %v1467
        %v1636 = vpack.c.b16 %v1476, %v1472
        %v1637 = vpack.c.b16 %v1477, %v1473
        %v1638 = vpack.c.b16 %v1478, %v1474
        %v1639 = vpack.c.b16 %v1479, %v1475
        %v1640 = vpack.c.b16 %v1484, %v1480
        %v1641 = vpack.c.b16 %v1485, %v1481
        %v1642 = vpack.c.b16 %v1486, %v1482
        %v1643 = vpack.c.b16 %v1487, %v1483
        %v1644 = vpack.c.b16 %v1492, %v1488
        %v1645 = vpack.c.b16 %v1493, %v1489
        %v1646 = vpack.c.b16 %v1494, %v1490
        %v1647 = vpack.c.b16 %v1495, %v1491
        %v1648 = vpack.c.b16 %v1500, %v1496
        %v1649 = vpack.c.b16 %v1501, %v1497
        %v1650 = vpack.c.b16 %v1502, %v1498
        %v1651 = vpack.c.b16 %v1503, %v1499
        %v1652 = vpack.c.b16 %v1508, %v1504
        %v1653 = vpack.c.b16 %v1509, %v1505
        %v1654 = vpack.c.b16 %v1510, %v1506
        %v1655 = vpack.c.b16 %v1511, %v1507
        %v1656 = vpack.c.b16 %v1516, %v1512
        %v1657 = vpack.c.b16 %v1517, %v1513
        %v1658 = vpack.c.b16 %v1518, %v1514
        %v1659 = vpack.c.b16 %v1519, %v1515
        %v1660 = vpack.c.b16 %v1524, %v1520
        %v1661 = vpack.c.b16 %v1525, %v1521
        %v1662 = vpack.c.b16 %v1526, %v1522
        %v1663 = vpack.c.b16 %v1527, %v1523
        %v1664 = vpack.c.b16 %v1532, %v1528
        %v1665 = vpack.c.b16 %v1533, %v1529
        %v1666 = vpack.c.b16 %v1534, %v1530
        %v1667 = vpack.c.b16 %v1535, %v1531
        %v1668 = vpack.c.b16 %v1540, %v1536
        %v1669 = vpack.c.b16 %v1541, %v1537
        %v1670 = vpack.c.b16 %v1542, %v1538
        %v1671 = vpack.c.b16 %v1543, %v1539
        %1800 = vmatpush.bf16.msra.mxu0 %v1572
        %1801 = vmatpush.bf16.msra.mxu0 %v1568
        %1802 = vmatpush.bf16.msra.mxu0 %v1564
        %1803 = vmatpush.bf16.msra.mxu0 %v1560
        %1804 = vmatpush.bf16.msra.mxu0 %v1556
        %1805 = vmatpush.bf16.msra.mxu0 %v1552
        %1806 = vmatpush.bf16.msra.mxu0 %v1548
        %1807 = vmatpush.bf16.msra.mxu0 %v1544
        %1808 = vmatmul.bf16.gmra.mxu0 %v968
        %v1809 = vpop.f32.mrf.mxu0
        %v1810 = vadd.f32 0.0, %v1809
        %v1811 = vpop.f32.mrf.mxu0
        %v1812 = vadd.f32 0.0, %v1811
        %1813 = vmatmul.bf16.gmra.mxu0 %v972
        %v1814 = vpop.f32.mrf.mxu0
        %v1815 = vadd.f32 0.0, %v1814
        %v1816 = vpop.f32.mrf.mxu0
        %v1817 = vadd.f32 0.0, %v1816
        %1818 = vmatmul.bf16.gmra.mxu0 %v976
        %v1819 = vpop.f32.mrf.mxu0
        %v1820 = vadd.f32 0.0, %v1819
        %v1821 = vpop.f32.mrf.mxu0
        %v1822 = vadd.f32 0.0, %v1821
        %1823 = vmatmul.bf16.gmra.mxu0 %v980
        %v1824 = vpop.f32.mrf.mxu0
        %v1825 = vadd.f32 0.0, %v1824
        %v1826 = vpop.f32.mrf.mxu0
        %v1827 = vadd.f32 0.0, %v1826
        %1828 = vmatmul.bf16.gmra.mxu0 %v984
        %v1829 = vpop.f32.mrf.mxu0
        %v1830 = vadd.f32 0.0, %v1829
        %v1831 = vpop.f32.mrf.mxu0
        %v1832 = vadd.f32 0.0, %v1831
        %1833 = vmatmul.bf16.gmra.mxu0 %v988
        %v1834 = vpop.f32.mrf.mxu0
        %v1835 = vadd.f32 0.0, %v1834
        %v1836 = vpop.f32.mrf.mxu0
        %v1837 = vadd.f32 0.0, %v1836
        %1838 = vmatmul.bf16.gmra.mxu0 %v992
        %v1839 = vpop.f32.mrf.mxu0
        %v1840 = vadd.f32 0.0, %v1839
        %v1841 = vpop.f32.mrf.mxu0
        %v1842 = vadd.f32 0.0, %v1841
        %1843 = vmatmul.bf16.gmra.mxu0 %v996
        %v1844 = vpop.f32.mrf.mxu0
        %v1845 = vadd.f32 0.0, %v1844
        %v1846 = vpop.f32.mrf.mxu0
        %v1847 = vadd.f32 0.0, %v1846
        %1848 = vmatmul.bf16.gmra.mxu0 %v1000
        %v1849 = vpop.f32.mrf.mxu0
        %v1850 = vadd.f32 0.0, %v1849
        %v1851 = vpop.f32.mrf.mxu0
        %v1852 = vadd.f32 0.0, %v1851
        %1853 = vmatmul.bf16.gmra.mxu0 %v1004
        %v1854 = vpop.f32.mrf.mxu0
        %v1855 = vadd.f32 0.0, %v1854
        %v1856 = vpop.f32.mrf.mxu0
        %v1857 = vadd.f32 0.0, %v1856
        %1858 = vmatmul.bf16.gmra.mxu0 %v1008
        %v1859 = vpop.f32.mrf.mxu0
        %v1860 = vadd.f32 0.0, %v1859
        %v1861 = vpop.f32.mrf.mxu0
        %v1862 = vadd.f32 0.0, %v1861
        %1863 = vmatmul.bf16.gmra.mxu0 %v1012
        %v1864 = vpop.f32.mrf.mxu0
        %v1865 = vadd.f32 0.0, %v1864
        %v1866 = vpop.f32.mrf.mxu0
        %v1867 = vadd.f32 0.0, %v1866
        %1868 = vmatmul.bf16.gmra.mxu0 %v1016
        %v1869 = vpop.f32.mrf.mxu0
        %v1870 = vadd.f32 0.0, %v1869
        %v1871 = vpop.f32.mrf.mxu0
        %v1872 = vadd.f32 0.0, %v1871
        %1873 = vmatmul.bf16.gmra.mxu0 %v1020
        %v1874 = vpop.f32.mrf.mxu0
        %v1875 = vadd.f32 0.0, %v1874
        %v1876 = vpop.f32.mrf.mxu0
        %v1877 = vadd.f32 0.0, %v1876
        %1878 = vmatmul.bf16.gmra.mxu0 %v1024
        %v1879 = vpop.f32.mrf.mxu0
        %v1880 = vadd.f32 0.0, %v1879
        %v1881 = vpop.f32.mrf.mxu0
        %v1882 = vadd.f32 0.0, %v1881
        %1883 = vmatmul.bf16.gmra.mxu0 %v1028
        %v1884 = vpop.f32.mrf.mxu0
        %v1885 = vadd.f32 0.0, %v1884
        %v1886 = vpop.f32.mrf.mxu0
        %v1887 = vadd.f32 0.0, %v1886
        %1888 = vdwg.mxu0
        %1889 = vmatpush.bf16.msra.mxu0 %v1604
        %1890 = vmatpush.bf16.msra.mxu0 %v1600
        %1891 = vmatpush.bf16.msra.mxu0 %v1596
        %1892 = vmatpush.bf16.msra.mxu0 %v1592
        %1893 = vmatpush.bf16.msra.mxu0 %v1588
        %1894 = vmatpush.bf16.msra.mxu0 %v1584
        %1895 = vmatpush.bf16.msra.mxu0 %v1580
        %1896 = vmatpush.bf16.msra.mxu0 %v1576
        %1897 = vmatmul.bf16.gmra.mxu0 %v969
        %v1898 = vpop.f32.mrf.mxu0
        %v1899 = vadd.f32 %v1810, %v1898
        %v1900 = vpop.f32.mrf.mxu0
        %v1901 = vadd.f32 %v1812, %v1900
        %1902 = vmatmul.bf16.gmra.mxu0 %v973
        %v1903 = vpop.f32.mrf.mxu0
        %v1904 = vadd.f32 %v1815, %v1903
        %v1905 = vpop.f32.mrf.mxu0
        %v1906 = vadd.f32 %v1817, %v1905
        %1907 = vmatmul.bf16.gmra.mxu0 %v977
        %v1908 = vpop.f32.mrf.mxu0
        %v1909 = vadd.f32 %v1820, %v1908
        %v1910 = vpop.f32.mrf.mxu0
        %v1911 = vadd.f32 %v1822, %v1910
        %1912 = vmatmul.bf16.gmra.mxu0 %v981
        %v1913 = vpop.f32.mrf.mxu0
        %v1914 = vadd.f32 %v1825, %v1913
        %v1915 = vpop.f32.mrf.mxu0
        %v1916 = vadd.f32 %v1827, %v1915
        %1917 = vmatmul.bf16.gmra.mxu0 %v985
        %v1918 = vpop.f32.mrf.mxu0
        %v1919 = vadd.f32 %v1830, %v1918
        %v1920 = vpop.f32.mrf.mxu0
        %v1921 = vadd.f32 %v1832, %v1920
        %1922 = vmatmul.bf16.gmra.mxu0 %v989
        %v1923 = vpop.f32.mrf.mxu0
        %v1924 = vadd.f32 %v1835, %v1923
        %v1925 = vpop.f32.mrf.mxu0
        %v1926 = vadd.f32 %v1837, %v1925
        %1927 = vmatmul.bf16.gmra.mxu0 %v993
        %v1928 = vpop.f32.mrf.mxu0
        %v1929 = vadd.f32 %v1840, %v1928
        %v1930 = vpop.f32.mrf.mxu0
        %v1931 = vadd.f32 %v1842, %v1930
        %1932 = vmatmul.bf16.gmra.mxu0 %v997
        %v1933 = vpop.f32.mrf.mxu0
        %v1934 = vadd.f32 %v1845, %v1933
        %v1935 = vpop.f32.mrf.mxu0
        %v1936 = vadd.f32 %v1847, %v1935
        %1937 = vmatmul.bf16.gmra.mxu0 %v1001
        %v1938 = vpop.f32.mrf.mxu0
        %v1939 = vadd.f32 %v1850, %v1938
        %v1940 = vpop.f32.mrf.mxu0
        %v1941 = vadd.f32 %v1852, %v1940
        %1942 = vmatmul.bf16.gmra.mxu0 %v1005
        %v1943 = vpop.f32.mrf.mxu0
        %v1944 = vadd.f32 %v1855, %v1943
        %v1945 = vpop.f32.mrf.mxu0
        %v1946 = vadd.f32 %v1857, %v1945
        %1947 = vmatmul.bf16.gmra.mxu0 %v1009
        %v1948 = vpop.f32.mrf.mxu0
        %v1949 = vadd.f32 %v1860, %v1948
        %v1950 = vpop.f32.mrf.mxu0
        %v1951 = vadd.f32 %v1862, %v1950
        %1952 = vmatmul.bf16.gmra.mxu0 %v1013
        %v1953 = vpop.f32.mrf.mxu0
        %v1954 = vadd.f32 %v1865, %v1953
        %v1955 = vpop.f32.mrf.mxu0
        %v1956 = vadd.f32 %v1867, %v1955
        %1957 = vmatmul.bf16.gmra.mxu0 %v1017
        %v1958 = vpop.f32.mrf.mxu0
        %v1959 = vadd.f32 %v1870, %v1958
        %v1960 = vpop.f32.mrf.mxu0
        %v1961 = vadd.f32 %v1872, %v1960
        %1962 = vmatmul.bf16.gmra.mxu0 %v1021
        %v1963 = vpop.f32.mrf.mxu0
        %v1964 = vadd.f32 %v1875, %v1963
        %v1965 = vpop.f32.mrf.mxu0
        %v1966 = vadd.f32 %v1877, %v1965
        %1967 = vmatmul.bf16.gmra.mxu0 %v1025
        %v1968 = vpop.f32.mrf.mxu0
        %v1969 = vadd.f32 %v1880, %v1968
        %v1970 = vpop.f32.mrf.mxu0
        %v1971 = vadd.f32 %v1882, %v1970
        %1972 = vmatmul.bf16.gmra.mxu0 %v1029
        %v1973 = vpop.f32.mrf.mxu0
        %v1974 = vadd.f32 %v1885, %v1973
        %v1975 = vpop.f32.mrf.mxu0
        %v1976 = vadd.f32 %v1887, %v1975
        %1977 = vdwg.mxu0
        %1978 = vmatpush.bf16.msra.mxu0 %v1636
        %1979 = vmatpush.bf16.msra.mxu0 %v1632
        %1980 = vmatpush.bf16.msra.mxu0 %v1628
        %1981 = vmatpush.bf16.msra.mxu0 %v1624
        %1982 = vmatpush.bf16.msra.mxu0 %v1620
        %1983 = vmatpush.bf16.msra.mxu0 %v1616
        %1984 = vmatpush.bf16.msra.mxu0 %v1612
        %1985 = vmatpush.bf16.msra.mxu0 %v1608
        %1986 = vmatmul.bf16.gmra.mxu0 %v970
        %v1987 = vpop.f32.mrf.mxu0
        %v1988 = vadd.f32 %v1899, %v1987
        %v1989 = vpop.f32.mrf.mxu0
        %v1990 = vadd.f32 %v1901, %v1989
        %1991 = vmatmul.bf16.gmra.mxu0 %v974
        %v1992 = vpop.f32.mrf.mxu0
        %v1993 = vadd.f32 %v1904, %v1992
        %v1994 = vpop.f32.mrf.mxu0
        %v1995 = vadd.f32 %v1906, %v1994
        %1996 = vmatmul.bf16.gmra.mxu0 %v978
        %v1997 = vpop.f32.mrf.mxu0
        %v1998 = vadd.f32 %v1909, %v1997
        %v1999 = vpop.f32.mrf.mxu0
        %v2000 = vadd.f32 %v1911, %v1999
        %2001 = vmatmul.bf16.gmra.mxu0 %v982
        %v2002 = vpop.f32.mrf.mxu0
        %v2003 = vadd.f32 %v1914, %v2002
        %v2004 = vpop.f32.mrf.mxu0
        %v2005 = vadd.f32 %v1916, %v2004
        %2006 = vmatmul.bf16.gmra.mxu0 %v986
        %v2007 = vpop.f32.mrf.mxu0
        %v2008 = vadd.f32 %v1919, %v2007
        %v2009 = vpop.f32.mrf.mxu0
        %v2010 = vadd.f32 %v1921, %v2009
        %2011 = vmatmul.bf16.gmra.mxu0 %v990
        %v2012 = vpop.f32.mrf.mxu0
        %v2013 = vadd.f32 %v1924, %v2012
        %v2014 = vpop.f32.mrf.mxu0
        %v2015 = vadd.f32 %v1926, %v2014
        %2016 = vmatmul.bf16.gmra.mxu0 %v994
        %v2017 = vpop.f32.mrf.mxu0
        %v2018 = vadd.f32 %v1929, %v2017
        %v2019 = vpop.f32.mrf.mxu0
        %v2020 = vadd.f32 %v1931, %v2019
        %2021 = vmatmul.bf16.gmra.mxu0 %v998
        %v2022 = vpop.f32.mrf.mxu0
        %v2023 = vadd.f32 %v1934, %v2022
        %v2024 = vpop.f32.mrf.mxu0
        %v2025 = vadd.f32 %v1936, %v2024
        %2026 = vmatmul.bf16.gmra.mxu0 %v1002
        %v2027 = vpop.f32.mrf.mxu0
        %v2028 = vadd.f32 %v1939, %v2027
        %v2029 = vpop.f32.mrf.mxu0
        %v2030 = vadd.f32 %v1941, %v2029
        %2031 = vmatmul.bf16.gmra.mxu0 %v1006
        %v2032 = vpop.f32.mrf.mxu0
        %v2033 = vadd.f32 %v1944, %v2032
        %v2034 = vpop.f32.mrf.mxu0
        %v2035 = vadd.f32 %v1946, %v2034
        %2036 = vmatmul.bf16.gmra.mxu0 %v1010
        %v2037 = vpop.f32.mrf.mxu0
        %v2038 = vadd.f32 %v1949, %v2037
        %v2039 = vpop.f32.mrf.mxu0
        %v2040 = vadd.f32 %v1951, %v2039
        %2041 = vmatmul.bf16.gmra.mxu0 %v1014
        %v2042 = vpop.f32.mrf.mxu0
        %v2043 = vadd.f32 %v1954, %v2042
        %v2044 = vpop.f32.mrf.mxu0
        %v2045 = vadd.f32 %v1956, %v2044
        %2046 = vmatmul.bf16.gmra.mxu0 %v1018
        %v2047 = vpop.f32.mrf.mxu0
        %v2048 = vadd.f32 %v1959, %v2047
        %v2049 = vpop.f32.mrf.mxu0
        %v2050 = vadd.f32 %v1961, %v2049
        %2051 = vmatmul.bf16.gmra.mxu0 %v1022
        %v2052 = vpop.f32.mrf.mxu0
        %v2053 = vadd.f32 %v1964, %v2052
        %v2054 = vpop.f32.mrf.mxu0
        %v2055 = vadd.f32 %v1966, %v2054
        %2056 = vmatmul.bf16.gmra.mxu0 %v1026
        %v2057 = vpop.f32.mrf.mxu0
        %v2058 = vadd.f32 %v1969, %v2057
        %v2059 = vpop.f32.mrf.mxu0
        %v2060 = vadd.f32 %v1971, %v2059
        %2061 = vmatmul.bf16.gmra.mxu0 %v1030
        %v2062 = vpop.f32.mrf.mxu0
        %v2063 = vadd.f32 %v1974, %v2062
        %v2064 = vpop.f32.mrf.mxu0
        %v2065 = vadd.f32 %v1976, %v2064
        %2066 = vdwg.mxu0
        %2067 = vmatpush.bf16.msra.mxu0 %v1668
        %2068 = vmatpush.bf16.msra.mxu0 %v1664
        %2069 = vmatpush.bf16.msra.mxu0 %v1660
        %2070 = vmatpush.bf16.msra.mxu0 %v1656
        %2071 = vmatpush.bf16.msra.mxu0 %v1652
        %2072 = vmatpush.bf16.msra.mxu0 %v1648
        %2073 = vmatpush.bf16.msra.mxu0 %v1644
        %2074 = vmatpush.bf16.msra.mxu0 %v1640
        %2075 = vmatmul.bf16.gmra.mxu0 %v971
        %v2076 = vpop.f32.mrf.mxu0
        %v2077 = vadd.f32 %v1988, %v2076
        %v2078 = vpop.f32.mrf.mxu0
        %v2079 = vadd.f32 %v1990, %v2078
        %2080 = vmatmul.bf16.gmra.mxu0 %v975
        %v2081 = vpop.f32.mrf.mxu0
        %v2082 = vadd.f32 %v1993, %v2081
        %v2083 = vpop.f32.mrf.mxu0
        %v2084 = vadd.f32 %v1995, %v2083
        %2085 = vmatmul.bf16.gmra.mxu0 %v979
        %v2086 = vpop.f32.mrf.mxu0
        %v2087 = vadd.f32 %v1998, %v2086
        %v2088 = vpop.f32.mrf.mxu0
        %v2089 = vadd.f32 %v2000, %v2088
        %2090 = vmatmul.bf16.gmra.mxu0 %v983
        %v2091 = vpop.f32.mrf.mxu0
        %v2092 = vadd.f32 %v2003, %v2091
        %v2093 = vpop.f32.mrf.mxu0
        %v2094 = vadd.f32 %v2005, %v2093
        %2095 = vmatmul.bf16.gmra.mxu0 %v987
        %v2096 = vpop.f32.mrf.mxu0
        %v2097 = vadd.f32 %v2008, %v2096
        %v2098 = vpop.f32.mrf.mxu0
        %v2099 = vadd.f32 %v2010, %v2098
        %2100 = vmatmul.bf16.gmra.mxu0 %v991
        %v2101 = vpop.f32.mrf.mxu0
        %v2102 = vadd.f32 %v2013, %v2101
        %v2103 = vpop.f32.mrf.mxu0
        %v2104 = vadd.f32 %v2015, %v2103
        %2105 = vmatmul.bf16.gmra.mxu0 %v995
        %v2106 = vpop.f32.mrf.mxu0
        %v2107 = vadd.f32 %v2018, %v2106
        %v2108 = vpop.f32.mrf.mxu0
        %v2109 = vadd.f32 %v2020, %v2108
        %2110 = vmatmul.bf16.gmra.mxu0 %v999
        %v2111 = vpop.f32.mrf.mxu0
        %v2112 = vadd.f32 %v2023, %v2111
        %v2113 = vpop.f32.mrf.mxu0
        %v2114 = vadd.f32 %v2025, %v2113
        %2115 = vmatmul.bf16.gmra.mxu0 %v1003
        %v2116 = vpop.f32.mrf.mxu0
        %v2117 = vadd.f32 %v2028, %v2116
        %v2118 = vpop.f32.mrf.mxu0
        %v2119 = vadd.f32 %v2030, %v2118
        %2120 = vmatmul.bf16.gmra.mxu0 %v1007
        %v2121 = vpop.f32.mrf.mxu0
        %v2122 = vadd.f32 %v2033, %v2121
        %v2123 = vpop.f32.mrf.mxu0
        %v2124 = vadd.f32 %v2035, %v2123
        %2125 = vmatmul.bf16.gmra.mxu0 %v1011
        %v2126 = vpop.f32.mrf.mxu0
        %v2127 = vadd.f32 %v2038, %v2126
        %v2128 = vpop.f32.mrf.mxu0
        %v2129 = vadd.f32 %v2040, %v2128
        %2130 = vmatmul.bf16.gmra.mxu0 %v1015
        %v2131 = vpop.f32.mrf.mxu0
        %v2132 = vadd.f32 %v2043, %v2131
        %v2133 = vpop.f32.mrf.mxu0
        %v2134 = vadd.f32 %v2045, %v2133
        %2135 = vmatmul.bf16.gmra.mxu0 %v1019
        %v2136 = vpop.f32.mrf.mxu0
        %v2137 = vadd.f32 %v2048, %v2136
        %v2138 = vpop.f32.mrf.mxu0
        %v2139 = vadd.f32 %v2050, %v2138
        %2140 = vmatmul.bf16.gmra.mxu0 %v1023
        %v2141 = vpop.f32.mrf.mxu0
        %v2142 = vadd.f32 %v2053, %v2141
        %v2143 = vpop.f32.mrf.mxu0
        %v2144 = vadd.f32 %v2055, %v2143
        %2145 = vmatmul.bf16.gmra.mxu0 %v1027
        %v2146 = vpop.f32.mrf.mxu0
        %v2147 = vadd.f32 %v2058, %v2146
        %v2148 = vpop.f32.mrf.mxu0
        %v2149 = vadd.f32 %v2060, %v2148
        %2150 = vmatmul.bf16.gmra.mxu0 %v1031
        %v2151 = vpop.f32.mrf.mxu0
        %v2152 = vadd.f32 %v2063, %v2151
        %v2153 = vpop.f32.mrf.mxu0
        %v2154 = vadd.f32 %v2065, %v2153
        %2155 = vdwg.mxu0
        %2156 = vmatpush.bf16.msra.mxu0 %v1573
        %2157 = vmatpush.bf16.msra.mxu0 %v1569
        %2158 = vmatpush.bf16.msra.mxu0 %v1565
        %2159 = vmatpush.bf16.msra.mxu0 %v1561
        %2160 = vmatpush.bf16.msra.mxu0 %v1557
        %2161 = vmatpush.bf16.msra.mxu0 %v1553
        %2162 = vmatpush.bf16.msra.mxu0 %v1549
        %2163 = vmatpush.bf16.msra.mxu0 %v1545
        %2164 = vmatmul.bf16.gmra.mxu0 %v968
        %v2165 = vpop.f32.mrf.mxu0
        %v2166 = vadd.f32 0.0, %v2165
        %v2167 = vpop.f32.mrf.mxu0
        %v2168 = vadd.f32 0.0, %v2167
        %2169 = vmatmul.bf16.gmra.mxu0 %v972
        %v2170 = vpop.f32.mrf.mxu0
        %v2171 = vadd.f32 0.0, %v2170
        %v2172 = vpop.f32.mrf.mxu0
        %v2173 = vadd.f32 0.0, %v2172
        %2174 = vmatmul.bf16.gmra.mxu0 %v976
        %v2175 = vpop.f32.mrf.mxu0
        %v2176 = vadd.f32 0.0, %v2175
        %v2177 = vpop.f32.mrf.mxu0
        %v2178 = vadd.f32 0.0, %v2177
        %2179 = vmatmul.bf16.gmra.mxu0 %v980
        %v2180 = vpop.f32.mrf.mxu0
        %v2181 = vadd.f32 0.0, %v2180
        %v2182 = vpop.f32.mrf.mxu0
        %v2183 = vadd.f32 0.0, %v2182
        %2184 = vmatmul.bf16.gmra.mxu0 %v984
        %v2185 = vpop.f32.mrf.mxu0
        %v2186 = vadd.f32 0.0, %v2185
        %v2187 = vpop.f32.mrf.mxu0
        %v2188 = vadd.f32 0.0, %v2187
        %2189 = vmatmul.bf16.gmra.mxu0 %v988
        %v2190 = vpop.f32.mrf.mxu0
        %v2191 = vadd.f32 0.0, %v2190
        %v2192 = vpop.f32.mrf.mxu0
        %v2193 = vadd.f32 0.0, %v2192
        %2194 = vmatmul.bf16.gmra.mxu0 %v992
        %v2195 = vpop.f32.mrf.mxu0
        %v2196 = vadd.f32 0.0, %v2195
        %v2197 = vpop.f32.mrf.mxu0
        %v2198 = vadd.f32 0.0, %v2197
        %2199 = vmatmul.bf16.gmra.mxu0 %v996
        %v2200 = vpop.f32.mrf.mxu0
        %v2201 = vadd.f32 0.0, %v2200
        %v2202 = vpop.f32.mrf.mxu0
        %v2203 = vadd.f32 0.0, %v2202
        %2204 = vmatmul.bf16.gmra.mxu0 %v1000
        %v2205 = vpop.f32.mrf.mxu0
        %v2206 = vadd.f32 0.0, %v2205
        %v2207 = vpop.f32.mrf.mxu0
        %v2208 = vadd.f32 0.0, %v2207
        %2209 = vmatmul.bf16.gmra.mxu0 %v1004
        %v2210 = vpop.f32.mrf.mxu0
        %v2211 = vadd.f32 0.0, %v2210
        %v2212 = vpop.f32.mrf.mxu0
        %v2213 = vadd.f32 0.0, %v2212
        %2214 = vmatmul.bf16.gmra.mxu0 %v1008
        %v2215 = vpop.f32.mrf.mxu0
        %v2216 = vadd.f32 0.0, %v2215
        %v2217 = vpop.f32.mrf.mxu0
        %v2218 = vadd.f32 0.0, %v2217
        %2219 = vmatmul.bf16.gmra.mxu0 %v1012
        %v2220 = vpop.f32.mrf.mxu0
        %v2221 = vadd.f32 0.0, %v2220
        %v2222 = vpop.f32.mrf.mxu0
        %v2223 = vadd.f32 0.0, %v2222
        %2224 = vmatmul.bf16.gmra.mxu0 %v1016
        %v2225 = vpop.f32.mrf.mxu0
        %v2226 = vadd.f32 0.0, %v2225
        %v2227 = vpop.f32.mrf.mxu0
        %v2228 = vadd.f32 0.0, %v2227
        %2229 = vmatmul.bf16.gmra.mxu0 %v1020
        %v2230 = vpop.f32.mrf.mxu0
        %v2231 = vadd.f32 0.0, %v2230
        %v2232 = vpop.f32.mrf.mxu0
        %v2233 = vadd.f32 0.0, %v2232
        %2234 = vmatmul.bf16.gmra.mxu0 %v1024
        %v2235 = vpop.f32.mrf.mxu0
        %v2236 = vadd.f32 0.0, %v2235
        %v2237 = vpop.f32.mrf.mxu0
        %v2238 = vadd.f32 0.0, %v2237
        %2239 = vmatmul.bf16.gmra.mxu0 %v1028
        %v2240 = vpop.f32.mrf.mxu0
        %v2241 = vadd.f32 0.0, %v2240
        %v2242 = vpop.f32.mrf.mxu0
        %v2243 = vadd.f32 0.0, %v2242
        %2244 = vdwg.mxu0
        %2245 = vmatpush.bf16.msra.mxu0 %v1605
        %2246 = vmatpush.bf16.msra.mxu0 %v1601
        %2247 = vmatpush.bf16.msra.mxu0 %v1597
        %2248 = vmatpush.bf16.msra.mxu0 %v1593
        %2249 = vmatpush.bf16.msra.mxu0 %v1589
        %2250 = vmatpush.bf16.msra.mxu0 %v1585
        %2251 = vmatpush.bf16.msra.mxu0 %v1581
        %2252 = vmatpush.bf16.msra.mxu0 %v1577
        %2253 = vmatmul.bf16.gmra.mxu0 %v969
        %v2254 = vpop.f32.mrf.mxu0
        %v2255 = vadd.f32 %v2166, %v2254
        %v2256 = vpop.f32.mrf.mxu0
        %v2257 = vadd.f32 %v2168, %v2256
        %2258 = vmatmul.bf16.gmra.mxu0 %v973
        %v2259 = vpop.f32.mrf.mxu0
        %v2260 = vadd.f32 %v2171, %v2259
        %v2261 = vpop.f32.mrf.mxu0
        %v2262 = vadd.f32 %v2173, %v2261
        %2263 = vmatmul.bf16.gmra.mxu0 %v977
        %v2264 = vpop.f32.mrf.mxu0
        %v2265 = vadd.f32 %v2176, %v2264
        %v2266 = vpop.f32.mrf.mxu0
        %v2267 = vadd.f32 %v2178, %v2266
        %2268 = vmatmul.bf16.gmra.mxu0 %v981
        %v2269 = vpop.f32.mrf.mxu0
        %v2270 = vadd.f32 %v2181, %v2269
        %v2271 = vpop.f32.mrf.mxu0
        %v2272 = vadd.f32 %v2183, %v2271
        %2273 = vmatmul.bf16.gmra.mxu0 %v985
        %v2274 = vpop.f32.mrf.mxu0
        %v2275 = vadd.f32 %v2186, %v2274
        %v2276 = vpop.f32.mrf.mxu0
        %v2277 = vadd.f32 %v2188, %v2276
        %2278 = vmatmul.bf16.gmra.mxu0 %v989
        %v2279 = vpop.f32.mrf.mxu0
        %v2280 = vadd.f32 %v2191, %v2279
        %v2281 = vpop.f32.mrf.mxu0
        %v2282 = vadd.f32 %v2193, %v2281
        %2283 = vmatmul.bf16.gmra.mxu0 %v993
        %v2284 = vpop.f32.mrf.mxu0
        %v2285 = vadd.f32 %v2196, %v2284
        %v2286 = vpop.f32.mrf.mxu0
        %v2287 = vadd.f32 %v2198, %v2286
        %2288 = vmatmul.bf16.gmra.mxu0 %v997
        %v2289 = vpop.f32.mrf.mxu0
        %v2290 = vadd.f32 %v2201, %v2289
        %v2291 = vpop.f32.mrf.mxu0
        %v2292 = vadd.f32 %v2203, %v2291
        %2293 = vmatmul.bf16.gmra.mxu0 %v1001
        %v2294 = vpop.f32.mrf.mxu0
        %v2295 = vadd.f32 %v2206, %v2294
        %v2296 = vpop.f32.mrf.mxu0
        %v2297 = vadd.f32 %v2208, %v2296
        %2298 = vmatmul.bf16.gmra.mxu0 %v1005
        %v2299 = vpop.f32.mrf.mxu0
        %v2300 = vadd.f32 %v2211, %v2299
        %v2301 = vpop.f32.mrf.mxu0
        %v2302 = vadd.f32 %v2213, %v2301
        %2303 = vmatmul.bf16.gmra.mxu0 %v1009
        %v2304 = vpop.f32.mrf.mxu0
        %v2305 = vadd.f32 %v2216, %v2304
        %v2306 = vpop.f32.mrf.mxu0
        %v2307 = vadd.f32 %v2218, %v2306
        %2308 = vmatmul.bf16.gmra.mxu0 %v1013
        %v2309 = vpop.f32.mrf.mxu0
        %v2310 = vadd.f32 %v2221, %v2309
        %v2311 = vpop.f32.mrf.mxu0
        %v2312 = vadd.f32 %v2223, %v2311
        %2313 = vmatmul.bf16.gmra.mxu0 %v1017
        %v2314 = vpop.f32.mrf.mxu0
        %v2315 = vadd.f32 %v2226, %v2314
        %v2316 = vpop.f32.mrf.mxu0
        %v2317 = vadd.f32 %v2228, %v2316
        %2318 = vmatmul.bf16.gmra.mxu0 %v1021
        %v2319 = vpop.f32.mrf.mxu0
        %v2320 = vadd.f32 %v2231, %v2319
        %v2321 = vpop.f32.mrf.mxu0
        %v2322 = vadd.f32 %v2233, %v2321
        %2323 = vmatmul.bf16.gmra.mxu0 %v1025
        %v2324 = vpop.f32.mrf.mxu0
        %v2325 = vadd.f32 %v2236, %v2324
        %v2326 = vpop.f32.mrf.mxu0
        %v2327 = vadd.f32 %v2238, %v2326
        %2328 = vmatmul.bf16.gmra.mxu0 %v1029
        %v2329 = vpop.f32.mrf.mxu0
        %v2330 = vadd.f32 %v2241, %v2329
        %v2331 = vpop.f32.mrf.mxu0
        %v2332 = vadd.f32 %v2243, %v2331
        %2333 = vdwg.mxu0
        %2334 = vmatpush.bf16.msra.mxu0 %v1637
        %2335 = vmatpush.bf16.msra.mxu0 %v1633
        %2336 = vmatpush.bf16.msra.mxu0 %v1629
        %2337 = vmatpush.bf16.msra.mxu0 %v1625
        %2338 = vmatpush.bf16.msra.mxu0 %v1621
        %2339 = vmatpush.bf16.msra.mxu0 %v1617
        %2340 = vmatpush.bf16.msra.mxu0 %v1613
        %2341 = vmatpush.bf16.msra.mxu0 %v1609
        %2342 = vmatmul.bf16.gmra.mxu0 %v970
        %v2343 = vpop.f32.mrf.mxu0
        %v2344 = vadd.f32 %v2255, %v2343
        %v2345 = vpop.f32.mrf.mxu0
        %v2346 = vadd.f32 %v2257, %v2345
        %2347 = vmatmul.bf16.gmra.mxu0 %v974
        %v2348 = vpop.f32.mrf.mxu0
        %v2349 = vadd.f32 %v2260, %v2348
        %v2350 = vpop.f32.mrf.mxu0
        %v2351 = vadd.f32 %v2262, %v2350
        %2352 = vmatmul.bf16.gmra.mxu0 %v978
        %v2353 = vpop.f32.mrf.mxu0
        %v2354 = vadd.f32 %v2265, %v2353
        %v2355 = vpop.f32.mrf.mxu0
        %v2356 = vadd.f32 %v2267, %v2355
        %2357 = vmatmul.bf16.gmra.mxu0 %v982
        %v2358 = vpop.f32.mrf.mxu0
        %v2359 = vadd.f32 %v2270, %v2358
        %v2360 = vpop.f32.mrf.mxu0
        %v2361 = vadd.f32 %v2272, %v2360
        %2362 = vmatmul.bf16.gmra.mxu0 %v986
        %v2363 = vpop.f32.mrf.mxu0
        %v2364 = vadd.f32 %v2275, %v2363
        %v2365 = vpop.f32.mrf.mxu0
        %v2366 = vadd.f32 %v2277, %v2365
        %2367 = vmatmul.bf16.gmra.mxu0 %v990
        %v2368 = vpop.f32.mrf.mxu0
        %v2369 = vadd.f32 %v2280, %v2368
        %v2370 = vpop.f32.mrf.mxu0
        %v2371 = vadd.f32 %v2282, %v2370
        %2372 = vmatmul.bf16.gmra.mxu0 %v994
        %v2373 = vpop.f32.mrf.mxu0
        %v2374 = vadd.f32 %v2285, %v2373
        %v2375 = vpop.f32.mrf.mxu0
        %v2376 = vadd.f32 %v2287, %v2375
        %2377 = vmatmul.bf16.gmra.mxu0 %v998
        %v2378 = vpop.f32.mrf.mxu0
        %v2379 = vadd.f32 %v2290, %v2378
        %v2380 = vpop.f32.mrf.mxu0
        %v2381 = vadd.f32 %v2292, %v2380
        %2382 = vmatmul.bf16.gmra.mxu0 %v1002
        %v2383 = vpop.f32.mrf.mxu0
        %v2384 = vadd.f32 %v2295, %v2383
        %v2385 = vpop.f32.mrf.mxu0
        %v2386 = vadd.f32 %v2297, %v2385
        %2387 = vmatmul.bf16.gmra.mxu0 %v1006
        %v2388 = vpop.f32.mrf.mxu0
        %v2389 = vadd.f32 %v2300, %v2388
        %v2390 = vpop.f32.mrf.mxu0
        %v2391 = vadd.f32 %v2302, %v2390
        %2392 = vmatmul.bf16.gmra.mxu0 %v1010
        %v2393 = vpop.f32.mrf.mxu0
        %v2394 = vadd.f32 %v2305, %v2393
        %v2395 = vpop.f32.mrf.mxu0
        %v2396 = vadd.f32 %v2307, %v2395
        %2397 = vmatmul.bf16.gmra.mxu0 %v1014
        %v2398 = vpop.f32.mrf.mxu0
        %v2399 = vadd.f32 %v2310, %v2398
        %v2400 = vpop.f32.mrf.mxu0
        %v2401 = vadd.f32 %v2312, %v2400
        %2402 = vmatmul.bf16.gmra.mxu0 %v1018
        %v2403 = vpop.f32.mrf.mxu0
        %v2404 = vadd.f32 %v2315, %v2403
        %v2405 = vpop.f32.mrf.mxu0
        %v2406 = vadd.f32 %v2317, %v2405
        %2407 = vmatmul.bf16.gmra.mxu0 %v1022
        %v2408 = vpop.f32.mrf.mxu0
        %v2409 = vadd.f32 %v2320, %v2408
        %v2410 = vpop.f32.mrf.mxu0
        %v2411 = vadd.f32 %v2322, %v2410
        %2412 = vmatmul.bf16.gmra.mxu0 %v1026
        %v2413 = vpop.f32.mrf.mxu0
        %v2414 = vadd.f32 %v2325, %v2413
        %v2415 = vpop.f32.mrf.mxu0
        %v2416 = vadd.f32 %v2327, %v2415
        %2417 = vmatmul.bf16.gmra.mxu0 %v1030
        %v2418 = vpop.f32.mrf.mxu0
        %v2419 = vadd.f32 %v2330, %v2418
        %v2420 = vpop.f32.mrf.mxu0
        %v2421 = vadd.f32 %v2332, %v2420
        %2422 = vdwg.mxu0
        %2423 = vmatpush.bf16.msra.mxu0 %v1669
        %2424 = vmatpush.bf16.msra.mxu0 %v1665
        %2425 = vmatpush.bf16.msra.mxu0 %v1661
        %2426 = vmatpush.bf16.msra.mxu0 %v1657
        %2427 = vmatpush.bf16.msra.mxu0 %v1653
        %2428 = vmatpush.bf16.msra.mxu0 %v1649
        %2429 = vmatpush.bf16.msra.mxu0 %v1645
        %2430 = vmatpush.bf16.msra.mxu0 %v1641
        %2431 = vmatmul.bf16.gmra.mxu0 %v971
        %v2432 = vpop.f32.mrf.mxu0
        %v2433 = vadd.f32 %v2344, %v2432
        %v2434 = vpop.f32.mrf.mxu0
        %v2435 = vadd.f32 %v2346, %v2434
        %2436 = vmatmul.bf16.gmra.mxu0 %v975
        %v2437 = vpop.f32.mrf.mxu0
        %v2438 = vadd.f32 %v2349, %v2437
        %v2439 = vpop.f32.mrf.mxu0
        %v2440 = vadd.f32 %v2351, %v2439
        %2441 = vmatmul.bf16.gmra.mxu0 %v979
        %v2442 = vpop.f32.mrf.mxu0
        %v2443 = vadd.f32 %v2354, %v2442
        %v2444 = vpop.f32.mrf.mxu0
        %v2445 = vadd.f32 %v2356, %v2444
        %2446 = vmatmul.bf16.gmra.mxu0 %v983
        %v2447 = vpop.f32.mrf.mxu0
        %v2448 = vadd.f32 %v2359, %v2447
        %v2449 = vpop.f32.mrf.mxu0
        %v2450 = vadd.f32 %v2361, %v2449
        %2451 = vmatmul.bf16.gmra.mxu0 %v987
        %v2452 = vpop.f32.mrf.mxu0
        %v2453 = vadd.f32 %v2364, %v2452
        %v2454 = vpop.f32.mrf.mxu0
        %v2455 = vadd.f32 %v2366, %v2454
        %2456 = vmatmul.bf16.gmra.mxu0 %v991
        %v2457 = vpop.f32.mrf.mxu0
        %v2458 = vadd.f32 %v2369, %v2457
        %v2459 = vpop.f32.mrf.mxu0
        %v2460 = vadd.f32 %v2371, %v2459
        %2461 = vmatmul.bf16.gmra.mxu0 %v995
        %v2462 = vpop.f32.mrf.mxu0
        %v2463 = vadd.f32 %v2374, %v2462
        %v2464 = vpop.f32.mrf.mxu0
        %v2465 = vadd.f32 %v2376, %v2464
        %2466 = vmatmul.bf16.gmra.mxu0 %v999
        %v2467 = vpop.f32.mrf.mxu0
        %v2468 = vadd.f32 %v2379, %v2467
        %v2469 = vpop.f32.mrf.mxu0
        %v2470 = vadd.f32 %v2381, %v2469
        %2471 = vmatmul.bf16.gmra.mxu0 %v1003
        %v2472 = vpop.f32.mrf.mxu0
        %v2473 = vadd.f32 %v2384, %v2472
        %v2474 = vpop.f32.mrf.mxu0
        %v2475 = vadd.f32 %v2386, %v2474
        %2476 = vmatmul.bf16.gmra.mxu0 %v1007
        %v2477 = vpop.f32.mrf.mxu0
        %v2478 = vadd.f32 %v2389, %v2477
        %v2479 = vpop.f32.mrf.mxu0
        %v2480 = vadd.f32 %v2391, %v2479
        %2481 = vmatmul.bf16.gmra.mxu0 %v1011
        %v2482 = vpop.f32.mrf.mxu0
        %v2483 = vadd.f32 %v2394, %v2482
        %v2484 = vpop.f32.mrf.mxu0
        %v2485 = vadd.f32 %v2396, %v2484
        %2486 = vmatmul.bf16.gmra.mxu0 %v1015
        %v2487 = vpop.f32.mrf.mxu0
        %v2488 = vadd.f32 %v2399, %v2487
        %v2489 = vpop.f32.mrf.mxu0
        %v2490 = vadd.f32 %v2401, %v2489
        %2491 = vmatmul.bf16.gmra.mxu0 %v1019
        %v2492 = vpop.f32.mrf.mxu0
        %v2493 = vadd.f32 %v2404, %v2492
        %v2494 = vpop.f32.mrf.mxu0
        %v2495 = vadd.f32 %v2406, %v2494
        %2496 = vmatmul.bf16.gmra.mxu0 %v1023
        %v2497 = vpop.f32.mrf.mxu0
        %v2498 = vadd.f32 %v2409, %v2497
        %v2499 = vpop.f32.mrf.mxu0
        %v2500 = vadd.f32 %v2411, %v2499
        %2501 = vmatmul.bf16.gmra.mxu0 %v1027
        %v2502 = vpop.f32.mrf.mxu0
        %v2503 = vadd.f32 %v2414, %v2502
        %v2504 = vpop.f32.mrf.mxu0
        %v2505 = vadd.f32 %v2416, %v2504
        %2506 = vmatmul.bf16.gmra.mxu0 %v1031
        %v2507 = vpop.f32.mrf.mxu0
        %v2508 = vadd.f32 %v2419, %v2507
        %v2509 = vpop.f32.mrf.mxu0
        %v2510 = vadd.f32 %v2421, %v2509
        %2511 = vdwg.mxu0
        %2512 = vmatpush.bf16.msra.mxu0 %v1574
        %2513 = vmatpush.bf16.msra.mxu0 %v1570
        %2514 = vmatpush.bf16.msra.mxu0 %v1566
        %2515 = vmatpush.bf16.msra.mxu0 %v1562
        %2516 = vmatpush.bf16.msra.mxu0 %v1558
        %2517 = vmatpush.bf16.msra.mxu0 %v1554
        %2518 = vmatpush.bf16.msra.mxu0 %v1550
        %2519 = vmatpush.bf16.msra.mxu0 %v1546
        %2520 = vmatmul.bf16.gmra.mxu0 %v968
        %v2521 = vpop.f32.mrf.mxu0
        %v2522 = vadd.f32 0.0, %v2521
        %v2523 = vpop.f32.mrf.mxu0
        %v2524 = vadd.f32 0.0, %v2523
        %2525 = vmatmul.bf16.gmra.mxu0 %v972
        %v2526 = vpop.f32.mrf.mxu0
        %v2527 = vadd.f32 0.0, %v2526
        %v2528 = vpop.f32.mrf.mxu0
        %v2529 = vadd.f32 0.0, %v2528
        %2530 = vmatmul.bf16.gmra.mxu0 %v976
        %v2531 = vpop.f32.mrf.mxu0
        %v2532 = vadd.f32 0.0, %v2531
        %v2533 = vpop.f32.mrf.mxu0
        %v2534 = vadd.f32 0.0, %v2533
        %2535 = vmatmul.bf16.gmra.mxu0 %v980
        %v2536 = vpop.f32.mrf.mxu0
        %v2537 = vadd.f32 0.0, %v2536
        %v2538 = vpop.f32.mrf.mxu0
        %v2539 = vadd.f32 0.0, %v2538
        %2540 = vmatmul.bf16.gmra.mxu0 %v984
        %v2541 = vpop.f32.mrf.mxu0
        %v2542 = vadd.f32 0.0, %v2541
        %v2543 = vpop.f32.mrf.mxu0
        %v2544 = vadd.f32 0.0, %v2543
        %2545 = vmatmul.bf16.gmra.mxu0 %v988
        %v2546 = vpop.f32.mrf.mxu0
        %v2547 = vadd.f32 0.0, %v2546
        %v2548 = vpop.f32.mrf.mxu0
        %v2549 = vadd.f32 0.0, %v2548
        %2550 = vmatmul.bf16.gmra.mxu0 %v992
        %v2551 = vpop.f32.mrf.mxu0
        %v2552 = vadd.f32 0.0, %v2551
        %v2553 = vpop.f32.mrf.mxu0
        %v2554 = vadd.f32 0.0, %v2553
        %2555 = vmatmul.bf16.gmra.mxu0 %v996
        %v2556 = vpop.f32.mrf.mxu0
        %v2557 = vadd.f32 0.0, %v2556
        %v2558 = vpop.f32.mrf.mxu0
        %v2559 = vadd.f32 0.0, %v2558
        %2560 = vmatmul.bf16.gmra.mxu0 %v1000
        %v2561 = vpop.f32.mrf.mxu0
        %v2562 = vadd.f32 0.0, %v2561
        %v2563 = vpop.f32.mrf.mxu0
        %v2564 = vadd.f32 0.0, %v2563
        %2565 = vmatmul.bf16.gmra.mxu0 %v1004
        %v2566 = vpop.f32.mrf.mxu0
        %v2567 = vadd.f32 0.0, %v2566
        %v2568 = vpop.f32.mrf.mxu0
        %v2569 = vadd.f32 0.0, %v2568
        %2570 = vmatmul.bf16.gmra.mxu0 %v1008
        %v2571 = vpop.f32.mrf.mxu0
        %v2572 = vadd.f32 0.0, %v2571
        %v2573 = vpop.f32.mrf.mxu0
        %v2574 = vadd.f32 0.0, %v2573
        %2575 = vmatmul.bf16.gmra.mxu0 %v1012
        %v2576 = vpop.f32.mrf.mxu0
        %v2577 = vadd.f32 0.0, %v2576
        %v2578 = vpop.f32.mrf.mxu0
        %v2579 = vadd.f32 0.0, %v2578
        %2580 = vmatmul.bf16.gmra.mxu0 %v1016
        %v2581 = vpop.f32.mrf.mxu0
        %v2582 = vadd.f32 0.0, %v2581
        %v2583 = vpop.f32.mrf.mxu0
        %v2584 = vadd.f32 0.0, %v2583
        %2585 = vmatmul.bf16.gmra.mxu0 %v1020
        %v2586 = vpop.f32.mrf.mxu0
        %v2587 = vadd.f32 0.0, %v2586
        %v2588 = vpop.f32.mrf.mxu0
        %v2589 = vadd.f32 0.0, %v2588
        %2590 = vmatmul.bf16.gmra.mxu0 %v1024
        %v2591 = vpop.f32.mrf.mxu0
        %v2592 = vadd.f32 0.0, %v2591
        %v2593 = vpop.f32.mrf.mxu0
        %v2594 = vadd.f32 0.0, %v2593
        %2595 = vmatmul.bf16.gmra.mxu0 %v1028
        %v2596 = vpop.f32.mrf.mxu0
        %v2597 = vadd.f32 0.0, %v2596
        %v2598 = vpop.f32.mrf.mxu0
        %v2599 = vadd.f32 0.0, %v2598
        %2600 = vdwg.mxu0
        %2601 = vmatpush.bf16.msra.mxu0 %v1606
        %2602 = vmatpush.bf16.msra.mxu0 %v1602
        %2603 = vmatpush.bf16.msra.mxu0 %v1598
        %2604 = vmatpush.bf16.msra.mxu0 %v1594
        %2605 = vmatpush.bf16.msra.mxu0 %v1590
        %2606 = vmatpush.bf16.msra.mxu0 %v1586
        %2607 = vmatpush.bf16.msra.mxu0 %v1582
        %2608 = vmatpush.bf16.msra.mxu0 %v1578
        %2609 = vmatmul.bf16.gmra.mxu0 %v969
        %v2610 = vpop.f32.mrf.mxu0
        %v2611 = vadd.f32 %v2522, %v2610
        %v2612 = vpop.f32.mrf.mxu0
        %v2613 = vadd.f32 %v2524, %v2612
        %2614 = vmatmul.bf16.gmra.mxu0 %v973
        %v2615 = vpop.f32.mrf.mxu0
        %v2616 = vadd.f32 %v2527, %v2615
        %v2617 = vpop.f32.mrf.mxu0
        %v2618 = vadd.f32 %v2529, %v2617
        %2619 = vmatmul.bf16.gmra.mxu0 %v977
        %v2620 = vpop.f32.mrf.mxu0
        %v2621 = vadd.f32 %v2532, %v2620
        %v2622 = vpop.f32.mrf.mxu0
        %v2623 = vadd.f32 %v2534, %v2622
        %2624 = vmatmul.bf16.gmra.mxu0 %v981
        %v2625 = vpop.f32.mrf.mxu0
        %v2626 = vadd.f32 %v2537, %v2625
        %v2627 = vpop.f32.mrf.mxu0
        %v2628 = vadd.f32 %v2539, %v2627
        %2629 = vmatmul.bf16.gmra.mxu0 %v985
        %v2630 = vpop.f32.mrf.mxu0
        %v2631 = vadd.f32 %v2542, %v2630
        %v2632 = vpop.f32.mrf.mxu0
        %v2633 = vadd.f32 %v2544, %v2632
        %2634 = vmatmul.bf16.gmra.mxu0 %v989
        %v2635 = vpop.f32.mrf.mxu0
        %v2636 = vadd.f32 %v2547, %v2635
        %v2637 = vpop.f32.mrf.mxu0
        %v2638 = vadd.f32 %v2549, %v2637
        %2639 = vmatmul.bf16.gmra.mxu0 %v993
        %v2640 = vpop.f32.mrf.mxu0
        %v2641 = vadd.f32 %v2552, %v2640
        %v2642 = vpop.f32.mrf.mxu0
        %v2643 = vadd.f32 %v2554, %v2642
        %2644 = vmatmul.bf16.gmra.mxu0 %v997
        %v2645 = vpop.f32.mrf.mxu0
        %v2646 = vadd.f32 %v2557, %v2645
        %v2647 = vpop.f32.mrf.mxu0
        %v2648 = vadd.f32 %v2559, %v2647
        %2649 = vmatmul.bf16.gmra.mxu0 %v1001
        %v2650 = vpop.f32.mrf.mxu0
        %v2651 = vadd.f32 %v2562, %v2650
        %v2652 = vpop.f32.mrf.mxu0
        %v2653 = vadd.f32 %v2564, %v2652
        %2654 = vmatmul.bf16.gmra.mxu0 %v1005
        %v2655 = vpop.f32.mrf.mxu0
        %v2656 = vadd.f32 %v2567, %v2655
        %v2657 = vpop.f32.mrf.mxu0
        %v2658 = vadd.f32 %v2569, %v2657
        %2659 = vmatmul.bf16.gmra.mxu0 %v1009
        %v2660 = vpop.f32.mrf.mxu0
        %v2661 = vadd.f32 %v2572, %v2660
        %v2662 = vpop.f32.mrf.mxu0
        %v2663 = vadd.f32 %v2574, %v2662
        %2664 = vmatmul.bf16.gmra.mxu0 %v1013
        %v2665 = vpop.f32.mrf.mxu0
        %v2666 = vadd.f32 %v2577, %v2665
        %v2667 = vpop.f32.mrf.mxu0
        %v2668 = vadd.f32 %v2579, %v2667
        %2669 = vmatmul.bf16.gmra.mxu0 %v1017
        %v2670 = vpop.f32.mrf.mxu0
        %v2671 = vadd.f32 %v2582, %v2670
        %v2672 = vpop.f32.mrf.mxu0
        %v2673 = vadd.f32 %v2584, %v2672
        %2674 = vmatmul.bf16.gmra.mxu0 %v1021
        %v2675 = vpop.f32.mrf.mxu0
        %v2676 = vadd.f32 %v2587, %v2675
        %v2677 = vpop.f32.mrf.mxu0
        %v2678 = vadd.f32 %v2589, %v2677
        %2679 = vmatmul.bf16.gmra.mxu0 %v1025
        %v2680 = vpop.f32.mrf.mxu0
        %v2681 = vadd.f32 %v2592, %v2680
        %v2682 = vpop.f32.mrf.mxu0
        %v2683 = vadd.f32 %v2594, %v2682
        %2684 = vmatmul.bf16.gmra.mxu0 %v1029
        %v2685 = vpop.f32.mrf.mxu0
        %v2686 = vadd.f32 %v2597, %v2685
        %v2687 = vpop.f32.mrf.mxu0
        %v2688 = vadd.f32 %v2599, %v2687
        %2689 = vdwg.mxu0
        %2690 = vmatpush.bf16.msra.mxu0 %v1638
        %2691 = vmatpush.bf16.msra.mxu0 %v1634
        %2692 = vmatpush.bf16.msra.mxu0 %v1630
        %2693 = vmatpush.bf16.msra.mxu0 %v1626
        %2694 = vmatpush.bf16.msra.mxu0 %v1622
        %2695 = vmatpush.bf16.msra.mxu0 %v1618
        %2696 = vmatpush.bf16.msra.mxu0 %v1614
        %2697 = vmatpush.bf16.msra.mxu0 %v1610
        %2698 = vmatmul.bf16.gmra.mxu0 %v970
        %v2699 = vpop.f32.mrf.mxu0
        %v2700 = vadd.f32 %v2611, %v2699
        %v2701 = vpop.f32.mrf.mxu0
        %v2702 = vadd.f32 %v2613, %v2701
        %2703 = vmatmul.bf16.gmra.mxu0 %v974
        %v2704 = vpop.f32.mrf.mxu0
        %v2705 = vadd.f32 %v2616, %v2704
        %v2706 = vpop.f32.mrf.mxu0
        %v2707 = vadd.f32 %v2618, %v2706
        %2708 = vmatmul.bf16.gmra.mxu0 %v978
        %v2709 = vpop.f32.mrf.mxu0
        %v2710 = vadd.f32 %v2621, %v2709
        %v2711 = vpop.f32.mrf.mxu0
        %v2712 = vadd.f32 %v2623, %v2711
        %2713 = vmatmul.bf16.gmra.mxu0 %v982
        %v2714 = vpop.f32.mrf.mxu0
        %v2715 = vadd.f32 %v2626, %v2714
        %v2716 = vpop.f32.mrf.mxu0
        %v2717 = vadd.f32 %v2628, %v2716
        %2718 = vmatmul.bf16.gmra.mxu0 %v986
        %v2719 = vpop.f32.mrf.mxu0
        %v2720 = vadd.f32 %v2631, %v2719
        %v2721 = vpop.f32.mrf.mxu0
        %v2722 = vadd.f32 %v2633, %v2721
        %2723 = vmatmul.bf16.gmra.mxu0 %v990
        %v2724 = vpop.f32.mrf.mxu0
        %v2725 = vadd.f32 %v2636, %v2724
        %v2726 = vpop.f32.mrf.mxu0
        %v2727 = vadd.f32 %v2638, %v2726
        %2728 = vmatmul.bf16.gmra.mxu0 %v994
        %v2729 = vpop.f32.mrf.mxu0
        %v2730 = vadd.f32 %v2641, %v2729
        %v2731 = vpop.f32.mrf.mxu0
        %v2732 = vadd.f32 %v2643, %v2731
        %2733 = vmatmul.bf16.gmra.mxu0 %v998
        %v2734 = vpop.f32.mrf.mxu0
        %v2735 = vadd.f32 %v2646, %v2734
        %v2736 = vpop.f32.mrf.mxu0
        %v2737 = vadd.f32 %v2648, %v2736
        %2738 = vmatmul.bf16.gmra.mxu0 %v1002
        %v2739 = vpop.f32.mrf.mxu0
        %v2740 = vadd.f32 %v2651, %v2739
        %v2741 = vpop.f32.mrf.mxu0
        %v2742 = vadd.f32 %v2653, %v2741
        %2743 = vmatmul.bf16.gmra.mxu0 %v1006
        %v2744 = vpop.f32.mrf.mxu0
        %v2745 = vadd.f32 %v2656, %v2744
        %v2746 = vpop.f32.mrf.mxu0
        %v2747 = vadd.f32 %v2658, %v2746
        %2748 = vmatmul.bf16.gmra.mxu0 %v1010
        %v2749 = vpop.f32.mrf.mxu0
        %v2750 = vadd.f32 %v2661, %v2749
        %v2751 = vpop.f32.mrf.mxu0
        %v2752 = vadd.f32 %v2663, %v2751
        %2753 = vmatmul.bf16.gmra.mxu0 %v1014
        %v2754 = vpop.f32.mrf.mxu0
        %v2755 = vadd.f32 %v2666, %v2754
        %v2756 = vpop.f32.mrf.mxu0
        %v2757 = vadd.f32 %v2668, %v2756
        %2758 = vmatmul.bf16.gmra.mxu0 %v1018
        %v2759 = vpop.f32.mrf.mxu0
        %v2760 = vadd.f32 %v2671, %v2759
        %v2761 = vpop.f32.mrf.mxu0
        %v2762 = vadd.f32 %v2673, %v2761
        %2763 = vmatmul.bf16.gmra.mxu0 %v1022
        %v2764 = vpop.f32.mrf.mxu0
        %v2765 = vadd.f32 %v2676, %v2764
        %v2766 = vpop.f32.mrf.mxu0
        %v2767 = vadd.f32 %v2678, %v2766
        %2768 = vmatmul.bf16.gmra.mxu0 %v1026
        %v2769 = vpop.f32.mrf.mxu0
        %v2770 = vadd.f32 %v2681, %v2769
        %v2771 = vpop.f32.mrf.mxu0
        %v2772 = vadd.f32 %v2683, %v2771
        %2773 = vmatmul.bf16.gmra.mxu0 %v1030
        %v2774 = vpop.f32.mrf.mxu0
        %v2775 = vadd.f32 %v2686, %v2774
        %v2776 = vpop.f32.mrf.mxu0
        %v2777 = vadd.f32 %v2688, %v2776
        %2778 = vdwg.mxu0
        %2779 = vmatpush.bf16.msra.mxu0 %v1670
        %2780 = vmatpush.bf16.msra.mxu0 %v1666
        %2781 = vmatpush.bf16.msra.mxu0 %v1662
        %2782 = vmatpush.bf16.msra.mxu0 %v1658
        %2783 = vmatpush.bf16.msra.mxu0 %v1654
        %2784 = vmatpush.bf16.msra.mxu0 %v1650
        %2785 = vmatpush.bf16.msra.mxu0 %v1646
        %2786 = vmatpush.bf16.msra.mxu0 %v1642
        %2787 = vmatmul.bf16.gmra.mxu0 %v971
        %v2788 = vpop.f32.mrf.mxu0
        %v2789 = vadd.f32 %v2700, %v2788
        %v2790 = vpop.f32.mrf.mxu0
        %v2791 = vadd.f32 %v2702, %v2790
        %2792 = vmatmul.bf16.gmra.mxu0 %v975
        %v2793 = vpop.f32.mrf.mxu0
        %v2794 = vadd.f32 %v2705, %v2793
        %v2795 = vpop.f32.mrf.mxu0
        %v2796 = vadd.f32 %v2707, %v2795
        %2797 = vmatmul.bf16.gmra.mxu0 %v979
        %v2798 = vpop.f32.mrf.mxu0
        %v2799 = vadd.f32 %v2710, %v2798
        %v2800 = vpop.f32.mrf.mxu0
        %v2801 = vadd.f32 %v2712, %v2800
        %2802 = vmatmul.bf16.gmra.mxu0 %v983
        %v2803 = vpop.f32.mrf.mxu0
        %v2804 = vadd.f32 %v2715, %v2803
        %v2805 = vpop.f32.mrf.mxu0
        %v2806 = vadd.f32 %v2717, %v2805
        %2807 = vmatmul.bf16.gmra.mxu0 %v987
        %v2808 = vpop.f32.mrf.mxu0
        %v2809 = vadd.f32 %v2720, %v2808
        %v2810 = vpop.f32.mrf.mxu0
        %v2811 = vadd.f32 %v2722, %v2810
        %2812 = vmatmul.bf16.gmra.mxu0 %v991
        %v2813 = vpop.f32.mrf.mxu0
        %v2814 = vadd.f32 %v2725, %v2813
        %v2815 = vpop.f32.mrf.mxu0
        %v2816 = vadd.f32 %v2727, %v2815
        %2817 = vmatmul.bf16.gmra.mxu0 %v995
        %v2818 = vpop.f32.mrf.mxu0
        %v2819 = vadd.f32 %v2730, %v2818
        %v2820 = vpop.f32.mrf.mxu0
        %v2821 = vadd.f32 %v2732, %v2820
        %2822 = vmatmul.bf16.gmra.mxu0 %v999
        %v2823 = vpop.f32.mrf.mxu0
        %v2824 = vadd.f32 %v2735, %v2823
        %v2825 = vpop.f32.mrf.mxu0
        %v2826 = vadd.f32 %v2737, %v2825
        %2827 = vmatmul.bf16.gmra.mxu0 %v1003
        %v2828 = vpop.f32.mrf.mxu0
        %v2829 = vadd.f32 %v2740, %v2828
        %v2830 = vpop.f32.mrf.mxu0
        %v2831 = vadd.f32 %v2742, %v2830
        %2832 = vmatmul.bf16.gmra.mxu0 %v1007
        %v2833 = vpop.f32.mrf.mxu0
        %v2834 = vadd.f32 %v2745, %v2833
        %v2835 = vpop.f32.mrf.mxu0
        %v2836 = vadd.f32 %v2747, %v2835
        %2837 = vmatmul.bf16.gmra.mxu0 %v1011
        %v2838 = vpop.f32.mrf.mxu0
        %v2839 = vadd.f32 %v2750, %v2838
        %v2840 = vpop.f32.mrf.mxu0
        %v2841 = vadd.f32 %v2752, %v2840
        %2842 = vmatmul.bf16.gmra.mxu0 %v1015
        %v2843 = vpop.f32.mrf.mxu0
        %v2844 = vadd.f32 %v2755, %v2843
        %v2845 = vpop.f32.mrf.mxu0
        %v2846 = vadd.f32 %v2757, %v2845
        %2847 = vmatmul.bf16.gmra.mxu0 %v1019
        %v2848 = vpop.f32.mrf.mxu0
        %v2849 = vadd.f32 %v2760, %v2848
        %v2850 = vpop.f32.mrf.mxu0
        %v2851 = vadd.f32 %v2762, %v2850
        %2852 = vmatmul.bf16.gmra.mxu0 %v1023
        %v2853 = vpop.f32.mrf.mxu0
        %v2854 = vadd.f32 %v2765, %v2853
        %v2855 = vpop.f32.mrf.mxu0
        %v2856 = vadd.f32 %v2767, %v2855
        %2857 = vmatmul.bf16.gmra.mxu0 %v1027
        %v2858 = vpop.f32.mrf.mxu0
        %v2859 = vadd.f32 %v2770, %v2858
        %v2860 = vpop.f32.mrf.mxu0
        %v2861 = vadd.f32 %v2772, %v2860
        %2862 = vmatmul.bf16.gmra.mxu0 %v1031
        %v2863 = vpop.f32.mrf.mxu0
        %v2864 = vadd.f32 %v2775, %v2863
        %v2865 = vpop.f32.mrf.mxu0
        %v2866 = vadd.f32 %v2777, %v2865
        %2867 = vdwg.mxu0
        %2868 = vmatpush.bf16.msra.mxu0 %v1575
        %2869 = vmatpush.bf16.msra.mxu0 %v1571
        %2870 = vmatpush.bf16.msra.mxu0 %v1567
        %2871 = vmatpush.bf16.msra.mxu0 %v1563
        %2872 = vmatpush.bf16.msra.mxu0 %v1559
        %2873 = vmatpush.bf16.msra.mxu0 %v1555
        %2874 = vmatpush.bf16.msra.mxu0 %v1551
        %2875 = vmatpush.bf16.msra.mxu0 %v1547
        %2876 = vmatmul.bf16.gmra.mxu0 %v968
        %v2877 = vpop.f32.mrf.mxu0
        %v2878 = vadd.f32 0.0, %v2877
        %v2879 = vpop.f32.mrf.mxu0
        %v2880 = vadd.f32 0.0, %v2879
        %2881 = vmatmul.bf16.gmra.mxu0 %v972
        %v2882 = vpop.f32.mrf.mxu0
        %v2883 = vadd.f32 0.0, %v2882
        %v2884 = vpop.f32.mrf.mxu0
        %v2885 = vadd.f32 0.0, %v2884
        %2886 = vmatmul.bf16.gmra.mxu0 %v976
        %v2887 = vpop.f32.mrf.mxu0
        %v2888 = vadd.f32 0.0, %v2887
        %v2889 = vpop.f32.mrf.mxu0
        %v2890 = vadd.f32 0.0, %v2889
        %2891 = vmatmul.bf16.gmra.mxu0 %v980
        %v2892 = vpop.f32.mrf.mxu0
        %v2893 = vadd.f32 0.0, %v2892
        %v2894 = vpop.f32.mrf.mxu0
        %v2895 = vadd.f32 0.0, %v2894
        %2896 = vmatmul.bf16.gmra.mxu0 %v984
        %v2897 = vpop.f32.mrf.mxu0
        %v2898 = vadd.f32 0.0, %v2897
        %v2899 = vpop.f32.mrf.mxu0
        %v2900 = vadd.f32 0.0, %v2899
        %2901 = vmatmul.bf16.gmra.mxu0 %v988
        %v2902 = vpop.f32.mrf.mxu0
        %v2903 = vadd.f32 0.0, %v2902
        %v2904 = vpop.f32.mrf.mxu0
        %v2905 = vadd.f32 0.0, %v2904
        %2906 = vmatmul.bf16.gmra.mxu0 %v992
        %v2907 = vpop.f32.mrf.mxu0
        %v2908 = vadd.f32 0.0, %v2907
        %v2909 = vpop.f32.mrf.mxu0
        %v2910 = vadd.f32 0.0, %v2909
        %2911 = vmatmul.bf16.gmra.mxu0 %v996
        %v2912 = vpop.f32.mrf.mxu0
        %v2913 = vadd.f32 0.0, %v2912
        %v2914 = vpop.f32.mrf.mxu0
        %v2915 = vadd.f32 0.0, %v2914
        %2916 = vmatmul.bf16.gmra.mxu0 %v1000
        %v2917 = vpop.f32.mrf.mxu0
        %v2918 = vadd.f32 0.0, %v2917
        %v2919 = vpop.f32.mrf.mxu0
        %v2920 = vadd.f32 0.0, %v2919
        %2921 = vmatmul.bf16.gmra.mxu0 %v1004
        %v2922 = vpop.f32.mrf.mxu0
        %v2923 = vadd.f32 0.0, %v2922
        %v2924 = vpop.f32.mrf.mxu0
        %v2925 = vadd.f32 0.0, %v2924
        %2926 = vmatmul.bf16.gmra.mxu0 %v1008
        %v2927 = vpop.f32.mrf.mxu0
        %v2928 = vadd.f32 0.0, %v2927
        %v2929 = vpop.f32.mrf.mxu0
        %v2930 = vadd.f32 0.0, %v2929
        %2931 = vmatmul.bf16.gmra.mxu0 %v1012
        %v2932 = vpop.f32.mrf.mxu0
        %v2933 = vadd.f32 0.0, %v2932
        %v2934 = vpop.f32.mrf.mxu0
        %v2935 = vadd.f32 0.0, %v2934
        %2936 = vmatmul.bf16.gmra.mxu0 %v1016
        %v2937 = vpop.f32.mrf.mxu0
        %v2938 = vadd.f32 0.0, %v2937
        %v2939 = vpop.f32.mrf.mxu0
        %v2940 = vadd.f32 0.0, %v2939
        %2941 = vmatmul.bf16.gmra.mxu0 %v1020
        %v2942 = vpop.f32.mrf.mxu0
        %v2943 = vadd.f32 0.0, %v2942
        %v2944 = vpop.f32.mrf.mxu0
        %v2945 = vadd.f32 0.0, %v2944
        %2946 = vmatmul.bf16.gmra.mxu0 %v1024
        %v2947 = vpop.f32.mrf.mxu0
        %v2948 = vadd.f32 0.0, %v2947
        %v2949 = vpop.f32.mrf.mxu0
        %v2950 = vadd.f32 0.0, %v2949
        %2951 = vmatmul.bf16.gmra.mxu0 %v1028
        %v2952 = vpop.f32.mrf.mxu0
        %v2953 = vadd.f32 0.0, %v2952
        %v2954 = vpop.f32.mrf.mxu0
        %v2955 = vadd.f32 0.0, %v2954
        %2956 = vdwg.mxu0
        %2957 = vmatpush.bf16.msra.mxu0 %v1607
        %2958 = vmatpush.bf16.msra.mxu0 %v1603
        %2959 = vmatpush.bf16.msra.mxu0 %v1599
        %2960 = vmatpush.bf16.msra.mxu0 %v1595
        %2961 = vmatpush.bf16.msra.mxu0 %v1591
        %2962 = vmatpush.bf16.msra.mxu0 %v1587
        %2963 = vmatpush.bf16.msra.mxu0 %v1583
        %2964 = vmatpush.bf16.msra.mxu0 %v1579
        %2965 = vmatmul.bf16.gmra.mxu0 %v969
        %v2966 = vpop.f32.mrf.mxu0
        %v2967 = vadd.f32 %v2878, %v2966
        %v2968 = vpop.f32.mrf.mxu0
        %v2969 = vadd.f32 %v2880, %v2968
        %2970 = vmatmul.bf16.gmra.mxu0 %v973
        %v2971 = vpop.f32.mrf.mxu0
        %v2972 = vadd.f32 %v2883, %v2971
        %v2973 = vpop.f32.mrf.mxu0
        %v2974 = vadd.f32 %v2885, %v2973
        %2975 = vmatmul.bf16.gmra.mxu0 %v977
        %v2976 = vpop.f32.mrf.mxu0
        %v2977 = vadd.f32 %v2888, %v2976
        %v2978 = vpop.f32.mrf.mxu0
        %v2979 = vadd.f32 %v2890, %v2978
        %2980 = vmatmul.bf16.gmra.mxu0 %v981
        %v2981 = vpop.f32.mrf.mxu0
        %v2982 = vadd.f32 %v2893, %v2981
        %v2983 = vpop.f32.mrf.mxu0
        %v2984 = vadd.f32 %v2895, %v2983
        %2985 = vmatmul.bf16.gmra.mxu0 %v985
        %v2986 = vpop.f32.mrf.mxu0
        %v2987 = vadd.f32 %v2898, %v2986
        %v2988 = vpop.f32.mrf.mxu0
        %v2989 = vadd.f32 %v2900, %v2988
        %2990 = vmatmul.bf16.gmra.mxu0 %v989
        %v2991 = vpop.f32.mrf.mxu0
        %v2992 = vadd.f32 %v2903, %v2991
        %v2993 = vpop.f32.mrf.mxu0
        %v2994 = vadd.f32 %v2905, %v2993
        %2995 = vmatmul.bf16.gmra.mxu0 %v993
        %v2996 = vpop.f32.mrf.mxu0
        %v2997 = vadd.f32 %v2908, %v2996
        %v2998 = vpop.f32.mrf.mxu0
        %v2999 = vadd.f32 %v2910, %v2998
        %3000 = vmatmul.bf16.gmra.mxu0 %v997
        %v3001 = vpop.f32.mrf.mxu0
        %v3002 = vadd.f32 %v2913, %v3001
        %v3003 = vpop.f32.mrf.mxu0
        %v3004 = vadd.f32 %v2915, %v3003
        %3005 = vmatmul.bf16.gmra.mxu0 %v1001
        %v3006 = vpop.f32.mrf.mxu0
        %v3007 = vadd.f32 %v2918, %v3006
        %v3008 = vpop.f32.mrf.mxu0
        %v3009 = vadd.f32 %v2920, %v3008
        %3010 = vmatmul.bf16.gmra.mxu0 %v1005
        %v3011 = vpop.f32.mrf.mxu0
        %v3012 = vadd.f32 %v2923, %v3011
        %v3013 = vpop.f32.mrf.mxu0
        %v3014 = vadd.f32 %v2925, %v3013
        %3015 = vmatmul.bf16.gmra.mxu0 %v1009
        %v3016 = vpop.f32.mrf.mxu0
        %v3017 = vadd.f32 %v2928, %v3016
        %v3018 = vpop.f32.mrf.mxu0
        %v3019 = vadd.f32 %v2930, %v3018
        %3020 = vmatmul.bf16.gmra.mxu0 %v1013
        %v3021 = vpop.f32.mrf.mxu0
        %v3022 = vadd.f32 %v2933, %v3021
        %v3023 = vpop.f32.mrf.mxu0
        %v3024 = vadd.f32 %v2935, %v3023
        %3025 = vmatmul.bf16.gmra.mxu0 %v1017
        %v3026 = vpop.f32.mrf.mxu0
        %v3027 = vadd.f32 %v2938, %v3026
        %v3028 = vpop.f32.mrf.mxu0
        %v3029 = vadd.f32 %v2940, %v3028
        %3030 = vmatmul.bf16.gmra.mxu0 %v1021
        %v3031 = vpop.f32.mrf.mxu0
        %v3032 = vadd.f32 %v2943, %v3031
        %v3033 = vpop.f32.mrf.mxu0
        %v3034 = vadd.f32 %v2945, %v3033
        %3035 = vmatmul.bf16.gmra.mxu0 %v1025
        %v3036 = vpop.f32.mrf.mxu0
        %v3037 = vadd.f32 %v2948, %v3036
        %v3038 = vpop.f32.mrf.mxu0
        %v3039 = vadd.f32 %v2950, %v3038
        %3040 = vmatmul.bf16.gmra.mxu0 %v1029
        %v3041 = vpop.f32.mrf.mxu0
        %v3042 = vadd.f32 %v2953, %v3041
        %v3043 = vpop.f32.mrf.mxu0
        %v3044 = vadd.f32 %v2955, %v3043
        %3045 = vdwg.mxu0
        %3046 = vmatpush.bf16.msra.mxu0 %v1639
        %3047 = vmatpush.bf16.msra.mxu0 %v1635
        %3048 = vmatpush.bf16.msra.mxu0 %v1631
        %3049 = vmatpush.bf16.msra.mxu0 %v1627
        %3050 = vmatpush.bf16.msra.mxu0 %v1623
        %3051 = vmatpush.bf16.msra.mxu0 %v1619
        %3052 = vmatpush.bf16.msra.mxu0 %v1615
        %3053 = vmatpush.bf16.msra.mxu0 %v1611
        %3054 = vmatmul.bf16.gmra.mxu0 %v970
        %v3055 = vpop.f32.mrf.mxu0
        %v3056 = vadd.f32 %v2967, %v3055
        %v3057 = vpop.f32.mrf.mxu0
        %v3058 = vadd.f32 %v2969, %v3057
        %3059 = vmatmul.bf16.gmra.mxu0 %v974
        %v3060 = vpop.f32.mrf.mxu0
        %v3061 = vadd.f32 %v2972, %v3060
        %v3062 = vpop.f32.mrf.mxu0
        %v3063 = vadd.f32 %v2974, %v3062
        %3064 = vmatmul.bf16.gmra.mxu0 %v978
        %v3065 = vpop.f32.mrf.mxu0
        %v3066 = vadd.f32 %v2977, %v3065
        %v3067 = vpop.f32.mrf.mxu0
        %v3068 = vadd.f32 %v2979, %v3067
        %3069 = vmatmul.bf16.gmra.mxu0 %v982
        %v3070 = vpop.f32.mrf.mxu0
        %v3071 = vadd.f32 %v2982, %v3070
        %v3072 = vpop.f32.mrf.mxu0
        %v3073 = vadd.f32 %v2984, %v3072
        %3074 = vmatmul.bf16.gmra.mxu0 %v986
        %v3075 = vpop.f32.mrf.mxu0
        %v3076 = vadd.f32 %v2987, %v3075
        %v3077 = vpop.f32.mrf.mxu0
        %v3078 = vadd.f32 %v2989, %v3077
        %3079 = vmatmul.bf16.gmra.mxu0 %v990
        %v3080 = vpop.f32.mrf.mxu0
        %v3081 = vadd.f32 %v2992, %v3080
        %v3082 = vpop.f32.mrf.mxu0
        %v3083 = vadd.f32 %v2994, %v3082
        %3084 = vmatmul.bf16.gmra.mxu0 %v994
        %v3085 = vpop.f32.mrf.mxu0
        %v3086 = vadd.f32 %v2997, %v3085
        %v3087 = vpop.f32.mrf.mxu0
        %v3088 = vadd.f32 %v2999, %v3087
        %3089 = vmatmul.bf16.gmra.mxu0 %v998
        %v3090 = vpop.f32.mrf.mxu0
        %v3091 = vadd.f32 %v3002, %v3090
        %v3092 = vpop.f32.mrf.mxu0
        %v3093 = vadd.f32 %v3004, %v3092
        %3094 = vmatmul.bf16.gmra.mxu0 %v1002
        %v3095 = vpop.f32.mrf.mxu0
        %v3096 = vadd.f32 %v3007, %v3095
        %v3097 = vpop.f32.mrf.mxu0
        %v3098 = vadd.f32 %v3009, %v3097
        %3099 = vmatmul.bf16.gmra.mxu0 %v1006
        %v3100 = vpop.f32.mrf.mxu0
        %v3101 = vadd.f32 %v3012, %v3100
        %v3102 = vpop.f32.mrf.mxu0
        %v3103 = vadd.f32 %v3014, %v3102
        %3104 = vmatmul.bf16.gmra.mxu0 %v1010
        %v3105 = vpop.f32.mrf.mxu0
        %v3106 = vadd.f32 %v3017, %v3105
        %v3107 = vpop.f32.mrf.mxu0
        %v3108 = vadd.f32 %v3019, %v3107
        %3109 = vmatmul.bf16.gmra.mxu0 %v1014
        %v3110 = vpop.f32.mrf.mxu0
        %v3111 = vadd.f32 %v3022, %v3110
        %v3112 = vpop.f32.mrf.mxu0
        %v3113 = vadd.f32 %v3024, %v3112
        %3114 = vmatmul.bf16.gmra.mxu0 %v1018
        %v3115 = vpop.f32.mrf.mxu0
        %v3116 = vadd.f32 %v3027, %v3115
        %v3117 = vpop.f32.mrf.mxu0
        %v3118 = vadd.f32 %v3029, %v3117
        %3119 = vmatmul.bf16.gmra.mxu0 %v1022
        %v3120 = vpop.f32.mrf.mxu0
        %v3121 = vadd.f32 %v3032, %v3120
        %v3122 = vpop.f32.mrf.mxu0
        %v3123 = vadd.f32 %v3034, %v3122
        %3124 = vmatmul.bf16.gmra.mxu0 %v1026
        %v3125 = vpop.f32.mrf.mxu0
        %v3126 = vadd.f32 %v3037, %v3125
        %v3127 = vpop.f32.mrf.mxu0
        %v3128 = vadd.f32 %v3039, %v3127
        %3129 = vmatmul.bf16.gmra.mxu0 %v1030
        %v3130 = vpop.f32.mrf.mxu0
        %v3131 = vadd.f32 %v3042, %v3130
        %v3132 = vpop.f32.mrf.mxu0
        %v3133 = vadd.f32 %v3044, %v3132
        %3134 = vdwg.mxu0
        %3135 = vmatpush.bf16.msra.mxu0 %v1671
        %3136 = vmatpush.bf16.msra.mxu0 %v1667
        %3137 = vmatpush.bf16.msra.mxu0 %v1663
        %3138 = vmatpush.bf16.msra.mxu0 %v1659
        %3139 = vmatpush.bf16.msra.mxu0 %v1655
        %3140 = vmatpush.bf16.msra.mxu0 %v1651
        %3141 = vmatpush.bf16.msra.mxu0 %v1647
        %3142 = vmatpush.bf16.msra.mxu0 %v1643
        %3143 = vmatmul.bf16.gmra.mxu0 %v971
        %v3144 = vpop.f32.mrf.mxu0
        %v3145 = vadd.f32 %v3056, %v3144
        %v3146 = vpop.f32.mrf.mxu0
        %v3147 = vadd.f32 %v3058, %v3146
        %3148 = vmatmul.bf16.gmra.mxu0 %v975
        %v3149 = vpop.f32.mrf.mxu0
        %v3150 = vadd.f32 %v3061, %v3149
        %v3151 = vpop.f32.mrf.mxu0
        %v3152 = vadd.f32 %v3063, %v3151
        %3153 = vmatmul.bf16.gmra.mxu0 %v979
        %v3154 = vpop.f32.mrf.mxu0
        %v3155 = vadd.f32 %v3066, %v3154
        %v3156 = vpop.f32.mrf.mxu0
        %v3157 = vadd.f32 %v3068, %v3156
        %3158 = vmatmul.bf16.gmra.mxu0 %v983
        %v3159 = vpop.f32.mrf.mxu0
        %v3160 = vadd.f32 %v3071, %v3159
        %v3161 = vpop.f32.mrf.mxu0
        %v3162 = vadd.f32 %v3073, %v3161
        %3163 = vmatmul.bf16.gmra.mxu0 %v987
        %v3164 = vpop.f32.mrf.mxu0
        %v3165 = vadd.f32 %v3076, %v3164
        %v3166 = vpop.f32.mrf.mxu0
        %v3167 = vadd.f32 %v3078, %v3166
        %3168 = vmatmul.bf16.gmra.mxu0 %v991
        %v3169 = vpop.f32.mrf.mxu0
        %v3170 = vadd.f32 %v3081, %v3169
        %v3171 = vpop.f32.mrf.mxu0
        %v3172 = vadd.f32 %v3083, %v3171
        %3173 = vmatmul.bf16.gmra.mxu0 %v995
        %v3174 = vpop.f32.mrf.mxu0
        %v3175 = vadd.f32 %v3086, %v3174
        %v3176 = vpop.f32.mrf.mxu0
        %v3177 = vadd.f32 %v3088, %v3176
        %3178 = vmatmul.bf16.gmra.mxu0 %v999
        %v3179 = vpop.f32.mrf.mxu0
        %v3180 = vadd.f32 %v3091, %v3179
        %v3181 = vpop.f32.mrf.mxu0
        %v3182 = vadd.f32 %v3093, %v3181
        %3183 = vmatmul.bf16.gmra.mxu0 %v1003
        %v3184 = vpop.f32.mrf.mxu0
        %v3185 = vadd.f32 %v3096, %v3184
        %v3186 = vpop.f32.mrf.mxu0
        %v3187 = vadd.f32 %v3098, %v3186
        %3188 = vmatmul.bf16.gmra.mxu0 %v1007
        %v3189 = vpop.f32.mrf.mxu0
        %v3190 = vadd.f32 %v3101, %v3189
        %v3191 = vpop.f32.mrf.mxu0
        %v3192 = vadd.f32 %v3103, %v3191
        %3193 = vmatmul.bf16.gmra.mxu0 %v1011
        %v3194 = vpop.f32.mrf.mxu0
        %v3195 = vadd.f32 %v3106, %v3194
        %v3196 = vpop.f32.mrf.mxu0
        %v3197 = vadd.f32 %v3108, %v3196
        %3198 = vmatmul.bf16.gmra.mxu0 %v1015
        %v3199 = vpop.f32.mrf.mxu0
        %v3200 = vadd.f32 %v3111, %v3199
        %v3201 = vpop.f32.mrf.mxu0
        %v3202 = vadd.f32 %v3113, %v3201
        %3203 = vmatmul.bf16.gmra.mxu0 %v1019
        %v3204 = vpop.f32.mrf.mxu0
        %v3205 = vadd.f32 %v3116, %v3204
        %v3206 = vpop.f32.mrf.mxu0
        %v3207 = vadd.f32 %v3118, %v3206
        %3208 = vmatmul.bf16.gmra.mxu0 %v1023
        %v3209 = vpop.f32.mrf.mxu0
        %v3210 = vadd.f32 %v3121, %v3209
        %v3211 = vpop.f32.mrf.mxu0
        %v3212 = vadd.f32 %v3123, %v3211
        %3213 = vmatmul.bf16.gmra.mxu0 %v1027
        %v3214 = vpop.f32.mrf.mxu0
        %v3215 = vadd.f32 %v3126, %v3214
        %v3216 = vpop.f32.mrf.mxu0
        %v3217 = vadd.f32 %v3128, %v3216
        %3218 = vmatmul.bf16.gmra.mxu0 %v1031
        %v3219 = vpop.f32.mrf.mxu0
        %v3220 = vadd.f32 %v3131, %v3219
        %v3221 = vpop.f32.mrf.mxu0
        %v3222 = vadd.f32 %v3133, %v3221
        %3223 = vdwg.mxu0
        %v3224 = vmax.f32 %v2077, 0.0
        %v3225 = vmax.f32 %v2433, 0.0
        %v3226 = vmax.f32 %v2789, 0.0
        %v3227 = vmax.f32 %v3145, 0.0
        %v3228 = vmax.f32 %v2079, 0.0
        %v3229 = vmax.f32 %v2435, 0.0
        %v3230 = vmax.f32 %v2791, 0.0
        %v3231 = vmax.f32 %v3147, 0.0
        %v3232 = vmax.f32 %v2082, 0.0
        %v3233 = vmax.f32 %v2438, 0.0
        %v3234 = vmax.f32 %v2794, 0.0
        %v3235 = vmax.f32 %v3150, 0.0
        %v3236 = vmax.f32 %v2084, 0.0
        %v3237 = vmax.f32 %v2440, 0.0
        %v3238 = vmax.f32 %v2796, 0.0
        %v3239 = vmax.f32 %v3152, 0.0
        %v3240 = vmax.f32 %v2087, 0.0
        %v3241 = vmax.f32 %v2443, 0.0
        %v3242 = vmax.f32 %v2799, 0.0
        %v3243 = vmax.f32 %v3155, 0.0
        %v3244 = vmax.f32 %v2089, 0.0
        %v3245 = vmax.f32 %v2445, 0.0
        %v3246 = vmax.f32 %v2801, 0.0
        %v3247 = vmax.f32 %v3157, 0.0
        %v3248 = vmax.f32 %v2092, 0.0
        %v3249 = vmax.f32 %v2448, 0.0
        %v3250 = vmax.f32 %v2804, 0.0
        %v3251 = vmax.f32 %v3160, 0.0
        %v3252 = vmax.f32 %v2094, 0.0
        %v3253 = vmax.f32 %v2450, 0.0
        %v3254 = vmax.f32 %v2806, 0.0
        %v3255 = vmax.f32 %v3162, 0.0
        %v3256 = vmax.f32 %v2097, 0.0
        %v3257 = vmax.f32 %v2453, 0.0
        %v3258 = vmax.f32 %v2809, 0.0
        %v3259 = vmax.f32 %v3165, 0.0
        %v3260 = vmax.f32 %v2099, 0.0
        %v3261 = vmax.f32 %v2455, 0.0
        %v3262 = vmax.f32 %v2811, 0.0
        %v3263 = vmax.f32 %v3167, 0.0
        %v3264 = vmax.f32 %v2102, 0.0
        %v3265 = vmax.f32 %v2458, 0.0
        %v3266 = vmax.f32 %v2814, 0.0
        %v3267 = vmax.f32 %v3170, 0.0
        %v3268 = vmax.f32 %v2104, 0.0
        %v3269 = vmax.f32 %v2460, 0.0
        %v3270 = vmax.f32 %v2816, 0.0
        %v3271 = vmax.f32 %v3172, 0.0
        %v3272 = vmax.f32 %v2107, 0.0
        %v3273 = vmax.f32 %v2463, 0.0
        %v3274 = vmax.f32 %v2819, 0.0
        %v3275 = vmax.f32 %v3175, 0.0
        %v3276 = vmax.f32 %v2109, 0.0
        %v3277 = vmax.f32 %v2465, 0.0
        %v3278 = vmax.f32 %v2821, 0.0
        %v3279 = vmax.f32 %v3177, 0.0
        %v3280 = vmax.f32 %v2112, 0.0
        %v3281 = vmax.f32 %v2468, 0.0
        %v3282 = vmax.f32 %v2824, 0.0
        %v3283 = vmax.f32 %v3180, 0.0
        %v3284 = vmax.f32 %v2114, 0.0
        %v3285 = vmax.f32 %v2470, 0.0
        %v3286 = vmax.f32 %v2826, 0.0
        %v3287 = vmax.f32 %v3182, 0.0
        %v3288 = vmax.f32 %v2117, 0.0
        %v3289 = vmax.f32 %v2473, 0.0
        %v3290 = vmax.f32 %v2829, 0.0
        %v3291 = vmax.f32 %v3185, 0.0
        %v3292 = vmax.f32 %v2119, 0.0
        %v3293 = vmax.f32 %v2475, 0.0
        %v3294 = vmax.f32 %v2831, 0.0
        %v3295 = vmax.f32 %v3187, 0.0
        %v3296 = vmax.f32 %v2122, 0.0
        %v3297 = vmax.f32 %v2478, 0.0
        %v3298 = vmax.f32 %v2834, 0.0
        %v3299 = vmax.f32 %v3190, 0.0
        %v3300 = vmax.f32 %v2124, 0.0
        %v3301 = vmax.f32 %v2480, 0.0
        %v3302 = vmax.f32 %v2836, 0.0
        %v3303 = vmax.f32 %v3192, 0.0
        %v3304 = vmax.f32 %v2127, 0.0
        %v3305 = vmax.f32 %v2483, 0.0
        %v3306 = vmax.f32 %v2839, 0.0
        %v3307 = vmax.f32 %v3195, 0.0
        %v3308 = vmax.f32 %v2129, 0.0
        %v3309 = vmax.f32 %v2485, 0.0
        %v3310 = vmax.f32 %v2841, 0.0
        %v3311 = vmax.f32 %v3197, 0.0
        %v3312 = vmax.f32 %v2132, 0.0
        %v3313 = vmax.f32 %v2488, 0.0
        %v3314 = vmax.f32 %v2844, 0.0
        %v3315 = vmax.f32 %v3200, 0.0
        %v3316 = vmax.f32 %v2134, 0.0
        %v3317 = vmax.f32 %v2490, 0.0
        %v3318 = vmax.f32 %v2846, 0.0
        %v3319 = vmax.f32 %v3202, 0.0
        %v3320 = vmax.f32 %v2137, 0.0
        %v3321 = vmax.f32 %v2493, 0.0
        %v3322 = vmax.f32 %v2849, 0.0
        %v3323 = vmax.f32 %v3205, 0.0
        %v3324 = vmax.f32 %v2139, 0.0
        %v3325 = vmax.f32 %v2495, 0.0
        %v3326 = vmax.f32 %v2851, 0.0
        %v3327 = vmax.f32 %v3207, 0.0
        %v3328 = vmax.f32 %v2142, 0.0
        %v3329 = vmax.f32 %v2498, 0.0
        %v3330 = vmax.f32 %v2854, 0.0
        %v3331 = vmax.f32 %v3210, 0.0
        %v3332 = vmax.f32 %v2144, 0.0
        %v3333 = vmax.f32 %v2500, 0.0
        %v3334 = vmax.f32 %v2856, 0.0
        %v3335 = vmax.f32 %v3212, 0.0
        %v3336 = vmax.f32 %v2147, 0.0
        %v3337 = vmax.f32 %v2503, 0.0
        %v3338 = vmax.f32 %v2859, 0.0
        %v3339 = vmax.f32 %v3215, 0.0
        %v3340 = vmax.f32 %v2149, 0.0
        %v3341 = vmax.f32 %v2505, 0.0
        %v3342 = vmax.f32 %v2861, 0.0
        %v3343 = vmax.f32 %v3217, 0.0
        %v3344 = vmax.f32 %v2152, 0.0
        %v3345 = vmax.f32 %v2508, 0.0
        %v3346 = vmax.f32 %v2864, 0.0
        %v3347 = vmax.f32 %v3220, 0.0
        %v3348 = vmax.f32 %v2154, 0.0
        %v3349 = vmax.f32 %v2510, 0.0
        %v3350 = vmax.f32 %v2866, 0.0
        %v3351 = vmax.f32 %v3222, 0.0
        %v3352 = vld [vmem:[#allocation2] sm:$0xff]
        %v3353 = vld [vmem:[#allocation2 + $0x8] sm:$0xff]
        %v3354 = vld [vmem:[#allocation2 + $0x10] sm:$0xff]
        %v3355 = vld [vmem:[#allocation2 + $0x18] sm:$0xff]
        %v3356 = vadd.f32 %v3224, %v3228
        %v3357 = vadd.f32 %v3356, %v3232
        %v3358 = vadd.f32 %v3357, %v3236
        %v3359 = vadd.f32 %v3358, %v3240
        %v3360 = vadd.f32 %v3359, %v3244
        %v3361 = vadd.f32 %v3360, %v3248
        %v3362 = vadd.f32 %v3361, %v3252
        %v3363 = vadd.f32 %v3362, %v3256
        %v3364 = vadd.f32 %v3363, %v3260
        %v3365 = vadd.f32 %v3364, %v3264
        %v3366 = vadd.f32 %v3365, %v3268
        %v3367 = vadd.f32 %v3366, %v3272
        %v3368 = vadd.f32 %v3367, %v3276
        %v3369 = vadd.f32 %v3368, %v3280
        %v3370 = vadd.f32 %v3369, %v3284
        %v3371 = vadd.f32 %v3370, %v3288
        %v3372 = vadd.f32 %v3371, %v3292
        %v3373 = vadd.f32 %v3372, %v3296
        %v3374 = vadd.f32 %v3373, %v3300
        %v3375 = vadd.f32 %v3374, %v3304
        %v3376 = vadd.f32 %v3375, %v3308
        %v3377 = vadd.f32 %v3376, %v3312
        %v3378 = vadd.f32 %v3377, %v3316
        %v3379 = vadd.f32 %v3378, %v3320
        %v3380 = vadd.f32 %v3379, %v3324
        %v3381 = vadd.f32 %v3380, %v3328
        %v3382 = vadd.f32 %v3381, %v3332
        %v3383 = vadd.f32 %v3382, %v3336
        %v3384 = vadd.f32 %v3383, %v3340
        %v3385 = vadd.f32 %v3384, %v3344
        %v3386 = vadd.f32 %v3385, %v3348
        %v3387 = vadd.f32 %v3225, %v3229
        %v3388 = vadd.f32 %v3387, %v3233
        %v3389 = vadd.f32 %v3388, %v3237
        %v3390 = vadd.f32 %v3389, %v3241
        %v3391 = vadd.f32 %v3390, %v3245
        %v3392 = vadd.f32 %v3391, %v3249
        %v3393 = vadd.f32 %v3392, %v3253
        %v3394 = vadd.f32 %v3393, %v3257
        %v3395 = vadd.f32 %v3394, %v3261
        %v3396 = vadd.f32 %v3395, %v3265
        %v3397 = vadd.f32 %v3396, %v3269
        %v3398 = vadd.f32 %v3397, %v3273
        %v3399 = vadd.f32 %v3398, %v3277
        %v3400 = vadd.f32 %v3399, %v3281
        %v3401 = vadd.f32 %v3400, %v3285
        %v3402 = vadd.f32 %v3401, %v3289
        %v3403 = vadd.f32 %v3402, %v3293
        %v3404 = vadd.f32 %v3403, %v3297
        %v3405 = vadd.f32 %v3404, %v3301
        %v3406 = vadd.f32 %v3405, %v3305
        %v3407 = vadd.f32 %v3406, %v3309
        %v3408 = vadd.f32 %v3407, %v3313
        %v3409 = vadd.f32 %v3408, %v3317
        %v3410 = vadd.f32 %v3409, %v3321
        %v3411 = vadd.f32 %v3410, %v3325
        %v3412 = vadd.f32 %v3411, %v3329
        %v3413 = vadd.f32 %v3412, %v3333
        %v3414 = vadd.f32 %v3413, %v3337
        %v3415 = vadd.f32 %v3414, %v3341
        %v3416 = vadd.f32 %v3415, %v3345
        %v3417 = vadd.f32 %v3416, %v3349
        %v3418 = vadd.f32 %v3226, %v3230
        %v3419 = vadd.f32 %v3418, %v3234
        %v3420 = vadd.f32 %v3419, %v3238
        %v3421 = vadd.f32 %v3420, %v3242
        %v3422 = vadd.f32 %v3421, %v3246
        %v3423 = vadd.f32 %v3422, %v3250
        %v3424 = vadd.f32 %v3423, %v3254
        %v3425 = vadd.f32 %v3424, %v3258
        %v3426 = vadd.f32 %v3425, %v3262
        %v3427 = vadd.f32 %v3426, %v3266
        %v3428 = vadd.f32 %v3427, %v3270
        %v3429 = vadd.f32 %v3428, %v3274
        %v3430 = vadd.f32 %v3429, %v3278
        %v3431 = vadd.f32 %v3430, %v3282
        %v3432 = vadd.f32 %v3431, %v3286
        %v3433 = vadd.f32 %v3432, %v3290
        %v3434 = vadd.f32 %v3433, %v3294
        %v3435 = vadd.f32 %v3434, %v3298
        %v3436 = vadd.f32 %v3435, %v3302
        %v3437 = vadd.f32 %v3436, %v3306
        %v3438 = vadd.f32 %v3437, %v3310
        %v3439 = vadd.f32 %v3438, %v3314
        %v3440 = vadd.f32 %v3439, %v3318
        %v3441 = vadd.f32 %v3440, %v3322
        %v3442 = vadd.f32 %v3441, %v3326
        %v3443 = vadd.f32 %v3442, %v3330
        %v3444 = vadd.f32 %v3443, %v3334
        %v3445 = vadd.f32 %v3444, %v3338
        %v3446 = vadd.f32 %v3445, %v3342
        %v3447 = vadd.f32 %v3446, %v3346
        %v3448 = vadd.f32 %v3447, %v3350
        %v3449 = vadd.f32 %v3227, %v3231
        %v3450 = vadd.f32 %v3449, %v3235
        %v3451 = vadd.f32 %v3450, %v3239
        %v3452 = vadd.f32 %v3451, %v3243
        %v3453 = vadd.f32 %v3452, %v3247
        %v3454 = vadd.f32 %v3453, %v3251
        %v3455 = vadd.f32 %v3454, %v3255
        %v3456 = vadd.f32 %v3455, %v3259
        %v3457 = vadd.f32 %v3456, %v3263
        %v3458 = vadd.f32 %v3457, %v3267
        %v3459 = vadd.f32 %v3458, %v3271
        %v3460 = vadd.f32 %v3459, %v3275
        %v3461 = vadd.f32 %v3460, %v3279
        %v3462 = vadd.f32 %v3461, %v3283
        %v3463 = vadd.f32 %v3462, %v3287
        %v3464 = vadd.f32 %v3463, %v3291
        %v3465 = vadd.f32 %v3464, %v3295
        %v3466 = vadd.f32 %v3465, %v3299
        %v3467 = vadd.f32 %v3466, %v3303
        %v3468 = vadd.f32 %v3467, %v3307
        %v3469 = vadd.f32 %v3468, %v3311
        %v3470 = vadd.f32 %v3469, %v3315
        %v3471 = vadd.f32 %v3470, %v3319
        %v3472 = vadd.f32 %v3471, %v3323
        %v3473 = vadd.f32 %v3472, %v3327
        %v3474 = vadd.f32 %v3473, %v3331
        %v3475 = vadd.f32 %v3474, %v3335
        %v3476 = vadd.f32 %v3475, %v3339
        %v3477 = vadd.f32 %v3476, %v3343
        %v3478 = vadd.f32 %v3477, %v3347
        %v3479 = vadd.f32 %v3478, %v3351
        %v3480 = vadd.f32 %v3352, %v3386
        %v3481 = vadd.f32 %v3353, %v3417
        %v3482 = vadd.f32 %v3354, %v3448
        %v3483 = vadd.f32 %v3355, %v3479
        %3484 = vst [vmem:[#allocation2] sm:$0xff] %v3480
        %3485 = vst [vmem:[#allocation2 + $0x8] sm:$0xff] %v3481
        %3486 = vst [vmem:[#allocation2 + $0x10] sm:$0xff] %v3482
        %3487 = vst [vmem:[#allocation2 + $0x18] sm:$0xff] %v3483
        %v3488 = vld [vmem:[#allocation3] sm:$0xff]
        %v3489 = vld [vmem:[#allocation3 + $0x8] sm:$0xff]
        %v3490 = vld [vmem:[#allocation3 + $0x10] sm:$0xff]
        %v3491 = vld [vmem:[#allocation3 + $0x18] sm:$0xff]
        %v3492 = vmax.f32 %v3224, %v3228
        %v3493 = vmax.f32 %v3492, %v3232
        %v3494 = vmax.f32 %v3493, %v3236
        %v3495 = vmax.f32 %v3494, %v3240
        %v3496 = vmax.f32 %v3495, %v3244
        %v3497 = vmax.f32 %v3496, %v3248
        %v3498 = vmax.f32 %v3497, %v3252
        %v3499 = vmax.f32 %v3498, %v3256
        %v3500 = vmax.f32 %v3499, %v3260
        %v3501 = vmax.f32 %v3500, %v3264
        %v3502 = vmax.f32 %v3501, %v3268
        %v3503 = vmax.f32 %v3502, %v3272
        %v3504 = vmax.f32 %v3503, %v3276
        %v3505 = vmax.f32 %v3504, %v3280
        %v3506 = vmax.f32 %v3505, %v3284
        %v3507 = vmax.f32 %v3506, %v3288
        %v3508 = vmax.f32 %v3507, %v3292
        %v3509 = vmax.f32 %v3508, %v3296
        %v3510 = vmax.f32 %v3509, %v3300
        %v3511 = vmax.f32 %v3510, %v3304
        %v3512 = vmax.f32 %v3511, %v3308
        %v3513 = vmax.f32 %v3512, %v3312
        %v3514 = vmax.f32 %v3513, %v3316
        %v3515 = vmax.f32 %v3514, %v3320
        %v3516 = vmax.f32 %v3515, %v3324
        %v3517 = vmax.f32 %v3516, %v3328
        %v3518 = vmax.f32 %v3517, %v3332
        %v3519 = vmax.f32 %v3518, %v3336
        %v3520 = vmax.f32 %v3519, %v3340
        %v3521 = vmax.f32 %v3520, %v3344
        %v3522 = vmax.f32 %v3521, %v3348
        %v3523 = vmax.f32 %v3225, %v3229
        %v3524 = vmax.f32 %v3523, %v3233
        %v3525 = vmax.f32 %v3524, %v3237
        %v3526 = vmax.f32 %v3525, %v3241
        %v3527 = vmax.f32 %v3526, %v3245
        %v3528 = vmax.f32 %v3527, %v3249
        %v3529 = vmax.f32 %v3528, %v3253
        %v3530 = vmax.f32 %v3529, %v3257
        %v3531 = vmax.f32 %v3530, %v3261
        %v3532 = vmax.f32 %v3531, %v3265
        %v3533 = vmax.f32 %v3532, %v3269
        %v3534 = vmax.f32 %v3533, %v3273
        %v3535 = vmax.f32 %v3534, %v3277
        %v3536 = vmax.f32 %v3535, %v3281
        %v3537 = vmax.f32 %v3536, %v3285
        %v3538 = vmax.f32 %v3537, %v3289
        %v3539 = vmax.f32 %v3538, %v3293
        %v3540 = vmax.f32 %v3539, %v3297
        %v3541 = vmax.f32 %v3540, %v3301
        %v3542 = vmax.f32 %v3541, %v3305
        %v3543 = vmax.f32 %v3542, %v3309
        %v3544 = vmax.f32 %v3543, %v3313
        %v3545 = vmax.f32 %v3544, %v3317
        %v3546 = vmax.f32 %v3545, %v3321
        %v3547 = vmax.f32 %v3546, %v3325
        %v3548 = vmax.f32 %v3547, %v3329
        %v3549 = vmax.f32 %v3548, %v3333
        %v3550 = vmax.f32 %v3549, %v3337
        %v3551 = vmax.f32 %v3550, %v3341
        %v3552 = vmax.f32 %v3551, %v3345
        %v3553 = vmax.f32 %v3552, %v3349
        %v3554 = vmax.f32 %v3226, %v3230
        %v3555 = vmax.f32 %v3554, %v3234
        %v3556 = vmax.f32 %v3555, %v3238
        %v3557 = vmax.f32 %v3556, %v3242
        %v3558 = vmax.f32 %v3557, %v3246
        %v3559 = vmax.f32 %v3558, %v3250
        %v3560 = vmax.f32 %v3559, %v3254
        %v3561 = vmax.f32 %v3560, %v3258
        %v3562 = vmax.f32 %v3561, %v3262
        %v3563 = vmax.f32 %v3562, %v3266
        %v3564 = vmax.f32 %v3563, %v3270
        %v3565 = vmax.f32 %v3564, %v3274
        %v3566 = vmax.f32 %v3565, %v3278
        %v3567 = vmax.f32 %v3566, %v3282
        %v3568 = vmax.f32 %v3567, %v3286
        %v3569 = vmax.f32 %v3568, %v3290
        %v3570 = vmax.f32 %v3569, %v3294
        %v3571 = vmax.f32 %v3570, %v3298
        %v3572 = vmax.f32 %v3571, %v3302
        %v3573 = vmax.f32 %v3572, %v3306
        %v3574 = vmax.f32 %v3573, %v3310
        %v3575 = vmax.f32 %v3574, %v3314
        %v3576 = vmax.f32 %v3575, %v3318
        %v3577 = vmax.f32 %v3576, %v3322
        %v3578 = vmax.f32 %v3577, %v3326
        %v3579 = vmax.f32 %v3578, %v3330
        %v3580 = vmax.f32 %v3579, %v3334
        %v3581 = vmax.f32 %v3580, %v3338
        %v3582 = vmax.f32 %v3581, %v3342
        %v3583 = vmax.f32 %v3582, %v3346
        %v3584 = vmax.f32 %v3583, %v3350
        %v3585 = vmax.f32 %v3227, %v3231
        %v3586 = vmax.f32 %v3585, %v3235
        %v3587 = vmax.f32 %v3586, %v3239
        %v3588 = vmax.f32 %v3587, %v3243
        %v3589 = vmax.f32 %v3588, %v3247
        %v3590 = vmax.f32 %v3589, %v3251
        %v3591 = vmax.f32 %v3590, %v3255
        %v3592 = vmax.f32 %v3591, %v3259
        %v3593 = vmax.f32 %v3592, %v3263
        %v3594 = vmax.f32 %v3593, %v3267
        %v3595 = vmax.f32 %v3594, %v3271
        %v3596 = vmax.f32 %v3595, %v3275
        %v3597 = vmax.f32 %v3596, %v3279
        %v3598 = vmax.f32 %v3597, %v3283
        %v3599 = vmax.f32 %v3598, %v3287
        %v3600 = vmax.f32 %v3599, %v3291
        %v3601 = vmax.f32 %v3600, %v3295
        %v3602 = vmax.f32 %v3601, %v3299
        %v3603 = vmax.f32 %v3602, %v3303
        %v3604 = vmax.f32 %v3603, %v3307
        %v3605 = vmax.f32 %v3604, %v3311
        %v3606 = vmax.f32 %v3605, %v3315
        %v3607 = vmax.f32 %v3606, %v3319
        %v3608 = vmax.f32 %v3607, %v3323
        %v3609 = vmax.f32 %v3608, %v3327
        %v3610 = vmax.f32 %v3609, %v3331
        %v3611 = vmax.f32 %v3610, %v3335
        %v3612 = vmax.f32 %v3611, %v3339
        %v3613 = vmax.f32 %v3612, %v3343
        %v3614 = vmax.f32 %v3613, %v3347
        %v3615 = vmax.f32 %v3614, %v3351
        %v3616 = vmax.f32 %v3488, %v3522
        %v3617 = vmax.f32 %v3489, %v3553
        %v3618 = vmax.f32 %v3490, %v3584
        %v3619 = vmax.f32 %v3491, %v3615
        %3620 = vst [vmem:[#allocation3] sm:$0xff] %v3616
        %3621 = vst [vmem:[#allocation3 + $0x8] sm:$0xff] %v3617
        %3622 = vst [vmem:[#allocation3 + $0x10] sm:$0xff] %v3618
        %3623 = vst [vmem:[#allocation3 + $0x18] sm:$0xff] %v3619
        // Predicated region
        $region53: #{tpu_custom_call.1} parent=39 // pred_check
          %p3624 = pneg %p286
        $region54: #{tpu_custom_call.1} parent=39 // pred_check_branch
          %3626 = sbr.rel (%p3624) target = $region56
        $region55: #{tpu_custom_call.1} parent=39 // pred_region
          %v3627 = vld [vmem:[#allocation2] sm:$0xff]
          %v3628 = vld [vmem:[#allocation2 + $0x8] sm:$0xff]
          %v3629 = vld [vmem:[#allocation2 + $0x10] sm:$0xff]
          %v3630 = vld [vmem:[#allocation2 + $0x18] sm:$0xff]
          %v3631 = vrot.slane %v3627, 4
          %v3632 = vadd.f32 %v3627, %v3631
          %v3633 = vrot.slane %v3632, 2
          %v3634 = vadd.f32 %v3632, %v3633
          %v3635 = vrot.slane %v3634, 1
          %v3636 = vadd.f32 %v3634, %v3635
          %v3637 = vrot.slane %v3628, 4
          %v3638 = vadd.f32 %v3628, %v3637
          %v3639 = vrot.slane %v3638, 2
          %v3640 = vadd.f32 %v3638, %v3639
          %v3641 = vrot.slane %v3640, 1
          %v3642 = vadd.f32 %v3640, %v3641
          %v3643 = vrot.slane %v3629, 4
          %v3644 = vadd.f32 %v3629, %v3643
          %v3645 = vrot.slane %v3644, 2
          %v3646 = vadd.f32 %v3644, %v3645
          %v3647 = vrot.slane %v3646, 1
          %v3648 = vadd.f32 %v3646, %v3647
          %v3649 = vrot.slane %v3630, 4
          %v3650 = vadd.f32 %v3630, %v3649
          %v3651 = vrot.slane %v3650, 2
          %v3652 = vadd.f32 %v3650, %v3651
          %v3653 = vrot.slane %v3652, 1
          %v3654 = vadd.f32 %v3652, %v3653
          %v3655 = vmul.f32 %v3636, 0.00390625
          %v3656 = vmul.f32 %v3642, 0.00390625
          %v3657 = vmul.f32 %v3648, 0.00390625
          %v3658 = vmul.f32 %v3654, 0.00390625
          %v3659 = vld [vmem:[#allocation3] sm:$0xff]
          %v3660 = vld [vmem:[#allocation3 + $0x8] sm:$0xff]
          %v3661 = vld [vmem:[#allocation3 + $0x10] sm:$0xff]
          %v3662 = vld [vmem:[#allocation3 + $0x18] sm:$0xff]
          %v3663 = vrot.slane %v3659, 4
          %v3664 = vmax.f32 %v3659, %v3663
          %v3665 = vrot.slane %v3664, 2
          %v3666 = vmax.f32 %v3664, %v3665
          %v3667 = vrot.slane %v3666, 1
          %v3668 = vmax.f32 %v3666, %v3667
          %v3669 = vrot.slane %v3660, 4
          %v3670 = vmax.f32 %v3660, %v3669
          %v3671 = vrot.slane %v3670, 2
          %v3672 = vmax.f32 %v3670, %v3671
          %v3673 = vrot.slane %v3672, 1
          %v3674 = vmax.f32 %v3672, %v3673
          %v3675 = vrot.slane %v3661, 4
          %v3676 = vmax.f32 %v3661, %v3675
          %v3677 = vrot.slane %v3676, 2
          %v3678 = vmax.f32 %v3676, %v3677
          %v3679 = vrot.slane %v3678, 1
          %v3680 = vmax.f32 %v3678, %v3679
          %v3681 = vrot.slane %v3662, 4
          %v3682 = vmax.f32 %v3662, %v3681
          %v3683 = vrot.slane %v3682, 2
          %v3684 = vmax.f32 %v3682, %v3683
          %v3685 = vrot.slane %v3684, 1
          %v3686 = vmax.f32 %v3684, %v3685
          %v3687 = vpack.c.bf16 %v3655, %v3655
          %v3688 = vpack.c.bf16 %v3656, %v3656
          %v3689 = vpack.c.bf16 %v3657, %v3657
          %v3690 = vpack.c.bf16 %v3658, %v3658
          %v3691 = vpack.c.bf16 %v3668, %v3668
          %v3692 = vpack.c.bf16 %v3674, %v3674
          %v3693 = vpack.c.bf16 %v3680, %v3680
          %v3694 = vpack.c.bf16 %v3686, %v3686
          %v3695 = vld [vmem:[#allocation7] sm:$0xf]
          %v3696 = vld [vmem:[#allocation7 + $0x4] sm:$0xf]
          %v3697 = vld [vmem:[#allocation7 + $0x8] sm:$0xf]
          %v3698 = vld [vmem:[#allocation7 + $0xc] sm:$0xf]
          %v3699 = vld [vmem:[#allocation7 + $0x10] sm:$0xf]
          %v3700 = vld [vmem:[#allocation7 + $0x14] sm:$0xf]
          %v3701 = vld [vmem:[#allocation7 + $0x18] sm:$0xf]
          %v3702 = vld [vmem:[#allocation7 + $0x1c] sm:$0xf]
          %v3703 = vld [vmem:[#allocation7 + $0x20] sm:$0xf]
          %v3704 = vld [vmem:[#allocation7 + $0x24] sm:$0xf]
          %v3705 = vld [vmem:[#allocation7 + $0x28] sm:$0xf]
          %v3706 = vld [vmem:[#allocation7 + $0x2c] sm:$0xf]
          %v3707 = vld [vmem:[#allocation7 + $0x30] sm:$0xf]
          %v3708 = vld [vmem:[#allocation7 + $0x34] sm:$0xf]
          %v3709 = vld [vmem:[#allocation7 + $0x38] sm:$0xf]
          %v3710 = vld [vmem:[#allocation7 + $0x3c] sm:$0xf]
          %v3711 = vld [vmem:[#allocation7 + $0x40] sm:$0xf]
          %v3712 = vld [vmem:[#allocation7 + $0x44] sm:$0xf]
          %v3713 = vld [vmem:[#allocation7 + $0x48] sm:$0xf]
          %v3714 = vld [vmem:[#allocation7 + $0x4c] sm:$0xf]
          %v3715 = vld [vmem:[#allocation7 + $0x50] sm:$0xf]
          %v3716 = vld [vmem:[#allocation7 + $0x54] sm:$0xf]
          %v3717 = vld [vmem:[#allocation7 + $0x58] sm:$0xf]
          %v3718 = vld [vmem:[#allocation7 + $0x5c] sm:$0xf]
          %v3719 = vld [vmem:[#allocation7 + $0x60] sm:$0xf]
          %v3720 = vld [vmem:[#allocation7 + $0x64] sm:$0xf]
          %v3721 = vld [vmem:[#allocation7 + $0x68] sm:$0xf]
          %v3722 = vld [vmem:[#allocation7 + $0x6c] sm:$0xf]
          %v3723 = vld [vmem:[#allocation7 + $0x70] sm:$0xf]
          %v3724 = vld [vmem:[#allocation7 + $0x74] sm:$0xf]
          %v3725 = vld [vmem:[#allocation7 + $0x78] sm:$0xf]
          %v3726 = vld [vmem:[#allocation7 + $0x7c] sm:$0xf]
          %v3727 = vld [vmem:[#allocation7 + $0x80] sm:$0xf]
          %v3728 = vld [vmem:[#allocation7 + $0x84] sm:$0xf]
          %v3729 = vld [vmem:[#allocation7 + $0x88] sm:$0xf]
          %v3730 = vld [vmem:[#allocation7 + $0x8c] sm:$0xf]
          %v3731 = vld [vmem:[#allocation7 + $0x90] sm:$0xf]
          %v3732 = vld [vmem:[#allocation7 + $0x94] sm:$0xf]
          %v3733 = vld [vmem:[#allocation7 + $0x98] sm:$0xf]
          %v3734 = vld [vmem:[#allocation7 + $0x9c] sm:$0xf]
          %v3735 = vld [vmem:[#allocation7 + $0xa0] sm:$0xf]
          %v3736 = vld [vmem:[#allocation7 + $0xa4] sm:$0xf]
          %v3737 = vld [vmem:[#allocation7 + $0xa8] sm:$0xf]
          %v3738 = vld [vmem:[#allocation7 + $0xac] sm:$0xf]
          %v3739 = vld [vmem:[#allocation7 + $0xb0] sm:$0xf]
          %v3740 = vld [vmem:[#allocation7 + $0xb4] sm:$0xf]
          %v3741 = vld [vmem:[#allocation7 + $0xb8] sm:$0xf]
          %v3742 = vld [vmem:[#allocation7 + $0xbc] sm:$0xf]
          %v3743 = vld [vmem:[#allocation7 + $0xc0] sm:$0xf]
          %v3744 = vld [vmem:[#allocation7 + $0xc4] sm:$0xf]
          %v3745 = vld [vmem:[#allocation7 + $0xc8] sm:$0xf]
          %v3746 = vld [vmem:[#allocation7 + $0xcc] sm:$0xf]
          %v3747 = vld [vmem:[#allocation7 + $0xd0] sm:$0xf]
          %v3748 = vld [vmem:[#allocation7 + $0xd4] sm:$0xf]
          %v3749 = vld [vmem:[#allocation7 + $0xd8] sm:$0xf]
          %v3750 = vld [vmem:[#allocation7 + $0xdc] sm:$0xf]
          %v3751 = vld [vmem:[#allocation7 + $0xe0] sm:$0xf]
          %v3752 = vld [vmem:[#allocation7 + $0xe4] sm:$0xf]
          %v3753 = vld [vmem:[#allocation7 + $0xe8] sm:$0xf]
          %v3754 = vld [vmem:[#allocation7 + $0xec] sm:$0xf]
          %v3755 = vld [vmem:[#allocation7 + $0xf0] sm:$0xf]
          %v3756 = vld [vmem:[#allocation7 + $0xf4] sm:$0xf]
          %v3757 = vld [vmem:[#allocation7 + $0xf8] sm:$0xf]
          %v3758 = vld [vmem:[#allocation7 + $0xfc] sm:$0xf]
          %v3759 = vld [vmem:[%s4] sm:$0x1]
          %v3824 = vunpack.c.l.b16 %v3695
          %v3825 = vunpack.c.l.b16 %v3696
          %v3826 = vunpack.c.l.b16 %v3697
          %v3827 = vunpack.c.l.b16 %v3698
          %v3828 = vunpack.c.l.b16 %v3699
          %v3829 = vunpack.c.l.b16 %v3700
          %v3830 = vunpack.c.l.b16 %v3701
          %v3831 = vunpack.c.l.b16 %v3702
          %v3832 = vunpack.c.l.b16 %v3703
          %v3833 = vunpack.c.l.b16 %v3704
          %v3834 = vunpack.c.l.b16 %v3705
          %v3835 = vunpack.c.l.b16 %v3706
          %v3836 = vunpack.c.l.b16 %v3707
          %v3837 = vunpack.c.l.b16 %v3708
          %v3838 = vunpack.c.l.b16 %v3709
          %v3839 = vunpack.c.l.b16 %v3710
          %v3840 = vunpack.c.l.b16 %v3711
          %v3841 = vunpack.c.l.b16 %v3712
          %v3842 = vunpack.c.l.b16 %v3713
          %v3843 = vunpack.c.l.b16 %v3714
          %v3844 = vunpack.c.l.b16 %v3715
          %v3845 = vunpack.c.l.b16 %v3716
          %v3846 = vunpack.c.l.b16 %v3717
          %v3847 = vunpack.c.l.b16 %v3718
          %v3848 = vunpack.c.l.b16 %v3719
          %v3849 = vunpack.c.l.b16 %v3720
          %v3850 = vunpack.c.l.b16 %v3721
          %v3851 = vunpack.c.l.b16 %v3722
          %v3852 = vunpack.c.l.b16 %v3723
          %v3853 = vunpack.c.l.b16 %v3724
          %v3854 = vunpack.c.l.b16 %v3725
          %v3855 = vunpack.c.l.b16 %v3726
          %v3856 = vunpack.c.l.b16 %v3727
          %v3857 = vunpack.c.l.b16 %v3728
          %v3858 = vunpack.c.l.b16 %v3729
          %v3859 = vunpack.c.l.b16 %v3730
          %v3860 = vunpack.c.l.b16 %v3731
          %v3861 = vunpack.c.l.b16 %v3732
          %v3862 = vunpack.c.l.b16 %v3733
          %v3863 = vunpack.c.l.b16 %v3734
          %v3864 = vunpack.c.l.b16 %v3735
          %v3865 = vunpack.c.l.b16 %v3736
          %v3866 = vunpack.c.l.b16 %v3737
          %v3867 = vunpack.c.l.b16 %v3738
          %v3868 = vunpack.c.l.b16 %v3739
          %v3869 = vunpack.c.l.b16 %v3740
          %v3870 = vunpack.c.l.b16 %v3741
          %v3871 = vunpack.c.l.b16 %v3742
          %v3872 = vunpack.c.l.b16 %v3743
          %v3873 = vunpack.c.l.b16 %v3744
          %v3874 = vunpack.c.l.b16 %v3745
          %v3875 = vunpack.c.l.b16 %v3746
          %v3876 = vunpack.c.l.b16 %v3747
          %v3877 = vunpack.c.l.b16 %v3748
          %v3878 = vunpack.c.l.b16 %v3749
          %v3879 = vunpack.c.l.b16 %v3750
          %v3880 = vunpack.c.l.b16 %v3751
          %v3881 = vunpack.c.l.b16 %v3752
          %v3882 = vunpack.c.l.b16 %v3753
          %v3883 = vunpack.c.l.b16 %v3754
          %v3884 = vunpack.c.l.b16 %v3755
          %v3885 = vunpack.c.l.b16 %v3756
          %v3886 = vunpack.c.l.b16 %v3757
          %v3887 = vunpack.c.l.b16 %v3758
          %v3888 = vpack.c.b16 %v3825, %v3824
          %v3889 = vpack.c.b16 %v3827, %v3826
          %v3890 = vpack.c.b16 %v3829, %v3828
          %v3891 = vpack.c.b16 %v3831, %v3830
          %v3892 = vpack.c.b16 %v3833, %v3832
          %v3893 = vpack.c.b16 %v3835, %v3834
          %v3894 = vpack.c.b16 %v3837, %v3836
          %v3895 = vpack.c.b16 %v3839, %v3838
          %v3896 = vpack.c.b16 %v3841, %v3840
          %v3897 = vpack.c.b16 %v3843, %v3842
          %v3898 = vpack.c.b16 %v3845, %v3844
          %v3899 = vpack.c.b16 %v3847, %v3846
          %v3900 = vpack.c.b16 %v3849, %v3848
          %v3901 = vpack.c.b16 %v3851, %v3850
          %v3902 = vpack.c.b16 %v3853, %v3852
          %v3903 = vpack.c.b16 %v3855, %v3854
          %v3904 = vpack.c.b16 %v3857, %v3856
          %v3905 = vpack.c.b16 %v3859, %v3858
          %v3906 = vpack.c.b16 %v3861, %v3860
          %v3907 = vpack.c.b16 %v3863, %v3862
          %v3908 = vpack.c.b16 %v3865, %v3864
          %v3909 = vpack.c.b16 %v3867, %v3866
          %v3910 = vpack.c.b16 %v3869, %v3868
          %v3911 = vpack.c.b16 %v3871, %v3870
          %v3912 = vpack.c.b16 %v3873, %v3872
          %v3913 = vpack.c.b16 %v3875, %v3874
          %v3914 = vpack.c.b16 %v3877, %v3876
          %v3915 = vpack.c.b16 %v3879, %v3878
          %v3916 = vpack.c.b16 %v3881, %v3880
          %v3917 = vpack.c.b16 %v3883, %v3882
          %v3918 = vpack.c.b16 %v3885, %v3884
          %v3919 = vpack.c.b16 %v3887, %v3886
          %3952 = vmatpush.bf16.msra.mxu0 %v3895
          %3953 = vmatpush.bf16.msra.mxu0 %v3894
          %3954 = vmatpush.bf16.msra.mxu0 %v3893
          %3955 = vmatpush.bf16.msra.mxu0 %v3892
          %3956 = vmatpush.bf16.msra.mxu0 %v3891
          %3957 = vmatpush.bf16.msra.mxu0 %v3890
          %3958 = vmatpush.bf16.msra.mxu0 %v3889
          %3959 = vmatpush.bf16.msra.mxu0 %v3888
          %3960 = vmatmul.bf16.gmra.mxu0 %v3687
          %v3961 = vpop.f32.mrf.mxu0
          %v3962 = vadd.f32 %v3759, %v3961
          %v3963 = vpop.f32.mrf.mxu0
          %3964 = vdwg.mxu0
          %3965 = vmatpush.bf16.msra.mxu0 %v3903
          %3966 = vmatpush.bf16.msra.mxu0 %v3902
          %3967 = vmatpush.bf16.msra.mxu0 %v3901
          %3968 = vmatpush.bf16.msra.mxu0 %v3900
          %3969 = vmatpush.bf16.msra.mxu0 %v3899
          %3970 = vmatpush.bf16.msra.mxu0 %v3898
          %3971 = vmatpush.bf16.msra.mxu0 %v3897
          %3972 = vmatpush.bf16.msra.mxu0 %v3896
          %3973 = vmatmul.bf16.gmra.mxu0 %v3688
          %v3974 = vpop.f32.mrf.mxu0
          %v3975 = vadd.f32 %v3962, %v3974
          %v3976 = vpop.f32.mrf.mxu0
          %3977 = vdwg.mxu0
          %3978 = vmatpush.bf16.msra.mxu0 %v3911
          %3979 = vmatpush.bf16.msra.mxu0 %v3910
          %3980 = vmatpush.bf16.msra.mxu0 %v3909
          %3981 = vmatpush.bf16.msra.mxu0 %v3908
          %3982 = vmatpush.bf16.msra.mxu0 %v3907
          %3983 = vmatpush.bf16.msra.mxu0 %v3906
          %3984 = vmatpush.bf16.msra.mxu0 %v3905
          %3985 = vmatpush.bf16.msra.mxu0 %v3904
          %3986 = vmatmul.bf16.gmra.mxu0 %v3689
          %v3987 = vpop.f32.mrf.mxu0
          %v3988 = vadd.f32 %v3975, %v3987
          %v3989 = vpop.f32.mrf.mxu0
          %3990 = vdwg.mxu0
          %3991 = vmatpush.bf16.msra.mxu0 %v3919
          %3992 = vmatpush.bf16.msra.mxu0 %v3918
          %3993 = vmatpush.bf16.msra.mxu0 %v3917
          %3994 = vmatpush.bf16.msra.mxu0 %v3916
          %3995 = vmatpush.bf16.msra.mxu0 %v3915
          %3996 = vmatpush.bf16.msra.mxu0 %v3914
          %3997 = vmatpush.bf16.msra.mxu0 %v3913
          %3998 = vmatpush.bf16.msra.mxu0 %v3912
          %3999 = vmatmul.bf16.gmra.mxu0 %v3690
          %v4000 = vpop.f32.mrf.mxu0
          %v4001 = vadd.f32 %v3988, %v4000
          %v4002 = vpop.f32.mrf.mxu0
          %4003 = vdwg.mxu0
          %s4004 = scalar_lea.vmem [#allocation7], 256
          %v4005 = vld [vmem:[%s4004] sm:$0xf]
          %v4006 = vld [vmem:[%s4004 + $0x4] sm:$0xf]
          %v4007 = vld [vmem:[%s4004 + $0x8] sm:$0xf]
          %v4008 = vld [vmem:[%s4004 + $0xc] sm:$0xf]
          %v4009 = vld [vmem:[%s4004 + $0x10] sm:$0xf]
          %v4010 = vld [vmem:[%s4004 + $0x14] sm:$0xf]
          %v4011 = vld [vmem:[%s4004 + $0x18] sm:$0xf]
          %v4012 = vld [vmem:[%s4004 + $0x1c] sm:$0xf]
          %v4013 = vld [vmem:[%s4004 + $0x20] sm:$0xf]
          %v4014 = vld [vmem:[%s4004 + $0x24] sm:$0xf]
          %v4015 = vld [vmem:[%s4004 + $0x28] sm:$0xf]
          %v4016 = vld [vmem:[%s4004 + $0x2c] sm:$0xf]
          %v4017 = vld [vmem:[%s4004 + $0x30] sm:$0xf]
          %v4018 = vld [vmem:[%s4004 + $0x34] sm:$0xf]
          %v4019 = vld [vmem:[%s4004 + $0x38] sm:$0xf]
          %v4020 = vld [vmem:[%s4004 + $0x3c] sm:$0xf]
          %v4021 = vld [vmem:[%s4004 + $0x40] sm:$0xf]
          %v4022 = vld [vmem:[%s4004 + $0x44] sm:$0xf]
          %v4023 = vld [vmem:[%s4004 + $0x48] sm:$0xf]
          %v4024 = vld [vmem:[%s4004 + $0x4c] sm:$0xf]
          %v4025 = vld [vmem:[%s4004 + $0x50] sm:$0xf]
          %v4026 = vld [vmem:[%s4004 + $0x54] sm:$0xf]
          %v4027 = vld [vmem:[%s4004 + $0x58] sm:$0xf]
          %v4028 = vld [vmem:[%s4004 + $0x5c] sm:$0xf]
          %v4029 = vld [vmem:[%s4004 + $0x60] sm:$0xf]
          %v4030 = vld [vmem:[%s4004 + $0x64] sm:$0xf]
          %v4031 = vld [vmem:[%s4004 + $0x68] sm:$0xf]
          %v4032 = vld [vmem:[%s4004 + $0x6c] sm:$0xf]
          %v4033 = vld [vmem:[%s4004 + $0x70] sm:$0xf]
          %v4034 = vld [vmem:[%s4004 + $0x74] sm:$0xf]
          %v4035 = vld [vmem:[%s4004 + $0x78] sm:$0xf]
          %v4036 = vld [vmem:[%s4004 + $0x7c] sm:$0xf]
          %v4037 = vld [vmem:[%s4004 + $0x80] sm:$0xf]
          %v4038 = vld [vmem:[%s4004 + $0x84] sm:$0xf]
          %v4039 = vld [vmem:[%s4004 + $0x88] sm:$0xf]
          %v4040 = vld [vmem:[%s4004 + $0x8c] sm:$0xf]
          %v4041 = vld [vmem:[%s4004 + $0x90] sm:$0xf]
          %v4042 = vld [vmem:[%s4004 + $0x94] sm:$0xf]
          %v4043 = vld [vmem:[%s4004 + $0x98] sm:$0xf]
          %v4044 = vld [vmem:[%s4004 + $0x9c] sm:$0xf]
          %v4045 = vld [vmem:[%s4004 + $0xa0] sm:$0xf]
          %v4046 = vld [vmem:[%s4004 + $0xa4] sm:$0xf]
          %v4047 = vld [vmem:[%s4004 + $0xa8] sm:$0xf]
          %v4048 = vld [vmem:[%s4004 + $0xac] sm:$0xf]
          %v4049 = vld [vmem:[%s4004 + $0xb0] sm:$0xf]
          %v4050 = vld [vmem:[%s4004 + $0xb4] sm:$0xf]
          %v4051 = vld [vmem:[%s4004 + $0xb8] sm:$0xf]
          %v4052 = vld [vmem:[%s4004 + $0xbc] sm:$0xf]
          %v4053 = vld [vmem:[%s4004 + $0xc0] sm:$0xf]
          %v4054 = vld [vmem:[%s4004 + $0xc4] sm:$0xf]
          %v4055 = vld [vmem:[%s4004 + $0xc8] sm:$0xf]
          %v4056 = vld [vmem:[%s4004 + $0xcc] sm:$0xf]
          %v4057 = vld [vmem:[%s4004 + $0xd0] sm:$0xf]
          %v4058 = vld [vmem:[%s4004 + $0xd4] sm:$0xf]
          %v4059 = vld [vmem:[%s4004 + $0xd8] sm:$0xf]
          %v4060 = vld [vmem:[%s4004 + $0xdc] sm:$0xf]
          %v4061 = vld [vmem:[%s4004 + $0xe0] sm:$0xf]
          %v4062 = vld [vmem:[%s4004 + $0xe4] sm:$0xf]
          %v4063 = vld [vmem:[%s4004 + $0xe8] sm:$0xf]
          %v4064 = vld [vmem:[%s4004 + $0xec] sm:$0xf]
          %v4065 = vld [vmem:[%s4004 + $0xf0] sm:$0xf]
          %v4066 = vld [vmem:[%s4004 + $0xf4] sm:$0xf]
          %v4067 = vld [vmem:[%s4004 + $0xf8] sm:$0xf]
          %v4068 = vld [vmem:[%s4004 + $0xfc] sm:$0xf]
          %s4069 = scalar_lea.vmem %s4, 1
          %v4070 = vld [vmem:[%s4069] sm:$0x1]
          %v4135 = vunpack.c.l.b16 %v4005
          %v4136 = vunpack.c.l.b16 %v4006
          %v4137 = vunpack.c.l.b16 %v4007
          %v4138 = vunpack.c.l.b16 %v4008
          %v4139 = vunpack.c.l.b16 %v4009
          %v4140 = vunpack.c.l.b16 %v4010
          %v4141 = vunpack.c.l.b16 %v4011
          %v4142 = vunpack.c.l.b16 %v4012
          %v4143 = vunpack.c.l.b16 %v4013
          %v4144 = vunpack.c.l.b16 %v4014
          %v4145 = vunpack.c.l.b16 %v4015
          %v4146 = vunpack.c.l.b16 %v4016
          %v4147 = vunpack.c.l.b16 %v4017
          %v4148 = vunpack.c.l.b16 %v4018
          %v4149 = vunpack.c.l.b16 %v4019
          %v4150 = vunpack.c.l.b16 %v4020
          %v4151 = vunpack.c.l.b16 %v4021
          %v4152 = vunpack.c.l.b16 %v4022
          %v4153 = vunpack.c.l.b16 %v4023
          %v4154 = vunpack.c.l.b16 %v4024
          %v4155 = vunpack.c.l.b16 %v4025
          %v4156 = vunpack.c.l.b16 %v4026
          %v4157 = vunpack.c.l.b16 %v4027
          %v4158 = vunpack.c.l.b16 %v4028
          %v4159 = vunpack.c.l.b16 %v4029
          %v4160 = vunpack.c.l.b16 %v4030
          %v4161 = vunpack.c.l.b16 %v4031
          %v4162 = vunpack.c.l.b16 %v4032
          %v4163 = vunpack.c.l.b16 %v4033
          %v4164 = vunpack.c.l.b16 %v4034
          %v4165 = vunpack.c.l.b16 %v4035
          %v4166 = vunpack.c.l.b16 %v4036
          %v4167 = vunpack.c.l.b16 %v4037
          %v4168 = vunpack.c.l.b16 %v4038
          %v4169 = vunpack.c.l.b16 %v4039
          %v4170 = vunpack.c.l.b16 %v4040
          %v4171 = vunpack.c.l.b16 %v4041
          %v4172 = vunpack.c.l.b16 %v4042
          %v4173 = vunpack.c.l.b16 %v4043
          %v4174 = vunpack.c.l.b16 %v4044
          %v4175 = vunpack.c.l.b16 %v4045
          %v4176 = vunpack.c.l.b16 %v4046
          %v4177 = vunpack.c.l.b16 %v4047
          %v4178 = vunpack.c.l.b16 %v4048
          %v4179 = vunpack.c.l.b16 %v4049
          %v4180 = vunpack.c.l.b16 %v4050
          %v4181 = vunpack.c.l.b16 %v4051
          %v4182 = vunpack.c.l.b16 %v4052
          %v4183 = vunpack.c.l.b16 %v4053
          %v4184 = vunpack.c.l.b16 %v4054
          %v4185 = vunpack.c.l.b16 %v4055
          %v4186 = vunpack.c.l.b16 %v4056
          %v4187 = vunpack.c.l.b16 %v4057
          %v4188 = vunpack.c.l.b16 %v4058
          %v4189 = vunpack.c.l.b16 %v4059
          %v4190 = vunpack.c.l.b16 %v4060
          %v4191 = vunpack.c.l.b16 %v4061
          %v4192 = vunpack.c.l.b16 %v4062
          %v4193 = vunpack.c.l.b16 %v4063
          %v4194 = vunpack.c.l.b16 %v4064
          %v4195 = vunpack.c.l.b16 %v4065
          %v4196 = vunpack.c.l.b16 %v4066
          %v4197 = vunpack.c.l.b16 %v4067
          %v4198 = vunpack.c.l.b16 %v4068
          %v4199 = vpack.c.b16 %v4136, %v4135
          %v4200 = vpack.c.b16 %v4138, %v4137
          %v4201 = vpack.c.b16 %v4140, %v4139
          %v4202 = vpack.c.b16 %v4142, %v4141
          %v4203 = vpack.c.b16 %v4144, %v4143
          %v4204 = vpack.c.b16 %v4146, %v4145
          %v4205 = vpack.c.b16 %v4148, %v4147
          %v4206 = vpack.c.b16 %v4150, %v4149
          %v4207 = vpack.c.b16 %v4152, %v4151
          %v4208 = vpack.c.b16 %v4154, %v4153
          %v4209 = vpack.c.b16 %v4156, %v4155
          %v4210 = vpack.c.b16 %v4158, %v4157
          %v4211 = vpack.c.b16 %v4160, %v4159
          %v4212 = vpack.c.b16 %v4162, %v4161
          %v4213 = vpack.c.b16 %v4164, %v4163
          %v4214 = vpack.c.b16 %v4166, %v4165
          %v4215 = vpack.c.b16 %v4168, %v4167
          %v4216 = vpack.c.b16 %v4170, %v4169
          %v4217 = vpack.c.b16 %v4172, %v4171
          %v4218 = vpack.c.b16 %v4174, %v4173
          %v4219 = vpack.c.b16 %v4176, %v4175
          %v4220 = vpack.c.b16 %v4178, %v4177
          %v4221 = vpack.c.b16 %v4180, %v4179
          %v4222 = vpack.c.b16 %v4182, %v4181
          %v4223 = vpack.c.b16 %v4184, %v4183
          %v4224 = vpack.c.b16 %v4186, %v4185
          %v4225 = vpack.c.b16 %v4188, %v4187
          %v4226 = vpack.c.b16 %v4190, %v4189
          %v4227 = vpack.c.b16 %v4192, %v4191
          %v4228 = vpack.c.b16 %v4194, %v4193
          %v4229 = vpack.c.b16 %v4196, %v4195
          %v4230 = vpack.c.b16 %v4198, %v4197
          %4263 = vmatpush.bf16.msra.mxu0 %v4206
          %4264 = vmatpush.bf16.msra.mxu0 %v4205
          %4265 = vmatpush.bf16.msra.mxu0 %v4204
          %4266 = vmatpush.bf16.msra.mxu0 %v4203
          %4267 = vmatpush.bf16.msra.mxu0 %v4202
          %4268 = vmatpush.bf16.msra.mxu0 %v4201
          %4269 = vmatpush.bf16.msra.mxu0 %v4200
          %4270 = vmatpush.bf16.msra.mxu0 %v4199
          %4271 = vmatmul.bf16.gmra.mxu0 %v3691
          %v4272 = vpop.f32.mrf.mxu0
          %v4273 = vadd.f32 %v4070, %v4272
          %v4274 = vpop.f32.mrf.mxu0
          %4275 = vdwg.mxu0
          %4276 = vmatpush.bf16.msra.mxu0 %v4214
          %4277 = vmatpush.bf16.msra.mxu0 %v4213
          %4278 = vmatpush.bf16.msra.mxu0 %v4212
          %4279 = vmatpush.bf16.msra.mxu0 %v4211
          %4280 = vmatpush.bf16.msra.mxu0 %v4210
          %4281 = vmatpush.bf16.msra.mxu0 %v4209
          %4282 = vmatpush.bf16.msra.mxu0 %v4208
          %4283 = vmatpush.bf16.msra.mxu0 %v4207
          %4284 = vmatmul.bf16.gmra.mxu0 %v3692
          %v4285 = vpop.f32.mrf.mxu0
          %v4286 = vadd.f32 %v4273, %v4285
          %v4287 = vpop.f32.mrf.mxu0
          %4288 = vdwg.mxu0
          %4289 = vmatpush.bf16.msra.mxu0 %v4222
          %4290 = vmatpush.bf16.msra.mxu0 %v4221
          %4291 = vmatpush.bf16.msra.mxu0 %v4220
          %4292 = vmatpush.bf16.msra.mxu0 %v4219
          %4293 = vmatpush.bf16.msra.mxu0 %v4218
          %4294 = vmatpush.bf16.msra.mxu0 %v4217
          %4295 = vmatpush.bf16.msra.mxu0 %v4216
          %4296 = vmatpush.bf16.msra.mxu0 %v4215
          %4297 = vmatmul.bf16.gmra.mxu0 %v3693
          %v4298 = vpop.f32.mrf.mxu0
          %v4299 = vadd.f32 %v4286, %v4298
          %v4300 = vpop.f32.mrf.mxu0
          %4301 = vdwg.mxu0
          %4302 = vmatpush.bf16.msra.mxu0 %v4230
          %4303 = vmatpush.bf16.msra.mxu0 %v4229
          %4304 = vmatpush.bf16.msra.mxu0 %v4228
          %4305 = vmatpush.bf16.msra.mxu0 %v4227
          %4306 = vmatpush.bf16.msra.mxu0 %v4226
          %4307 = vmatpush.bf16.msra.mxu0 %v4225
          %4308 = vmatpush.bf16.msra.mxu0 %v4224
          %4309 = vmatpush.bf16.msra.mxu0 %v4223
          %4310 = vmatmul.bf16.gmra.mxu0 %v3694
          %v4311 = vpop.f32.mrf.mxu0
          %v4312 = vadd.f32 %v4299, %v4311
          %v4313 = vpop.f32.mrf.mxu0
          %4314 = vdwg.mxu0
          %v4316 = vrot.slane %v4312, 7
          %vm4318 = vcmask 1040384
          %v4319 = vsel %vm4318, %v4001, %v4316
          %4320 = vst [vmem:[%s274] sm:$0x3] %v4319
        $region56: #{tpu_custom_call.1} parent=39 // pred_fallthru
          _
        %s4321 = sand.u32 %s153, 1
        %s4322 = scalar_lea.sflag [#allocation6], %s4321
        %s4323 = sand.u32 %s153, 1
        %s4324 = smul.addr %s4323, 2
        %s4325 = scalar_lea.vmem [#allocation9], %s4324
        // Predicated region
        $region57: #{tpu_custom_call.1} parent=39 // pred_check
          %p4326 = pneg %p163
        $region58: #{tpu_custom_call.1} parent=39 // pred_check_branch
          %4328 = sbr.rel (%p4326) target = $region60
        $region59: #{tpu_custom_call.1} parent=39 // pred_region
          %4330 = vsyncadd %s4322, 0
          %s4331 = smul.addr %s25, 2
          %s4332 = scalar_lea.hbm %s5, %s4331
          %s4334 = sshll.u32 %s4325, 4
          %s4335 = int_to_ptr.vmem [resolvable:$true] %s4334
          %s4336 = sshll.u32 %s4332, 4
          %s4337 = int_to_ptr.hbm [resolvable:$true] %s4336
          %4339 = dma.vmem_to_hbm [thread:$0]  %s4335, 32, %s4337, %s4322
        $region60: #{tpu_custom_call.1} parent=39 // pred_fallthru
          _
      $region40: #{tpu_custom_call.1} parent=5 // pred_fallthru
        _
      %p4340 = scmp.le.s32.totalorder 2, %s16
      // Predicated region
      $region61: #{tpu_custom_call.1} parent=5 // pred_check
        %p4341 = pneg %p4340
      $region62: #{tpu_custom_call.1} parent=5 // pred_check_branch
        %4343 = sbr.rel (%p4341) target = $region64
      $region63: #{tpu_custom_call.1} parent=5 // pred_region
        %s4344 = ssub.s32 %s16, 2
        // Predicated region
        $region65: #{tpu_custom_call.1} parent=63 // pred_check
          %p4345 = pneg %p169
        $region66: #{tpu_custom_call.1} parent=63 // pred_check_branch
          %4347 = sbr.rel (%p4345) target = $region68
        $region67: #{tpu_custom_call.1} parent=63 // pred_region
          %s4348 = sand.u32 %s154, 1
          %s4349 = scalar_lea.sflag [#allocation6], %s4348
          %s4350 = sand.u32 %s154, 1
          %s4351 = smul.addr %s4350, 2
          %s4352 = scalar_lea.vmem [#allocation9], %s4351
          %4354 = dma.done %s4349, 32
        $region68: #{tpu_custom_call.1} parent=63 // pred_fallthru
          _
      $region64: #{tpu_custom_call.1} parent=5 // pred_fallthru
        _
    $region6: #{tpu_custom_call.1} parent=1 // loop_footer
      %s20 = sadd.s32 1, %s16
    $region7: #{tpu_custom_call.1} parent=1 // loop_footer_branch
      %15 = sbr.rel target = $region3
    $region8: #{tpu_custom_call.1} parent=1 // loop_exit
      _
    %4355 = vsyncpa [#allocation5], 1
    %s4356 = scalar_lea.sflag [#allocation5], 1
    %4357 = vsyncpa %s4356, 1
    %4358 = vsyncpa [#allocation8], 1
    %4359 = vsyncpa [#allocation6], 1
    %s4360 = scalar_lea.sflag [#allocation6], 1
    %4361 = vsyncpa %s4360, 1

</llo_original>
